<compile_context>
chip_gen: v7x
topology: tpu7x:2x2x1
jax: 0.10.0
libtpu: 0.0.40
codegen_flags: <defaults>
</compile_context>

<pallas_src>
import functools
import numpy as np
import jax
import jax.numpy as jnp
from jax.experimental import pallas as pl
from jax.experimental.pallas import tpu as pltpu


def _round_up(x, m):
    return ((x + m - 1) // m) * m


# --------------------------------------------------------------------------
# Fused Pallas kernel: [conv -> GroupNorm -> SiLU] * L  ->  pool+linear+SiLU
# --------------------------------------------------------------------------
def _make_fused_kernel(layer_metas):
    """layer_metas: static tuple of (num_groups, elems_per_group) per conv layer."""

    def kernel(*refs):
        # refs = [x] + [w, b, gamma, beta] * L + [w_head, b_head] + [out]
        x_ref, out_ref = refs[0], refs[-1]
        a_bf16 = x_ref[...]                                            # (Bblk, Cin*H*W) bf16
        idx = 1
        for groups, per_grp in layer_metas:
            w_ref, b_ref, g_ref, be_ref = refs[idx:idx + 4]
            idx += 4

            # Conv2d(k=3, s=2, p=1) as one dense lane-wide MXU matmul (bf16 x bf16 -> f32 acc).
            y = jnp.dot(a_bf16, w_ref[...],
                        preferred_element_type=jnp.float32) + b_ref[...]   # (Bblk, C*P)

            # GroupNorm (eps=1e-5): columns are (channel, spatial)-ordered so each group is a
            # contiguous lane block.  Two-pass centered, biased variance computed with f32
            # VPU/XLU lane reductions over static slices -> no extra MXU round-trips.
            parts = []
            for g in range(groups):
                yg = y[:, g * per_grp:(g + 1) * per_grp]                # static lane slice
                mu = jnp.mean(yg, axis=-1, keepdims=True)               # (Bblk, 1)
                c = yg - mu
                var = jnp.mean(c * c, axis=-1, keepdims=True)
                parts.append(c * jax.lax.rsqrt(var + 1e-5))
            z = jnp.concatenate(parts, axis=-1) * g_ref[...] + be_ref[...]

            a = z * jax.nn.sigmoid(z)                                   # SiLU
            a_bf16 = a.astype(jnp.bfloat16)

        # AdaptiveAvgPool2d((1,1)) + Flatten + Linear folded into one matmul (1/P in w_head).
        wh_ref, bh_ref = refs[idx], refs[idx + 1]
        yh = jnp.dot(a_bf16, wh_ref[...],
                     preferred_element_type=jnp.float32) + bh_ref[...]      # (Bblk, out_dim)
        out_ref[...] = (yh * jax.nn.sigmoid(yh)).astype(out_ref.dtype)

    return kernel


# --------------------------------------------------------------------------
# Host-side, one-time parameter preparation (no per-step work here)
# --------------------------------------------------------------------------
def _conv_to_dense(w_conv, h, w, stride=2, pad=1):
    """PyTorch Conv2d weight (Cout, Cin, 3, 3) -> dense (Cin*H*W, Cout*Ho*Wo) matrix.

    Rows/columns flattened in (channel, row, col) order == NCHW .reshape(B, -1) order."""
    wc = np.asarray(w_conv, np.float32)
    cout, cin, ksz_h, ksz_w = wc.shape
    ho = (h + 2 * pad - ksz_h) // stride + 1
    wo = (w + 2 * pad - ksz_w) // stride + 1
    dense = np.zeros((cin * h * w, cout * ho * wo), np.float32)
    cout_idx = np.arange(cout)
    for oy in range(ho):
        for ox in range(wo):
            for ky in range(ksz_h):
                for kx in range(ksz_w):
                    iy = stride * oy + ky - pad
                    ix = stride * ox + kx - pad
                    if 0 <= iy < h and 0 <= ix < w:
                        for ci in range(cin):
                            dense[ci * h * w + iy * w + ix,
                                  cout_idx * ho * wo + oy * wo + ox] += wc[:, ci, ky, kx]
    return dense, ho, wo


def init_params(key, grid_size, output_dim=128, base_channels=16):
    """Deterministic synthetic parameters matching the PyTorch module's shapes."""
    layers = []
    in_ch, cur, ch = 1, grid_size, base_channels
    while cur > 4:
        k1, k2, key = jax.random.split(key, 3)
        fan_in = in_ch * 9
        w = jax.random.normal(k1, (ch, in_ch, 3, 3), jnp.float32) / np.sqrt(fan_in)
        b = 0.01 * jax.random.normal(k2, (ch,), jnp.float32)
        groups = min(8, ch // 2 if ch > 1 else 1)
        layers.append(dict(w=w, b=b,
                           gamma=jnp.ones((ch,), jnp.float32),   # nn.GroupNorm affine defaults
                           beta=jnp.zeros((ch,), jnp.float32),
                           groups=groups))
        in_ch, ch, cur = ch, ch * 2, cur // 2
    k1, k2, key = jax.random.split(key, 3)
    w_lin = jax.random.normal(k1, (output_dim, in_ch), jnp.float32) / np.sqrt(in_ch)
    b_lin = 0.01 * jax.random.normal(k2, (output_dim,), jnp.float32)
    return layers, w_lin, b_lin


def prepare_params(layers, w_lin, b_lin, grid_size):
    """Fold convs into dense bf16 matrices; return (params pytree, static layer_metas)."""
    dense_layers, metas = [], []
    h = w = grid_size
    for lp in layers:
        dense, ho, wo = _conv_to_dense(lp["w"], h, w)
        c_out = int(lp["w"].shape[0])
        g = int(lp["groups"])
        assert c_out % g == 0, "GroupNorm requires num_channels % num_groups == 0"
        p = ho * wo
        dense_layers.append(dict(
            w=jnp.asarray(dense, jnp.bfloat16),
            b=jnp.asarray(np.repeat(np.asarray(lp["b"], np.float32), p)[None, :]),
            g=jnp.asarray(np.repeat(np.asarray(lp["gamma"], np.float32), p)[None, :]),
            be=jnp.asarray(np.repeat(np.asarray(lp["beta"], np.float32), p)[None, :]),
        ))
        metas.append((g, (c_out // g) * p))
        h, w = ho, wo
    p_final = h * w
    # pool folded into the linear: out = a @ (repeat(w_lin.T, P)/P) + b_lin
    w_head = np.repeat(np.asarray(w_lin, np.float32).T, p_final, axis=0) / p_final
    b_head = np.asarray(b_lin, np.float32)[None, :]
    params = dict(layers=dense_layers,
                  w_head=jnp.asarray(w_head, jnp.bfloat16),
                  b_head=jnp.asarray(b_head))
    return params, tuple(metas)


# --------------------------------------------------------------------------
# Forward: pad batch + one pallas_call (grid over batch tiles)
# --------------------------------------------------------------------------
@functools.partial(jax.jit, static_argnames=("layer_metas",))
def obstacle_encoder_cnn(obstacle_map, params, layer_metas):
    x = obstacle_map
    if x.ndim == 3:
        x = x[:, None]                                   # unsqueeze(1): (B,H,W) -> (B,1,H,W)
    batch = x.shape[0]
    feat_in = int(np.prod(x.shape[1:]))
    # bf16 input: halves input DMA; the first matmul wanted bf16 anyway (values are {0,1}).
    x_flat = x.reshape(batch, feat_in).astype(jnp.bfloat16)

    # Pad the M (batch) dimension: >=16 rows fills a bf16 sublane tile; large batches tile at 128.
    if batch <= 128:
        block_b = _round_up(max(batch, 16), 16)
    else:
        block_b = 128
    padded_b = _round_up(batch, block_b)
    if padded_b != batch:
        x_flat = jnp.pad(x_flat, ((0, padded_b - batch), (0, 0)))

    args = [x_flat]
    in_specs = [pl.BlockSpec((block_b, feat_in), lambda i: (i, 0))]
    for lp in params["layers"]:
        for name in ("w", "b", "g", "be"):
            arr = lp[name]
            args.append(arr)
            # Constant block index: weights are fetched once and reused across all batch tiles.
            in_specs.append(pl.BlockSpec(arr.shape, lambda i: (0, 0)))
    for name in ("w_head", "b_head"):
        arr = params[name]
        args.append(arr)
        in_specs.append(pl.BlockSpec(arr.shape, lambda i: (0, 0)))

    out_dim = params["b_head"].shape[1]
    out = pl.pallas_call(
        _make_fused_kernel(layer_metas),
        out_shape=jax.ShapeDtypeStruct((padded_b, out_dim), jnp.float32),
        grid=(padded_b // block_b,),
        in_specs=in_specs,
        out_specs=pl.BlockSpec((block_b, out_dim), lambda i: (i, 0)),
        compiler_params=pltpu.CompilerParams(
            dimension_semantics=("parallel",),           # v7x: batch tiles split across 2 TCs
            vmem_limit_bytes=32 * 1024 * 1024),
    )(*args)
    return out[:batch]


# --------------------------------------------------------------------------
# Pure-JAX reference (mirrors the PyTorch module) for a tolerance check
# --------------------------------------------------------------------------
def _reference_forward(x_nchw, layers, w_lin, b_lin):
    a = x_nchw.astype(jnp.float32)
    for lp in layers:
        a = jax.lax.conv_general_dilated(
            a, lp["w"], window_strides=(2, 2), padding=((1, 1), (1, 1)),
            dimension_numbers=("NCHW", "OIHW", "NCHW"),
            precision=jax.lax.Precision.HIGHEST)
        a = a + lp["b"][None, :, None, None]
        bsz, c, hh, ww = a.shape
        g = int(lp["groups"])
        ag = a.reshape(bsz, g, (c // g) * hh * ww)
        mu = ag.mean(-1, keepdims=True)
        var = ((ag - mu) ** 2).mean(-1, keepdims=True)
        ag = (ag - mu) * jax.lax.rsqrt(var + 1e-5)
        a = ag.reshape(bsz, c, hh, ww) * lp["gamma"][None, :, None, None] \
            + lp["beta"][None, :, None, None]
        a = a * jax.nn.sigmoid(a)                                  # SiLU
    a = a.mean(axis=(2, 3))                                        # AdaptiveAvgPool2d((1,1)) + Flatten
    y = jnp.matmul(a, w_lin.T, precision=jax.lax.Precision.HIGHEST) + b_lin
    return y * jax.nn.sigmoid(y)                                   # final SiLU


# --------------------------------------------------------------------------
if __name__ == "__main__":
    key = jax.random.PRNGKey(0)
    k_in, k_par = jax.random.split(key)

    B, GRID = 2, 16
    OUTPUT_DIM, BASE_CH = 128, 16

    # Binary obstacle map, 3-D input to exercise the unsqueeze path.
    obstacle_map = (jax.random.uniform(k_in, (B, GRID, GRID)) < 0.3).astype(jnp.float32)

    layers, w_lin, b_lin = init_params(k_par, GRID, OUTPUT_DIM, BASE_CH)
    params, layer_metas = prepare_params(layers, w_lin, b_lin, GRID)

    out = obstacle_encoder_cnn(obstacle_map, params, layer_metas)
    out = jax.block_until_ready(out)

    assert out.shape == (B, OUTPUT_DIM), out.shape
    assert out.dtype == jnp.float32
    assert bool(jnp.all(jnp.isfinite(out)))

    # Numerical check vs. f32 reference (bf16 MXU policy -> loose tolerance).
    ref = _reference_forward(obstacle_map[:, None], layers, w_lin, b_lin)
    max_err = float(jnp.max(jnp.abs(out - ref)))
    assert max_err < 5e-2, f"max abs err vs reference: {max_err}"

    print("KERNEL_OK")
</pallas_src>

<mosaic_0001>
module attributes {stable_mosaic.version = 11 : i64} {
  func.func @kernel(%arg0: i32, %arg1: memref<16x256xbf16, #tpu.memory_space<vmem>>, %arg2: memref<256x1024xbf16, #tpu.memory_space<vmem>>, %arg3: memref<1x1024xf32, #tpu.memory_space<vmem>>, %arg4: memref<1x1024xf32, #tpu.memory_space<vmem>>, %arg5: memref<1x1024xf32, #tpu.memory_space<vmem>>, %arg6: memref<1024x512xbf16, #tpu.memory_space<vmem>>, %arg7: memref<1x512xf32, #tpu.memory_space<vmem>>, %arg8: memref<1x512xf32, #tpu.memory_space<vmem>>, %arg9: memref<1x512xf32, #tpu.memory_space<vmem>>, %arg10: memref<512x128xbf16, #tpu.memory_space<vmem>>, %arg11: memref<1x128xf32, #tpu.memory_space<vmem>>, %arg12: memref<16x128xf32, #tpu.memory_space<vmem>>) attributes {dimension_semantics = [#tpu.dimension_semantics<parallel>], iteration_bounds = array<i64: 1>, scalar_prefetch = 0 : i64, scratch_operands = 0 : i64, tpu.core_type = #tpu.core_type<tc>, window_params = [{transform_indices = @transform_0, window_bounds = array<i64: 16, 256>}, {pipeline_mode = #tpu.pipeline_mode<synchronous>, transform_indices = @transform_1, window_bounds = array<i64: 256, 1024>}, {pipeline_mode = #tpu.pipeline_mode<synchronous>, transform_indices = @transform_2, window_bounds = array<i64: 1, 1024>}, {pipeline_mode = #tpu.pipeline_mode<synchronous>, transform_indices = @transform_3, window_bounds = array<i64: 1, 1024>}, {pipeline_mode = #tpu.pipeline_mode<synchronous>, transform_indices = @transform_4, window_bounds = array<i64: 1, 1024>}, {pipeline_mode = #tpu.pipeline_mode<synchronous>, transform_indices = @transform_5, window_bounds = array<i64: 1024, 512>}, {pipeline_mode = #tpu.pipeline_mode<synchronous>, transform_indices = @transform_6, window_bounds = array<i64: 1, 512>}, {pipeline_mode = #tpu.pipeline_mode<synchronous>, transform_indices = @transform_7, window_bounds = array<i64: 1, 512>}, {pipeline_mode = #tpu.pipeline_mode<synchronous>, transform_indices = @transform_8, window_bounds = array<i64: 1, 512>}, {pipeline_mode = #tpu.pipeline_mode<synchronous>, transform_indices = @transform_9, window_bounds = array<i64: 512, 128>}, {pipeline_mode = #tpu.pipeline_mode<synchronous>, transform_indices = @transform_10, window_bounds = array<i64: 1, 128>}, {transform_indices = @transform_11, window_bounds = array<i64: 16, 128>}]} {
    %c0 = arith.constant 0 : index
    %c0_0 = arith.constant 0 : index
    %0 = vector.load %arg1[%c0, %c0_0] : memref<16x256xbf16, #tpu.memory_space<vmem>>, vector<16x256xbf16>
    %c0_1 = arith.constant 0 : index
    %c0_2 = arith.constant 0 : index
    %1 = vector.load %arg2[%c0_1, %c0_2] : memref<256x1024xbf16, #tpu.memory_space<vmem>>, vector<256x1024xbf16>
    %cst = arith.constant dense<0.000000e+00> : vector<16x1024xf32>
    %2 = tpu.matmul %0, %1, %cst {dimension_numbers = #tpu.dot_dimension_numbers<[1], [0], [0], [1], [0, 0, 1, 1], [], []>} : vector<16x256xbf16>, vector<256x1024xbf16>, vector<16x1024xf32> -> vector<16x1024xf32>
    %c0_3 = arith.constant 0 : index
    %c0_4 = arith.constant 0 : index
    %3 = vector.load %arg3[%c0_3, %c0_4] : memref<1x1024xf32, #tpu.memory_space<vmem>>, vector<1x1024xf32>
    %4 = vector.broadcast %3 : vector<1x1024xf32> to vector<16x1024xf32>
    %5 = arith.addf %2, %4 : vector<16x1024xf32>
    %6 = vector.extract_strided_slice %5 {offsets = [0, 0], sizes = [16, 128], strides = [1, 1]} : vector<16x1024xf32> to vector<16x128xf32>
    %cst_5 = arith.constant dense<0.000000e+00> : vector<16xf32>
    %7 = vector.multi_reduction <add>, %6, %cst_5 [1] : vector<16x128xf32> to vector<16xf32>
    %8 = vector.shape_cast %7 : vector<16xf32> to vector<16x1xf32>
    %cst_6 = arith.constant 1.280000e+02 : f32
    %9 = vector.broadcast %cst_6 : f32 to vector<16x1xf32>
    %10 = arith.divf %8, %9 : vector<16x1xf32>
    %11 = vector.broadcast %10 : vector<16x1xf32> to vector<16x128xf32>
    %12 = arith.subf %6, %11 : vector<16x128xf32>
    %13 = arith.mulf %12, %12 : vector<16x128xf32>
    %cst_7 = arith.constant dense<0.000000e+00> : vector<16xf32>
    %14 = vector.multi_reduction <add>, %13, %cst_7 [1] : vector<16x128xf32> to vector<16xf32>
    %15 = vector.shape_cast %14 : vector<16xf32> to vector<16x1xf32>
    %cst_8 = arith.constant 1.280000e+02 : f32
    %16 = vector.broadcast %cst_8 : f32 to vector<16x1xf32>
    %17 = arith.divf %15, %16 : vector<16x1xf32>
    %cst_9 = arith.constant 9.99999974E-6 : f32
    %18 = vector.broadcast %cst_9 : f32 to vector<16x1xf32>
    %19 = arith.addf %17, %18 : vector<16x1xf32>
    %20 = math.rsqrt %19 : vector<16x1xf32>
    %21 = vector.broadcast %20 : vector<16x1xf32> to vector<16x128xf32>
    %22 = arith.mulf %12, %21 : vector<16x128xf32>
    %23 = vector.extract_strided_slice %5 {offsets = [0, 128], sizes = [16, 128], strides = [1, 1]} : vector<16x1024xf32> to vector<16x128xf32>
    %cst_10 = arith.constant dense<0.000000e+00> : vector<16xf32>
    %24 = vector.multi_reduction <add>, %23, %cst_10 [1] : vector<16x128xf32> to vector<16xf32>
    %25 = vector.shape_cast %24 : vector<16xf32> to vector<16x1xf32>
    %cst_11 = arith.constant 1.280000e+02 : f32
    %26 = vector.broadcast %cst_11 : f32 to vector<16x1xf32>
    %27 = arith.divf %25, %26 : vector<16x1xf32>
    %28 = vector.broadcast %27 : vector<16x1xf32> to vector<16x128xf32>
    %29 = arith.subf %23, %28 : vector<16x128xf32>
    %30 = arith.mulf %29, %29 : vector<16x128xf32>
    %cst_12 = arith.constant dense<0.000000e+00> : vector<16xf32>
    %31 = vector.multi_reduction <add>, %30, %cst_12 [1] : vector<16x128xf32> to vector<16xf32>
    %32 = vector.shape_cast %31 : vector<16xf32> to vector<16x1xf32>
    %cst_13 = arith.constant 1.280000e+02 : f32
    %33 = vector.broadcast %cst_13 : f32 to vector<16x1xf32>
    %34 = arith.divf %32, %33 : vector<16x1xf32>
    %cst_14 = arith.constant 9.99999974E-6 : f32
    %35 = vector.broadcast %cst_14 : f32 to vector<16x1xf32>
    %36 = arith.addf %34, %35 : vector<16x1xf32>
    %37 = math.rsqrt %36 : vector<16x1xf32>
    %38 = vector.broadcast %37 : vector<16x1xf32> to vector<16x128xf32>
    %39 = arith.mulf %29, %38 : vector<16x128xf32>
    %40 = vector.extract_strided_slice %5 {offsets = [0, 256], sizes = [16, 128], strides = [1, 1]} : vector<16x1024xf32> to vector<16x128xf32>
    %cst_15 = arith.constant dense<0.000000e+00> : vector<16xf32>
    %41 = vector.multi_reduction <add>, %40, %cst_15 [1] : vector<16x128xf32> to vector<16xf32>
    %42 = vector.shape_cast %41 : vector<16xf32> to vector<16x1xf32>
    %cst_16 = arith.constant 1.280000e+02 : f32
    %43 = vector.broadcast %cst_16 : f32 to vector<16x1xf32>
    %44 = arith.divf %42, %43 : vector<16x1xf32>
    %45 = vector.broadcast %44 : vector<16x1xf32> to vector<16x128xf32>
    %46 = arith.subf %40, %45 : vector<16x128xf32>
    %47 = arith.mulf %46, %46 : vector<16x128xf32>
    %cst_17 = arith.constant dense<0.000000e+00> : vector<16xf32>
    %48 = vector.multi_reduction <add>, %47, %cst_17 [1] : vector<16x128xf32> to vector<16xf32>
    %49 = vector.shape_cast %48 : vector<16xf32> to vector<16x1xf32>
    %cst_18 = arith.constant 1.280000e+02 : f32
    %50 = vector.broadcast %cst_18 : f32 to vector<16x1xf32>
    %51 = arith.divf %49, %50 : vector<16x1xf32>
    %cst_19 = arith.constant 9.99999974E-6 : f32
    %52 = vector.broadcast %cst_19 : f32 to vector<16x1xf32>
    %53 = arith.addf %51, %52 : vector<16x1xf32>
    %54 = math.rsqrt %53 : vector<16x1xf32>
    %55 = vector.broadcast %54 : vector<16x1xf32> to vector<16x128xf32>
    %56 = arith.mulf %46, %55 : vector<16x128xf32>
    %57 = vector.extract_strided_slice %5 {offsets = [0, 384], sizes = [16, 128], strides = [1, 1]} : vector<16x1024xf32> to vector<16x128xf32>
    %cst_20 = arith.constant dense<0.000000e+00> : vector<16xf32>
    %58 = vector.multi_reduction <add>, %57, %cst_20 [1] : vector<16x128xf32> to vector<16xf32>
    %59 = vector.shape_cast %58 : vector<16xf32> to vector<16x1xf32>
    %cst_21 = arith.constant 1.280000e+02 : f32
    %60 = vector.broadcast %cst_21 : f32 to vector<16x1xf32>
    %61 = arith.divf %59, %60 : vector<16x1xf32>
    %62 = vector.broadcast %61 : vector<16x1xf32> to vector<16x128xf32>
    %63 = arith.subf %57, %62 : vector<16x128xf32>
    %64 = arith.mulf %63, %63 : vector<16x128xf32>
    %cst_22 = arith.constant dense<0.000000e+00> : vector<16xf32>
    %65 = vector.multi_reduction <add>, %64, %cst_22 [1] : vector<16x128xf32> to vector<16xf32>
    %66 = vector.shape_cast %65 : vector<16xf32> to vector<16x1xf32>
    %cst_23 = arith.constant 1.280000e+02 : f32
    %67 = vector.broadcast %cst_23 : f32 to vector<16x1xf32>
    %68 = arith.divf %66, %67 : vector<16x1xf32>
    %cst_24 = arith.constant 9.99999974E-6 : f32
    %69 = vector.broadcast %cst_24 : f32 to vector<16x1xf32>
    %70 = arith.addf %68, %69 : vector<16x1xf32>
    %71 = math.rsqrt %70 : vector<16x1xf32>
    %72 = vector.broadcast %71 : vector<16x1xf32> to vector<16x128xf32>
    %73 = arith.mulf %63, %72 : vector<16x128xf32>
    %74 = vector.extract_strided_slice %5 {offsets = [0, 512], sizes = [16, 128], strides = [1, 1]} : vector<16x1024xf32> to vector<16x128xf32>
    %cst_25 = arith.constant dense<0.000000e+00> : vector<16xf32>
    %75 = vector.multi_reduction <add>, %74, %cst_25 [1] : vector<16x128xf32> to vector<16xf32>
    %76 = vector.shape_cast %75 : vector<16xf32> to vector<16x1xf32>
    %cst_26 = arith.constant 1.280000e+02 : f32
    %77 = vector.broadcast %cst_26 : f32 to vector<16x1xf32>
    %78 = arith.divf %76, %77 : vector<16x1xf32>
    %79 = vector.broadcast %78 : vector<16x1xf32> to vector<16x128xf32>
    %80 = arith.subf %74, %79 : vector<16x128xf32>
    %81 = arith.mulf %80, %80 : vector<16x128xf32>
    %cst_27 = arith.constant dense<0.000000e+00> : vector<16xf32>
    %82 = vector.multi_reduction <add>, %81, %cst_27 [1] : vector<16x128xf32> to vector<16xf32>
    %83 = vector.shape_cast %82 : vector<16xf32> to vector<16x1xf32>
    %cst_28 = arith.constant 1.280000e+02 : f32
    %84 = vector.broadcast %cst_28 : f32 to vector<16x1xf32>
    %85 = arith.divf %83, %84 : vector<16x1xf32>
    %cst_29 = arith.constant 9.99999974E-6 : f32
    %86 = vector.broadcast %cst_29 : f32 to vector<16x1xf32>
    %87 = arith.addf %85, %86 : vector<16x1xf32>
    %88 = math.rsqrt %87 : vector<16x1xf32>
    %89 = vector.broadcast %88 : vector<16x1xf32> to vector<16x128xf32>
    %90 = arith.mulf %80, %89 : vector<16x128xf32>
    %91 = vector.extract_strided_slice %5 {offsets = [0, 640], sizes = [16, 128], strides = [1, 1]} : vector<16x1024xf32> to vector<16x128xf32>
    %cst_30 = arith.constant dense<0.000000e+00> : vector<16xf32>
    %92 = vector.multi_reduction <add>, %91, %cst_30 [1] : vector<16x128xf32> to vector<16xf32>
    %93 = vector.shape_cast %92 : vector<16xf32> to vector<16x1xf32>
    %cst_31 = arith.constant 1.280000e+02 : f32
    %94 = vector.broadcast %cst_31 : f32 to vector<16x1xf32>
    %95 = arith.divf %93, %94 : vector<16x1xf32>
    %96 = vector.broadcast %95 : vector<16x1xf32> to vector<16x128xf32>
    %97 = arith.subf %91, %96 : vector<16x128xf32>
    %98 = arith.mulf %97, %97 : vector<16x128xf32>
    %cst_32 = arith.constant dense<0.000000e+00> : vector<16xf32>
    %99 = vector.multi_reduction <add>, %98, %cst_32 [1] : vector<16x128xf32> to vector<16xf32>
    %100 = vector.shape_cast %99 : vector<16xf32> to vector<16x1xf32>
    %cst_33 = arith.constant 1.280000e+02 : f32
    %101 = vector.broadcast %cst_33 : f32 to vector<16x1xf32>
    %102 = arith.divf %100, %101 : vector<16x1xf32>
    %cst_34 = arith.constant 9.99999974E-6 : f32
    %103 = vector.broadcast %cst_34 : f32 to vector<16x1xf32>
    %104 = arith.addf %102, %103 : vector<16x1xf32>
    %105 = math.rsqrt %104 : vector<16x1xf32>
    %106 = vector.broadcast %105 : vector<16x1xf32> to vector<16x128xf32>
    %107 = arith.mulf %97, %106 : vector<16x128xf32>
    %108 = vector.extract_strided_slice %5 {offsets = [0, 768], sizes = [16, 128], strides = [1, 1]} : vector<16x1024xf32> to vector<16x128xf32>
    %cst_35 = arith.constant dense<0.000000e+00> : vector<16xf32>
    %109 = vector.multi_reduction <add>, %108, %cst_35 [1] : vector<16x128xf32> to vector<16xf32>
    %110 = vector.shape_cast %109 : vector<16xf32> to vector<16x1xf32>
    %cst_36 = arith.constant 1.280000e+02 : f32
    %111 = vector.broadcast %cst_36 : f32 to vector<16x1xf32>
    %112 = arith.divf %110, %111 : vector<16x1xf32>
    %113 = vector.broadcast %112 : vector<16x1xf32> to vector<16x128xf32>
    %114 = arith.subf %108, %113 : vector<16x128xf32>
    %115 = arith.mulf %114, %114 : vector<16x128xf32>
    %cst_37 = arith.constant dense<0.000000e+00> : vector<16xf32>
    %116 = vector.multi_reduction <add>, %115, %cst_37 [1] : vector<16x128xf32> to vector<16xf32>
    %117 = vector.shape_cast %116 : vector<16xf32> to vector<16x1xf32>
    %cst_38 = arith.constant 1.280000e+02 : f32
    %118 = vector.broadcast %cst_38 : f32 to vector<16x1xf32>
    %119 = arith.divf %117, %118 : vector<16x1xf32>
    %cst_39 = arith.constant 9.99999974E-6 : f32
    %120 = vector.broadcast %cst_39 : f32 to vector<16x1xf32>
    %121 = arith.addf %119, %120 : vector<16x1xf32>
    %122 = math.rsqrt %121 : vector<16x1xf32>
    %123 = vector.broadcast %122 : vector<16x1xf32> to vector<16x128xf32>
    %124 = arith.mulf %114, %123 : vector<16x128xf32>
    %125 = vector.extract_strided_slice %5 {offsets = [0, 896], sizes = [16, 128], strides = [1, 1]} : vector<16x1024xf32> to vector<16x128xf32>
    %cst_40 = arith.constant dense<0.000000e+00> : vector<16xf32>
    %126 = vector.multi_reduction <add>, %125, %cst_40 [1] : vector<16x128xf32> to vector<16xf32>
    %127 = vector.shape_cast %126 : vector<16xf32> to vector<16x1xf32>
    %cst_41 = arith.constant 1.280000e+02 : f32
    %128 = vector.broadcast %cst_41 : f32 to vector<16x1xf32>
    %129 = arith.divf %127, %128 : vector<16x1xf32>
    %130 = vector.broadcast %129 : vector<16x1xf32> to vector<16x128xf32>
    %131 = arith.subf %125, %130 : vector<16x128xf32>
    %132 = arith.mulf %131, %131 : vector<16x128xf32>
    %cst_42 = arith.constant dense<0.000000e+00> : vector<16xf32>
    %133 = vector.multi_reduction <add>, %132, %cst_42 [1] : vector<16x128xf32> to vector<16xf32>
    %134 = vector.shape_cast %133 : vector<16xf32> to vector<16x1xf32>
    %cst_43 = arith.constant 1.280000e+02 : f32
    %135 = vector.broadcast %cst_43 : f32 to vector<16x1xf32>
    %136 = arith.divf %134, %135 : vector<16x1xf32>
    %cst_44 = arith.constant 9.99999974E-6 : f32
    %137 = vector.broadcast %cst_44 : f32 to vector<16x1xf32>
    %138 = arith.addf %136, %137 : vector<16x1xf32>
    %139 = math.rsqrt %138 : vector<16x1xf32>
    %140 = vector.broadcast %139 : vector<16x1xf32> to vector<16x128xf32>
    %141 = arith.mulf %131, %140 : vector<16x128xf32>
    %142 = tpu.concatenate %22, %39, %56, %73, %90, %107, %124, %141 in 1 : vector<16x128xf32>, vector<16x128xf32>, vector<16x128xf32>, vector<16x128xf32>, vector<16x128xf32>, vector<16x128xf32>, vector<16x128xf32>, vector<16x128xf32> -> vector<16x1024xf32>
    %c0_45 = arith.constant 0 : index
    %c0_46 = arith.constant 0 : index
    %143 = vector.load %arg4[%c0_45, %c0_46] : memref<1x1024xf32, #tpu.memory_space<vmem>>, vector<1x1024xf32>
    %144 = vector.broadcast %143 : vector<1x1024xf32> to vector<16x1024xf32>
    %145 = arith.mulf %142, %144 : vector<16x1024xf32>
    %c0_47 = arith.constant 0 : index
    %c0_48 = arith.constant 0 : index
    %146 = vector.load %arg5[%c0_47, %c0_48] : memref<1x1024xf32, #tpu.memory_space<vmem>>, vector<1x1024xf32>
    %147 = vector.broadcast %146 : vector<1x1024xf32> to vector<16x1024xf32>
    %148 = arith.addf %145, %147 : vector<16x1024xf32>
    %149 = arith.negf %148 : vector<16x1024xf32>
    %150 = math.exp %149 : vector<16x1024xf32>
    %cst_49 = arith.constant 1.000000e+00 : f32
    %151 = vector.broadcast %cst_49 : f32 to vector<16x1024xf32>
    %152 = arith.addf %151, %150 : vector<16x1024xf32>
    %153 = arith.divf %151, %152 : vector<16x1024xf32>
    %154 = arith.mulf %148, %153 : vector<16x1024xf32>
    %155 = arith.truncf %154 : vector<16x1024xf32> to vector<16x1024xbf16>
    %c0_50 = arith.constant 0 : index
    %c0_51 = arith.constant 0 : index
    %156 = vector.load %arg6[%c0_50, %c0_51] : memref<1024x512xbf16, #tpu.memory_space<vmem>>, vector<1024x512xbf16>
    %cst_52 = arith.constant dense<0.000000e+00> : vector<16x512xf32>
    %157 = tpu.matmul %155, %156, %cst_52 {dimension_numbers = #tpu.dot_dimension_numbers<[1], [0], [0], [1], [0, 0, 1, 1], [], []>} : vector<16x1024xbf16>, vector<1024x512xbf16>, vector<16x512xf32> -> vector<16x512xf32>
    %c0_53 = arith.constant 0 : index
    %c0_54 = arith.constant 0 : index
    %158 = vector.load %arg7[%c0_53, %c0_54] : memref<1x512xf32, #tpu.memory_space<vmem>>, vector<1x512xf32>
    %159 = vector.broadcast %158 : vector<1x512xf32> to vector<16x512xf32>
    %160 = arith.addf %157, %159 : vector<16x512xf32>
    %161 = vector.extract_strided_slice %160 {offsets = [0, 0], sizes = [16, 64], strides = [1, 1]} : vector<16x512xf32> to vector<16x64xf32>
    %cst_55 = arith.constant dense<0.000000e+00> : vector<16xf32>
    %162 = vector.multi_reduction <add>, %161, %cst_55 [1] : vector<16x64xf32> to vector<16xf32>
    %163 = vector.shape_cast %162 : vector<16xf32> to vector<16x1xf32>
    %cst_56 = arith.constant 6.400000e+01 : f32
    %164 = vector.broadcast %cst_56 : f32 to vector<16x1xf32>
    %165 = arith.divf %163, %164 : vector<16x1xf32>
    %166 = vector.broadcast %165 : vector<16x1xf32> to vector<16x64xf32>
    %167 = arith.subf %161, %166 : vector<16x64xf32>
    %168 = arith.mulf %167, %167 : vector<16x64xf32>
    %cst_57 = arith.constant dense<0.000000e+00> : vector<16xf32>
    %169 = vector.multi_reduction <add>, %168, %cst_57 [1] : vector<16x64xf32> to vector<16xf32>
    %170 = vector.shape_cast %169 : vector<16xf32> to vector<16x1xf32>
    %cst_58 = arith.constant 6.400000e+01 : f32
    %171 = vector.broadcast %cst_58 : f32 to vector<16x1xf32>
    %172 = arith.divf %170, %171 : vector<16x1xf32>
    %cst_59 = arith.constant 9.99999974E-6 : f32
    %173 = vector.broadcast %cst_59 : f32 to vector<16x1xf32>
    %174 = arith.addf %172, %173 : vector<16x1xf32>
    %175 = math.rsqrt %174 : vector<16x1xf32>
    %176 = vector.broadcast %175 : vector<16x1xf32> to vector<16x64xf32>
    %177 = arith.mulf %167, %176 : vector<16x64xf32>
    %178 = vector.extract_strided_slice %160 {offsets = [0, 64], sizes = [16, 64], strides = [1, 1]} : vector<16x512xf32> to vector<16x64xf32>
    %cst_60 = arith.constant dense<0.000000e+00> : vector<16xf32>
    %179 = vector.multi_reduction <add>, %178, %cst_60 [1] : vector<16x64xf32> to vector<16xf32>
    %180 = vector.shape_cast %179 : vector<16xf32> to vector<16x1xf32>
    %cst_61 = arith.constant 6.400000e+01 : f32
    %181 = vector.broadcast %cst_61 : f32 to vector<16x1xf32>
    %182 = arith.divf %180, %181 : vector<16x1xf32>
    %183 = vector.broadcast %182 : vector<16x1xf32> to vector<16x64xf32>
    %184 = arith.subf %178, %183 : vector<16x64xf32>
    %185 = arith.mulf %184, %184 : vector<16x64xf32>
    %cst_62 = arith.constant dense<0.000000e+00> : vector<16xf32>
    %186 = vector.multi_reduction <add>, %185, %cst_62 [1] : vector<16x64xf32> to vector<16xf32>
    %187 = vector.shape_cast %186 : vector<16xf32> to vector<16x1xf32>
    %cst_63 = arith.constant 6.400000e+01 : f32
    %188 = vector.broadcast %cst_63 : f32 to vector<16x1xf32>
    %189 = arith.divf %187, %188 : vector<16x1xf32>
    %cst_64 = arith.constant 9.99999974E-6 : f32
    %190 = vector.broadcast %cst_64 : f32 to vector<16x1xf32>
    %191 = arith.addf %189, %190 : vector<16x1xf32>
    %192 = math.rsqrt %191 : vector<16x1xf32>
    %193 = vector.broadcast %192 : vector<16x1xf32> to vector<16x64xf32>
    %194 = arith.mulf %184, %193 : vector<16x64xf32>
    %195 = vector.extract_strided_slice %160 {offsets = [0, 128], sizes = [16, 64], strides = [1, 1]} : vector<16x512xf32> to vector<16x64xf32>
    %cst_65 = arith.constant dense<0.000000e+00> : vector<16xf32>
    %196 = vector.multi_reduction <add>, %195, %cst_65 [1] : vector<16x64xf32> to vector<16xf32>
    %197 = vector.shape_cast %196 : vector<16xf32> to vector<16x1xf32>
    %cst_66 = arith.constant 6.400000e+01 : f32
    %198 = vector.broadcast %cst_66 : f32 to vector<16x1xf32>
    %199 = arith.divf %197, %198 : vector<16x1xf32>
    %200 = vector.broadcast %199 : vector<16x1xf32> to vector<16x64xf32>
    %201 = arith.subf %195, %200 : vector<16x64xf32>
    %202 = arith.mulf %201, %201 : vector<16x64xf32>
    %cst_67 = arith.constant dense<0.000000e+00> : vector<16xf32>
    %203 = vector.multi_reduction <add>, %202, %cst_67 [1] : vector<16x64xf32> to vector<16xf32>
    %204 = vector.shape_cast %203 : vector<16xf32> to vector<16x1xf32>
    %cst_68 = arith.constant 6.400000e+01 : f32
    %205 = vector.broadcast %cst_68 : f32 to vector<16x1xf32>
    %206 = arith.divf %204, %205 : vector<16x1xf32>
    %cst_69 = arith.constant 9.99999974E-6 : f32
    %207 = vector.broadcast %cst_69 : f32 to vector<16x1xf32>
    %208 = arith.addf %206, %207 : vector<16x1xf32>
    %209 = math.rsqrt %208 : vector<16x1xf32>
    %210 = vector.broadcast %209 : vector<16x1xf32> to vector<16x64xf32>
    %211 = arith.mulf %201, %210 : vector<16x64xf32>
    %212 = vector.extract_strided_slice %160 {offsets = [0, 192], sizes = [16, 64], strides = [1, 1]} : vector<16x512xf32> to vector<16x64xf32>
    %cst_70 = arith.constant dense<0.000000e+00> : vector<16xf32>
    %213 = vector.multi_reduction <add>, %212, %cst_70 [1] : vector<16x64xf32> to vector<16xf32>
    %214 = vector.shape_cast %213 : vector<16xf32> to vector<16x1xf32>
    %cst_71 = arith.constant 6.400000e+01 : f32
    %215 = vector.broadcast %cst_71 : f32 to vector<16x1xf32>
    %216 = arith.divf %214, %215 : vector<16x1xf32>
    %217 = vector.broadcast %216 : vector<16x1xf32> to vector<16x64xf32>
    %218 = arith.subf %212, %217 : vector<16x64xf32>
    %219 = arith.mulf %218, %218 : vector<16x64xf32>
    %cst_72 = arith.constant dense<0.000000e+00> : vector<16xf32>
    %220 = vector.multi_reduction <add>, %219, %cst_72 [1] : vector<16x64xf32> to vector<16xf32>
    %221 = vector.shape_cast %220 : vector<16xf32> to vector<16x1xf32>
    %cst_73 = arith.constant 6.400000e+01 : f32
    %222 = vector.broadcast %cst_73 : f32 to vector<16x1xf32>
    %223 = arith.divf %221, %222 : vector<16x1xf32>
    %cst_74 = arith.constant 9.99999974E-6 : f32
    %224 = vector.broadcast %cst_74 : f32 to vector<16x1xf32>
    %225 = arith.addf %223, %224 : vector<16x1xf32>
    %226 = math.rsqrt %225 : vector<16x1xf32>
    %227 = vector.broadcast %226 : vector<16x1xf32> to vector<16x64xf32>
    %228 = arith.mulf %218, %227 : vector<16x64xf32>
    %229 = vector.extract_strided_slice %160 {offsets = [0, 256], sizes = [16, 64], strides = [1, 1]} : vector<16x512xf32> to vector<16x64xf32>
    %cst_75 = arith.constant dense<0.000000e+00> : vector<16xf32>
    %230 = vector.multi_reduction <add>, %229, %cst_75 [1] : vector<16x64xf32> to vector<16xf32>
    %231 = vector.shape_cast %230 : vector<16xf32> to vector<16x1xf32>
    %cst_76 = arith.constant 6.400000e+01 : f32
    %232 = vector.broadcast %cst_76 : f32 to vector<16x1xf32>
    %233 = arith.divf %231, %232 : vector<16x1xf32>
    %234 = vector.broadcast %233 : vector<16x1xf32> to vector<16x64xf32>
    %235 = arith.subf %229, %234 : vector<16x64xf32>
    %236 = arith.mulf %235, %235 : vector<16x64xf32>
    %cst_77 = arith.constant dense<0.000000e+00> : vector<16xf32>
    %237 = vector.multi_reduction <add>, %236, %cst_77 [1] : vector<16x64xf32> to vector<16xf32>
    %238 = vector.shape_cast %237 : vector<16xf32> to vector<16x1xf32>
    %cst_78 = arith.constant 6.400000e+01 : f32
    %239 = vector.broadcast %cst_78 : f32 to vector<16x1xf32>
    %240 = arith.divf %238, %239 : vector<16x1xf32>
    %cst_79 = arith.constant 9.99999974E-6 : f32
    %241 = vector.broadcast %cst_79 : f32 to vector<16x1xf32>
    %242 = arith.addf %240, %241 : vector<16x1xf32>
    %243 = math.rsqrt %242 : vector<16x1xf32>
    %244 = vector.broadcast %243 : vector<16x1xf32> to vector<16x64xf32>
    %245 = arith.mulf %235, %244 : vector<16x64xf32>
    %246 = vector.extract_strided_slice %160 {offsets = [0, 320], sizes = [16, 64], strides = [1, 1]} : vector<16x512xf32> to vector<16x64xf32>
    %cst_80 = arith.constant dense<0.000000e+00> : vector<16xf32>
    %247 = vector.multi_reduction <add>, %246, %cst_80 [1] : vector<16x64xf32> to vector<16xf32>
    %248 = vector.shape_cast %247 : vector<16xf32> to vector<16x1xf32>
    %cst_81 = arith.constant 6.400000e+01 : f32
    %249 = vector.broadcast %cst_81 : f32 to vector<16x1xf32>
    %250 = arith.divf %248, %249 : vector<16x1xf32>
    %251 = vector.broadcast %250 : vector<16x1xf32> to vector<16x64xf32>
    %252 = arith.subf %246, %251 : vector<16x64xf32>
    %253 = arith.mulf %252, %252 : vector<16x64xf32>
    %cst_82 = arith.constant dense<0.000000e+00> : vector<16xf32>
    %254 = vector.multi_reduction <add>, %253, %cst_82 [1] : vector<16x64xf32> to vector<16xf32>
    %255 = vector.shape_cast %254 : vector<16xf32> to vector<16x1xf32>
    %cst_83 = arith.constant 6.400000e+01 : f32
    %256 = vector.broadcast %cst_83 : f32 to vector<16x1xf32>
    %257 = arith.divf %255, %256 : vector<16x1xf32>
    %cst_84 = arith.constant 9.99999974E-6 : f32
    %258 = vector.broadcast %cst_84 : f32 to vector<16x1xf32>
    %259 = arith.addf %257, %258 : vector<16x1xf32>
    %260 = math.rsqrt %259 : vector<16x1xf32>
    %261 = vector.broadcast %260 : vector<16x1xf32> to vector<16x64xf32>
    %262 = arith.mulf %252, %261 : vector<16x64xf32>
    %263 = vector.extract_strided_slice %160 {offsets = [0, 384], sizes = [16, 64], strides = [1, 1]} : vector<16x512xf32> to vector<16x64xf32>
    %cst_85 = arith.constant dense<0.000000e+00> : vector<16xf32>
    %264 = vector.multi_reduction <add>, %263, %cst_85 [1] : vector<16x64xf32> to vector<16xf32>
    %265 = vector.shape_cast %264 : vector<16xf32> to vector<16x1xf32>
    %cst_86 = arith.constant 6.400000e+01 : f32
    %266 = vector.broadcast %cst_86 : f32 to vector<16x1xf32>
    %267 = arith.divf %265, %266 : vector<16x1xf32>
    %268 = vector.broadcast %267 : vector<16x1xf32> to vector<16x64xf32>
    %269 = arith.subf %263, %268 : vector<16x64xf32>
    %270 = arith.mulf %269, %269 : vector<16x64xf32>
    %cst_87 = arith.constant dense<0.000000e+00> : vector<16xf32>
    %271 = vector.multi_reduction <add>, %270, %cst_87 [1] : vector<16x64xf32> to vector<16xf32>
    %272 = vector.shape_cast %271 : vector<16xf32> to vector<16x1xf32>
    %cst_88 = arith.constant 6.400000e+01 : f32
    %273 = vector.broadcast %cst_88 : f32 to vector<16x1xf32>
    %274 = arith.divf %272, %273 : vector<16x1xf32>
    %cst_89 = arith.constant 9.99999974E-6 : f32
    %275 = vector.broadcast %cst_89 : f32 to vector<16x1xf32>
    %276 = arith.addf %274, %275 : vector<16x1xf32>
    %277 = math.rsqrt %276 : vector<16x1xf32>
    %278 = vector.broadcast %277 : vector<16x1xf32> to vector<16x64xf32>
    %279 = arith.mulf %269, %278 : vector<16x64xf32>
    %280 = vector.extract_strided_slice %160 {offsets = [0, 448], sizes = [16, 64], strides = [1, 1]} : vector<16x512xf32> to vector<16x64xf32>
    %cst_90 = arith.constant dense<0.000000e+00> : vector<16xf32>
    %281 = vector.multi_reduction <add>, %280, %cst_90 [1] : vector<16x64xf32> to vector<16xf32>
    %282 = vector.shape_cast %281 : vector<16xf32> to vector<16x1xf32>
    %cst_91 = arith.constant 6.400000e+01 : f32
    %283 = vector.broadcast %cst_91 : f32 to vector<16x1xf32>
    %284 = arith.divf %282, %283 : vector<16x1xf32>
    %285 = vector.broadcast %284 : vector<16x1xf32> to vector<16x64xf32>
    %286 = arith.subf %280, %285 : vector<16x64xf32>
    %287 = arith.mulf %286, %286 : vector<16x64xf32>
    %cst_92 = arith.constant dense<0.000000e+00> : vector<16xf32>
    %288 = vector.multi_reduction <add>, %287, %cst_92 [1] : vector<16x64xf32> to vector<16xf32>
    %289 = vector.shape_cast %288 : vector<16xf32> to vector<16x1xf32>
    %cst_93 = arith.constant 6.400000e+01 : f32
    %290 = vector.broadcast %cst_93 : f32 to vector<16x1xf32>
    %291 = arith.divf %289, %290 : vector<16x1xf32>
    %cst_94 = arith.constant 9.99999974E-6 : f32
    %292 = vector.broadcast %cst_94 : f32 to vector<16x1xf32>
    %293 = arith.addf %291, %292 : vector<16x1xf32>
    %294 = math.rsqrt %293 : vector<16x1xf32>
    %295 = vector.broadcast %294 : vector<16x1xf32> to vector<16x64xf32>
    %296 = arith.mulf %286, %295 : vector<16x64xf32>
    %297 = tpu.concatenate %177, %194, %211, %228, %245, %262, %279, %296 in 1 : vector<16x64xf32>, vector<16x64xf32>, vector<16x64xf32>, vector<16x64xf32>, vector<16x64xf32>, vector<16x64xf32>, vector<16x64xf32>, vector<16x64xf32> -> vector<16x512xf32>
    %c0_95 = arith.constant 0 : index
    %c0_96 = arith.constant 0 : index
    %298 = vector.load %arg8[%c0_95, %c0_96] : memref<1x512xf32, #tpu.memory_space<vmem>>, vector<1x512xf32>
    %299 = vector.broadcast %298 : vector<1x512xf32> to vector<16x512xf32>
    %300 = arith.mulf %297, %299 : vector<16x512xf32>
    %c0_97 = arith.constant 0 : index
    %c0_98 = arith.constant 0 : index
    %301 = vector.load %arg9[%c0_97, %c0_98] : memref<1x512xf32, #tpu.memory_space<vmem>>, vector<1x512xf32>
    %302 = vector.broadcast %301 : vector<1x512xf32> to vector<16x512xf32>
    %303 = arith.addf %300, %302 : vector<16x512xf32>
    %304 = arith.negf %303 : vector<16x512xf32>
    %305 = math.exp %304 : vector<16x512xf32>
    %cst_99 = arith.constant 1.000000e+00 : f32
    %306 = vector.broadcast %cst_99 : f32 to vector<16x512xf32>
    %307 = arith.addf %306, %305 : vector<16x512xf32>
    %308 = arith.divf %306, %307 : vector<16x512xf32>
    %309 = arith.mulf %303, %308 : vector<16x512xf32>
    %310 = arith.truncf %309 : vector<16x512xf32> to vector<16x512xbf16>
    %c0_100 = arith.constant 0 : index
    %c0_101 = arith.constant 0 : index
    %311 = vector.load %arg10[%c0_100, %c0_101] : memref<512x128xbf16, #tpu.memory_space<vmem>>, vector<512x128xbf16>
    %cst_102 = arith.constant dense<0.000000e+00> : vector<16x128xf32>
    %312 = tpu.matmul %310, %311, %cst_102 {dimension_numbers = #tpu.dot_dimension_numbers<[1], [0], [0], [1], [0, 0, 1, 1], [], []>} : vector<16x512xbf16>, vector<512x128xbf16>, vector<16x128xf32> -> vector<16x128xf32>
    %c0_103 = arith.constant 0 : index
    %c0_104 = arith.constant 0 : index
    %313 = vector.load %arg11[%c0_103, %c0_104] : memref<1x128xf32, #tpu.memory_space<vmem>>, vector<1x128xf32>
    %314 = vector.broadcast %313 : vector<1x128xf32> to vector<16x128xf32>
    %315 = arith.addf %312, %314 : vector<16x128xf32>
    %316 = arith.negf %315 : vector<16x128xf32>
    %317 = math.exp %316 : vector<16x128xf32>
    %cst_105 = arith.constant 1.000000e+00 : f32
    %318 = vector.broadcast %cst_105 : f32 to vector<16x128xf32>
    %319 = arith.addf %318, %317 : vector<16x128xf32>
    %320 = arith.divf %318, %319 : vector<16x128xf32>
    %321 = arith.mulf %315, %320 : vector<16x128xf32>
    %c0_106 = arith.constant 0 : index
    %c0_107 = arith.constant 0 : index
    %322 = vector.load %arg12[%c0_106, %c0_107] : memref<16x128xf32, #tpu.memory_space<vmem>>, vector<16x128xf32>
    tpu.vector_store %arg12[%c0_106, %c0_107], %321 {strides = array<i32>} : memref<16x128xf32, #tpu.memory_space<vmem>>, vector<16x128xf32>,
    return
  }
  func.func @transform_0(%arg0: i32) -> (i32, i32) {
    %c0_i32 = arith.constant 0 : i32
    %c0_i32_0 = arith.constant 0 : i32
    return %arg0, %c0_i32 : i32, i32
  }
  func.func @transform_1(%arg0: i32) -> (i32, i32) {
    %c0_i32 = arith.constant 0 : i32
    %c0_i32_0 = arith.constant 0 : i32
    %c0_i32_1 = arith.constant 0 : i32
    return %c0_i32, %c0_i32_0 : i32, i32
  }
  func.func @transform_2(%arg0: i32) -> (i32, i32) {
    %c0_i32 = arith.constant 0 : i32
    %c0_i32_0 = arith.constant 0 : i32
    %c0_i32_1 = arith.constant 0 : i32
    return %c0_i32, %c0_i32_0 : i32, i32
  }
  func.func @transform_3(%arg0: i32) -> (i32, i32) {
    %c0_i32 = arith.constant 0 : i32
    %c0_i32_0 = arith.constant 0 : i32
    %c0_i32_1 = arith.constant 0 : i32
    return %c0_i32, %c0_i32_0 : i32, i32
  }
  func.func @transform_4(%arg0: i32) -> (i32, i32) {
    %c0_i32 = arith.constant 0 : i32
    %c0_i32_0 = arith.constant 0 : i32
    %c0_i32_1 = arith.constant 0 : i32
    return %c0_i32, %c0_i32_0 : i32, i32
  }
  func.func @transform_5(%arg0: i32) -> (i32, i32) {
    %c0_i32 = arith.constant 0 : i32
    %c0_i32_0 = arith.constant 0 : i32
    %c0_i32_1 = arith.constant 0 : i32
    return %c0_i32, %c0_i32_0 : i32, i32
  }
  func.func @transform_6(%arg0: i32) -> (i32, i32) {
    %c0_i32 = arith.constant 0 : i32
    %c0_i32_0 = arith.constant 0 : i32
    %c0_i32_1 = arith.constant 0 : i32
    return %c0_i32, %c0_i32_0 : i32, i32
  }
  func.func @transform_7(%arg0: i32) -> (i32, i32) {
    %c0_i32 = arith.constant 0 : i32
    %c0_i32_0 = arith.constant 0 : i32
    %c0_i32_1 = arith.constant 0 : i32
    return %c0_i32, %c0_i32_0 : i32, i32
  }
  func.func @transform_8(%arg0: i32) -> (i32, i32) {
    %c0_i32 = arith.constant 0 : i32
    %c0_i32_0 = arith.constant 0 : i32
    %c0_i32_1 = arith.constant 0 : i32
    return %c0_i32, %c0_i32_0 : i32, i32
  }
  func.func @transform_9(%arg0: i32) -> (i32, i32) {
    %c0_i32 = arith.constant 0 : i32
    %c0_i32_0 = arith.constant 0 : i32
    %c0_i32_1 = arith.constant 0 : i32
    return %c0_i32, %c0_i32_0 : i32, i32
  }
  func.func @transform_10(%arg0: i32) -> (i32, i32) {
    %c0_i32 = arith.constant 0 : i32
    %c0_i32_0 = arith.constant 0 : i32
    %c0_i32_1 = arith.constant 0 : i32
    return %c0_i32, %c0_i32_0 : i32, i32
  }
  func.func @transform_11(%arg0: i32) -> (i32, i32) {
    %c0_i32 = arith.constant 0 : i32
    %c0_i32_0 = arith.constant 0 : i32
    return %arg0, %c0_i32 : i32, i32
  }
}

</mosaic_0001>

<llo_original>
// kernel: obstacle_encoder_cnn.1
$region0: #{obstacle_encoder_cnn.1}
  #allocation0 [shape = 'u32[]', space=smem, size = 0x4, offset = 0x4, fixed_abs, tag = 'smem constant byte address 0x4 - core index']
  #allocation1 [shape = 'u32[144,128]{1,0:T(1,128)}', space=vmem, size = 0x12000, scoped, tag = 'internal scratch']
  %s0 = inlined_call_operand.vmem [shape: bf16[16,256], index: 0, kind: input, shape index: {}]
  %s1 = inlined_call_operand.hbm [shape: bf16[256,1024], index: 1, kind: input, shape index: {}]
  %s2 = inlined_call_operand.vmem [shape: f32[1,1024], index: 2, kind: input, shape index: {}]
  %s3 = inlined_call_operand.vmem [shape: f32[1,1024], index: 3, kind: input, shape index: {}]
  %s4 = inlined_call_operand.vmem [shape: f32[1,1024], index: 4, kind: input, shape index: {}]
  %s5 = inlined_call_operand.hbm [shape: bf16[1024,512], index: 5, kind: input, shape index: {}]
  %s6 = inlined_call_operand.vmem [shape: f32[1,512], index: 6, kind: input, shape index: {}]
  %s7 = inlined_call_operand.vmem [shape: f32[1,512], index: 7, kind: input, shape index: {}]
  %s8 = inlined_call_operand.vmem [shape: f32[1,512], index: 8, kind: input, shape index: {}]
  %s9 = inlined_call_operand.hbm [shape: bf16[512,128], index: 9, kind: input, shape index: {}]
  %s10 = inlined_call_operand.vmem [shape: f32[1,128], index: 10, kind: input, shape index: {}]
  %s11 = inlined_call_operand.vmem [shape: f32[16,128], index: 11, kind: output, shape index: {}]
  %s12 = sld [smem:[#allocation0]]
  $region66: #{obstacle_encoder_cnn.1} parent=0
    _
  %s14 = ssub.s32 1, %s12
  %s15 = scalar_select 0, %s14, %s12
  $region1: #{obstacle_encoder_cnn.1} parent=0
    #allocation2 [shape = 'u8[524288]{0}', space=vmem, size = 0x80000, scoped, tag = 'input window, operand 1, single buffered']
    #allocation3 [shape = 's32[1]{0}', space=sflag, size = 0x4, scoped, tag = 'scoped memory for obstacle_encoder_cnn.1']
    #allocation4 [shape = 'u8[1048576]{0}', space=vmem, size = 0x100000, scoped, tag = 'input window, operand 5, single buffered']
    #allocation5 [shape = 's32[1]{0}', space=sflag, size = 0x4, scoped, tag = 'scoped memory for obstacle_encoder_cnn.1']
    #allocation6 [shape = 'u8[131072]{0}', space=vmem, size = 0x20000, scoped, tag = 'input window, operand 9, single buffered']
    %16 = vsyncpa [#allocation3], 0
    %17 = vsyncpa [#allocation5], 0
    // Predicated region
    $region2: #{obstacle_encoder_cnn.1} parent=1 // pred_check
      _
    $region3: #{obstacle_encoder_cnn.1} parent=1 // pred_check_branch
      %19 = sbr.rel (0) target = $region5
    $region4: #{obstacle_encoder_cnn.1} parent=1 // pred_region
      _
    $region5: #{obstacle_encoder_cnn.1} parent=1 // pred_fallthru
      _
    // Predicated region
    $region6: #{obstacle_encoder_cnn.1} parent=1 // pred_check
      _
    $region7: #{obstacle_encoder_cnn.1} parent=1 // pred_check_branch
      %21 = sbr.rel (0) target = $region9
    $region8: #{obstacle_encoder_cnn.1} parent=1 // pred_region
      %s23 = ssub.s32 16384, 16384
      %24 = vsyncadd [#allocation3], %s23
      %s25 = sshll.u32 [#allocation2], 4
      %s26 = int_to_ptr.vmem [resolvable:$true] %s25
      %31 = dma.hbm_to_vmem [thread:$0]  %s1, 16384, %s26, [#allocation3], 512, 512, 32
    $region9: #{obstacle_encoder_cnn.1} parent=1 // pred_fallthru
      _
    // Predicated region
    $region10: #{obstacle_encoder_cnn.1} parent=1 // pred_check
      _
    $region11: #{obstacle_encoder_cnn.1} parent=1 // pred_check_branch
      %33 = sbr.rel (0) target = $region13
    $region12: #{obstacle_encoder_cnn.1} parent=1 // pred_region
      _
    $region13: #{obstacle_encoder_cnn.1} parent=1 // pred_fallthru
      _
    // Predicated region
    $region14: #{obstacle_encoder_cnn.1} parent=1 // pred_check
      _
    $region15: #{obstacle_encoder_cnn.1} parent=1 // pred_check_branch
      %35 = sbr.rel (0) target = $region17
    $region16: #{obstacle_encoder_cnn.1} parent=1 // pred_region
      _
    $region17: #{obstacle_encoder_cnn.1} parent=1 // pred_fallthru
      _
    // Predicated region
    $region18: #{obstacle_encoder_cnn.1} parent=1 // pred_check
      _
    $region19: #{obstacle_encoder_cnn.1} parent=1 // pred_check_branch
      %37 = sbr.rel (0) target = $region21
    $region20: #{obstacle_encoder_cnn.1} parent=1 // pred_region
      _
    $region21: #{obstacle_encoder_cnn.1} parent=1 // pred_fallthru
      _
    // Predicated region
    $region22: #{obstacle_encoder_cnn.1} parent=1 // pred_check
      _
    $region23: #{obstacle_encoder_cnn.1} parent=1 // pred_check_branch
      %39 = sbr.rel (0) target = $region25
    $region24: #{obstacle_encoder_cnn.1} parent=1 // pred_region
      %s41 = ssub.s32 32768, 32768
      %42 = vsyncadd [#allocation5], %s41
      %s43 = sshll.u32 [#allocation4], 4
      %s44 = int_to_ptr.vmem [resolvable:$true] %s43
      %49 = dma.hbm_to_vmem [thread:$0]  %s5, 32768, %s44, [#allocation5], 256, 256, 16
    $region25: #{obstacle_encoder_cnn.1} parent=1 // pred_fallthru
      _
    // Predicated region
    $region26: #{obstacle_encoder_cnn.1} parent=1 // pred_check
      _
    $region27: #{obstacle_encoder_cnn.1} parent=1 // pred_check_branch
      %51 = sbr.rel (0) target = $region29
    $region28: #{obstacle_encoder_cnn.1} parent=1 // pred_region
      _
    $region29: #{obstacle_encoder_cnn.1} parent=1 // pred_fallthru
      _
    // Predicated region
    $region30: #{obstacle_encoder_cnn.1} parent=1 // pred_check
      _
    $region31: #{obstacle_encoder_cnn.1} parent=1 // pred_check_branch
      %53 = sbr.rel (0) target = $region33
    $region32: #{obstacle_encoder_cnn.1} parent=1 // pred_region
      _
    $region33: #{obstacle_encoder_cnn.1} parent=1 // pred_fallthru
      _
    // Predicated region
    $region34: #{obstacle_encoder_cnn.1} parent=1 // pred_check
      _
    $region35: #{obstacle_encoder_cnn.1} parent=1 // pred_check_branch
      %55 = sbr.rel (0) target = $region37
    $region36: #{obstacle_encoder_cnn.1} parent=1 // pred_region
      _
    $region37: #{obstacle_encoder_cnn.1} parent=1 // pred_fallthru
      _
    // Predicated region
    $region38: #{obstacle_encoder_cnn.1} parent=1 // pred_check
      _
    $region39: #{obstacle_encoder_cnn.1} parent=1 // pred_check_branch
      %57 = sbr.rel (0) target = $region41
    $region40: #{obstacle_encoder_cnn.1} parent=1 // pred_region
      %s59 = ssub.s32 4096, 4096
      %60 = vsyncadd [#allocation5], %s59
      %s61 = sshll.u32 [#allocation6], 4
      %s62 = int_to_ptr.vmem [resolvable:$true] %s61
      %67 = dma.hbm_to_vmem [thread:$0]  %s9, 4096, %s62, [#allocation5], 64, 64, 4
    $region41: #{obstacle_encoder_cnn.1} parent=1 // pred_fallthru
      _
    // Predicated region
    $region42: #{obstacle_encoder_cnn.1} parent=1 // pred_check
      _
    $region43: #{obstacle_encoder_cnn.1} parent=1 // pred_check_branch
      %69 = sbr.rel (0) target = $region45
    $region44: #{obstacle_encoder_cnn.1} parent=1 // pred_region
      _
    $region45: #{obstacle_encoder_cnn.1} parent=1 // pred_fallthru
      _
    // Predicated region
    $region46: #{obstacle_encoder_cnn.1} parent=1 // pred_check
      _
    $region47: #{obstacle_encoder_cnn.1} parent=1 // pred_check_branch
      %71 = sbr.rel (0) target = $region49
    $region48: #{obstacle_encoder_cnn.1} parent=1 // pred_region
      %72 = dma.done [#allocation3], 16384
    $region49: #{obstacle_encoder_cnn.1} parent=1 // pred_fallthru
      _
    // Predicated region
    $region50: #{obstacle_encoder_cnn.1} parent=1 // pred_check
      _
    $region51: #{obstacle_encoder_cnn.1} parent=1 // pred_check_branch
      %74 = sbr.rel (0) target = $region53
    $region52: #{obstacle_encoder_cnn.1} parent=1 // pred_region
      %75 = dma.done [#allocation5], 32768
    $region53: #{obstacle_encoder_cnn.1} parent=1 // pred_fallthru
      _
    // Predicated region
    $region54: #{obstacle_encoder_cnn.1} parent=1 // pred_check
      _
    $region55: #{obstacle_encoder_cnn.1} parent=1 // pred_check_branch
      %77 = sbr.rel (0) target = $region57
    $region56: #{obstacle_encoder_cnn.1} parent=1 // pred_region
      %78 = dma.done [#allocation5], 4096
    $region57: #{obstacle_encoder_cnn.1} parent=1 // pred_fallthru
      _
    %v80 = vld [vmem:[%s0] sm:$0xff]
    %v81 = vld [vmem:[%s0 + $0x8] sm:$0xff]
    %v82 = vld [vmem:[#allocation2] sm:$0xff]
    %v83 = vld [vmem:[#allocation2 + $0x8] sm:$0xff]
    %v84 = vld [vmem:[#allocation2 + $0x10] sm:$0xff]
    %v85 = vld [vmem:[#allocation2 + $0x18] sm:$0xff]
    %v86 = vld [vmem:[#allocation2 + $0x20] sm:$0xff]
    %v87 = vld [vmem:[#allocation2 + $0x28] sm:$0xff]
    %v88 = vld [vmem:[#allocation2 + $0x30] sm:$0xff]
    %v89 = vld [vmem:[#allocation2 + $0x38] sm:$0xff]
    %v90 = vld [vmem:[#allocation2 + $0x40] sm:$0xff]
    %v91 = vld [vmem:[#allocation2 + $0x48] sm:$0xff]
    %v92 = vld [vmem:[#allocation2 + $0x50] sm:$0xff]
    %v93 = vld [vmem:[#allocation2 + $0x58] sm:$0xff]
    %v94 = vld [vmem:[#allocation2 + $0x60] sm:$0xff]
    %v95 = vld [vmem:[#allocation2 + $0x68] sm:$0xff]
    %v96 = vld [vmem:[#allocation2 + $0x70] sm:$0xff]
    %v97 = vld [vmem:[#allocation2 + $0x78] sm:$0xff]
    %v98 = vld [vmem:[#allocation2 + $0x80] sm:$0xff]
    %v99 = vld [vmem:[#allocation2 + $0x88] sm:$0xff]
    %v100 = vld [vmem:[#allocation2 + $0x90] sm:$0xff]
    %v101 = vld [vmem:[#allocation2 + $0x98] sm:$0xff]
    %v102 = vld [vmem:[#allocation2 + $0xa0] sm:$0xff]
    %v103 = vld [vmem:[#allocation2 + $0xa8] sm:$0xff]
    %v104 = vld [vmem:[#allocation2 + $0xb0] sm:$0xff]
    %v105 = vld [vmem:[#allocation2 + $0xb8] sm:$0xff]
    %v106 = vld [vmem:[#allocation2 + $0xc0] sm:$0xff]
    %v107 = vld [vmem:[#allocation2 + $0xc8] sm:$0xff]
    %v108 = vld [vmem:[#allocation2 + $0xd0] sm:$0xff]
    %v109 = vld [vmem:[#allocation2 + $0xd8] sm:$0xff]
    %v110 = vld [vmem:[#allocation2 + $0xe0] sm:$0xff]
    %v111 = vld [vmem:[#allocation2 + $0xe8] sm:$0xff]
    %v112 = vld [vmem:[#allocation2 + $0xf0] sm:$0xff]
    %v113 = vld [vmem:[#allocation2 + $0xf8] sm:$0xff]
    %v114 = vld [vmem:[#allocation2 + $0x100] sm:$0xff]
    %v115 = vld [vmem:[#allocation2 + $0x108] sm:$0xff]
    %v116 = vld [vmem:[#allocation2 + $0x110] sm:$0xff]
    %v117 = vld [vmem:[#allocation2 + $0x118] sm:$0xff]
    %v118 = vld [vmem:[#allocation2 + $0x120] sm:$0xff]
    %v119 = vld [vmem:[#allocation2 + $0x128] sm:$0xff]
    %v120 = vld [vmem:[#allocation2 + $0x130] sm:$0xff]
    %v121 = vld [vmem:[#allocation2 + $0x138] sm:$0xff]
    %v122 = vld [vmem:[#allocation2 + $0x140] sm:$0xff]
    %v123 = vld [vmem:[#allocation2 + $0x148] sm:$0xff]
    %v124 = vld [vmem:[#allocation2 + $0x150] sm:$0xff]
    %v125 = vld [vmem:[#allocation2 + $0x158] sm:$0xff]
    %v126 = vld [vmem:[#allocation2 + $0x160] sm:$0xff]
    %v127 = vld [vmem:[#allocation2 + $0x168] sm:$0xff]
    %v128 = vld [vmem:[#allocation2 + $0x170] sm:$0xff]
    %v129 = vld [vmem:[#allocation2 + $0x178] sm:$0xff]
    %v130 = vld [vmem:[#allocation2 + $0x180] sm:$0xff]
    %v131 = vld [vmem:[#allocation2 + $0x188] sm:$0xff]
    %v132 = vld [vmem:[#allocation2 + $0x190] sm:$0xff]
    %v133 = vld [vmem:[#allocation2 + $0x198] sm:$0xff]
    %v134 = vld [vmem:[#allocation2 + $0x1a0] sm:$0xff]
    %v135 = vld [vmem:[#allocation2 + $0x1a8] sm:$0xff]
    %v136 = vld [vmem:[#allocation2 + $0x1b0] sm:$0xff]
    %v137 = vld [vmem:[#allocation2 + $0x1b8] sm:$0xff]
    %v138 = vld [vmem:[#allocation2 + $0x1c0] sm:$0xff]
    %v139 = vld [vmem:[#allocation2 + $0x1c8] sm:$0xff]
    %v140 = vld [vmem:[#allocation2 + $0x1d0] sm:$0xff]
    %v141 = vld [vmem:[#allocation2 + $0x1d8] sm:$0xff]
    %v142 = vld [vmem:[#allocation2 + $0x1e0] sm:$0xff]
    %v143 = vld [vmem:[#allocation2 + $0x1e8] sm:$0xff]
    %v144 = vld [vmem:[#allocation2 + $0x1f0] sm:$0xff]
    %v145 = vld [vmem:[#allocation2 + $0x1f8] sm:$0xff]
    %v146 = vld [vmem:[#allocation2 + $0x200] sm:$0xff]
    %v147 = vld [vmem:[#allocation2 + $0x208] sm:$0xff]
    %v148 = vld [vmem:[#allocation2 + $0x210] sm:$0xff]
    %v149 = vld [vmem:[#allocation2 + $0x218] sm:$0xff]
    %v150 = vld [vmem:[#allocation2 + $0x220] sm:$0xff]
    %v151 = vld [vmem:[#allocation2 + $0x228] sm:$0xff]
    %v152 = vld [vmem:[#allocation2 + $0x230] sm:$0xff]
    %v153 = vld [vmem:[#allocation2 + $0x238] sm:$0xff]
    %v154 = vld [vmem:[#allocation2 + $0x240] sm:$0xff]
    %v155 = vld [vmem:[#allocation2 + $0x248] sm:$0xff]
    %v156 = vld [vmem:[#allocation2 + $0x250] sm:$0xff]
    %v157 = vld [vmem:[#allocation2 + $0x258] sm:$0xff]
    %v158 = vld [vmem:[#allocation2 + $0x260] sm:$0xff]
    %v159 = vld [vmem:[#allocation2 + $0x268] sm:$0xff]
    %v160 = vld [vmem:[#allocation2 + $0x270] sm:$0xff]
    %v161 = vld [vmem:[#allocation2 + $0x278] sm:$0xff]
    %v162 = vld [vmem:[#allocation2 + $0x280] sm:$0xff]
    %v163 = vld [vmem:[#allocation2 + $0x288] sm:$0xff]
    %v164 = vld [vmem:[#allocation2 + $0x290] sm:$0xff]
    %v165 = vld [vmem:[#allocation2 + $0x298] sm:$0xff]
    %v166 = vld [vmem:[#allocation2 + $0x2a0] sm:$0xff]
    %v167 = vld [vmem:[#allocation2 + $0x2a8] sm:$0xff]
    %v168 = vld [vmem:[#allocation2 + $0x2b0] sm:$0xff]
    %v169 = vld [vmem:[#allocation2 + $0x2b8] sm:$0xff]
    %v170 = vld [vmem:[#allocation2 + $0x2c0] sm:$0xff]
    %v171 = vld [vmem:[#allocation2 + $0x2c8] sm:$0xff]
    %v172 = vld [vmem:[#allocation2 + $0x2d0] sm:$0xff]
    %v173 = vld [vmem:[#allocation2 + $0x2d8] sm:$0xff]
    %v174 = vld [vmem:[#allocation2 + $0x2e0] sm:$0xff]
    %v175 = vld [vmem:[#allocation2 + $0x2e8] sm:$0xff]
    %v176 = vld [vmem:[#allocation2 + $0x2f0] sm:$0xff]
    %v177 = vld [vmem:[#allocation2 + $0x2f8] sm:$0xff]
    %v178 = vld [vmem:[#allocation2 + $0x300] sm:$0xff]
    %v179 = vld [vmem:[#allocation2 + $0x308] sm:$0xff]
    %v180 = vld [vmem:[#allocation2 + $0x310] sm:$0xff]
    %v181 = vld [vmem:[#allocation2 + $0x318] sm:$0xff]
    %v182 = vld [vmem:[#allocation2 + $0x320] sm:$0xff]
    %v183 = vld [vmem:[#allocation2 + $0x328] sm:$0xff]
    %v184 = vld [vmem:[#allocation2 + $0x330] sm:$0xff]
    %v185 = vld [vmem:[#allocation2 + $0x338] sm:$0xff]
    %v186 = vld [vmem:[#allocation2 + $0x340] sm:$0xff]
    %v187 = vld [vmem:[#allocation2 + $0x348] sm:$0xff]
    %v188 = vld [vmem:[#allocation2 + $0x350] sm:$0xff]
    %v189 = vld [vmem:[#allocation2 + $0x358] sm:$0xff]
    %v190 = vld [vmem:[#allocation2 + $0x360] sm:$0xff]
    %v191 = vld [vmem:[#allocation2 + $0x368] sm:$0xff]
    %v192 = vld [vmem:[#allocation2 + $0x370] sm:$0xff]
    %v193 = vld [vmem:[#allocation2 + $0x378] sm:$0xff]
    %v194 = vld [vmem:[#allocation2 + $0x380] sm:$0xff]
    %v195 = vld [vmem:[#allocation2 + $0x388] sm:$0xff]
    %v196 = vld [vmem:[#allocation2 + $0x390] sm:$0xff]
    %v197 = vld [vmem:[#allocation2 + $0x398] sm:$0xff]
    %v198 = vld [vmem:[#allocation2 + $0x3a0] sm:$0xff]
    %v199 = vld [vmem:[#allocation2 + $0x3a8] sm:$0xff]
    %v200 = vld [vmem:[#allocation2 + $0x3b0] sm:$0xff]
    %v201 = vld [vmem:[#allocation2 + $0x3b8] sm:$0xff]
    %v202 = vld [vmem:[#allocation2 + $0x3c0] sm:$0xff]
    %v203 = vld [vmem:[#allocation2 + $0x3c8] sm:$0xff]
    %v204 = vld [vmem:[#allocation2 + $0x3d0] sm:$0xff]
    %v205 = vld [vmem:[#allocation2 + $0x3d8] sm:$0xff]
    %v206 = vld [vmem:[#allocation2 + $0x3e0] sm:$0xff]
    %v207 = vld [vmem:[#allocation2 + $0x3e8] sm:$0xff]
    %v208 = vld [vmem:[#allocation2 + $0x3f0] sm:$0xff]
    %v209 = vld [vmem:[#allocation2 + $0x3f8] sm:$0xff]
    %v210 = vld [vmem:[%s2] sm:$0xff]
    %v212 = vlaneseq
    %v213 = vshrl.u32 %v212, 7
    %v214 = vsub.s32 0, %v213
    %v215 = vrot.slane %v210, %v214
    %v216 = vlaneseq
    %v217 = vshrl.u32 %v216, 7
    %v218 = vsub.s32 1, %v217
    %v219 = vrot.slane %v210, %v218
    %v220 = vlaneseq
    %v221 = vshrl.u32 %v220, 7
    %v222 = vsub.s32 2, %v221
    %v223 = vrot.slane %v210, %v222
    %v224 = vlaneseq
    %v225 = vshrl.u32 %v224, 7
    %v226 = vsub.s32 3, %v225
    %v227 = vrot.slane %v210, %v226
    %v228 = vlaneseq
    %v229 = vshrl.u32 %v228, 7
    %v230 = vsub.s32 4, %v229
    %v231 = vrot.slane %v210, %v230
    %v232 = vlaneseq
    %v233 = vshrl.u32 %v232, 7
    %v234 = vsub.s32 5, %v233
    %v235 = vrot.slane %v210, %v234
    %v236 = vlaneseq
    %v237 = vshrl.u32 %v236, 7
    %v238 = vsub.s32 6, %v237
    %v239 = vrot.slane %v210, %v238
    %v240 = vlaneseq
    %v241 = vshrl.u32 %v240, 7
    %v242 = vsub.s32 7, %v241
    %v243 = vrot.slane %v210, %v242
    %v254 = vunpack.c.l.b16 %v80
    %v255 = vunpack.c.h.b16 %v80
    %v256 = vunpack.c.l.b16 %v81
    %v257 = vunpack.c.h.b16 %v81
    %v258 = vpack.c.b16 %v256, %v254
    %v259 = vpack.c.b16 %v257, %v255
    %v390 = vunpack.c.l.b16 %v82
    %v391 = vunpack.c.h.b16 %v82
    %v392 = vunpack.c.l.b16 %v83
    %v393 = vunpack.c.h.b16 %v83
    %v394 = vunpack.c.l.b16 %v84
    %v395 = vunpack.c.h.b16 %v84
    %v396 = vunpack.c.l.b16 %v85
    %v397 = vunpack.c.h.b16 %v85
    %v398 = vunpack.c.l.b16 %v86
    %v399 = vunpack.c.h.b16 %v86
    %v400 = vunpack.c.l.b16 %v87
    %v401 = vunpack.c.h.b16 %v87
    %v402 = vunpack.c.l.b16 %v88
    %v403 = vunpack.c.h.b16 %v88
    %v404 = vunpack.c.l.b16 %v89
    %v405 = vunpack.c.h.b16 %v89
    %v406 = vunpack.c.l.b16 %v90
    %v407 = vunpack.c.h.b16 %v90
    %v408 = vunpack.c.l.b16 %v91
    %v409 = vunpack.c.h.b16 %v91
    %v410 = vunpack.c.l.b16 %v92
    %v411 = vunpack.c.h.b16 %v92
    %v412 = vunpack.c.l.b16 %v93
    %v413 = vunpack.c.h.b16 %v93
    %v414 = vunpack.c.l.b16 %v94
    %v415 = vunpack.c.h.b16 %v94
    %v416 = vunpack.c.l.b16 %v95
    %v417 = vunpack.c.h.b16 %v95
    %v418 = vunpack.c.l.b16 %v96
    %v419 = vunpack.c.h.b16 %v96
    %v420 = vunpack.c.l.b16 %v97
    %v421 = vunpack.c.h.b16 %v97
    %v422 = vunpack.c.l.b16 %v98
    %v423 = vunpack.c.h.b16 %v98
    %v424 = vunpack.c.l.b16 %v99
    %v425 = vunpack.c.h.b16 %v99
    %v426 = vunpack.c.l.b16 %v100
    %v427 = vunpack.c.h.b16 %v100
    %v428 = vunpack.c.l.b16 %v101
    %v429 = vunpack.c.h.b16 %v101
    %v430 = vunpack.c.l.b16 %v102
    %v431 = vunpack.c.h.b16 %v102
    %v432 = vunpack.c.l.b16 %v103
    %v433 = vunpack.c.h.b16 %v103
    %v434 = vunpack.c.l.b16 %v104
    %v435 = vunpack.c.h.b16 %v104
    %v436 = vunpack.c.l.b16 %v105
    %v437 = vunpack.c.h.b16 %v105
    %v438 = vunpack.c.l.b16 %v106
    %v439 = vunpack.c.h.b16 %v106
    %v440 = vunpack.c.l.b16 %v107
    %v441 = vunpack.c.h.b16 %v107
    %v442 = vunpack.c.l.b16 %v108
    %v443 = vunpack.c.h.b16 %v108
    %v444 = vunpack.c.l.b16 %v109
    %v445 = vunpack.c.h.b16 %v109
    %v446 = vunpack.c.l.b16 %v110
    %v447 = vunpack.c.h.b16 %v110
    %v448 = vunpack.c.l.b16 %v111
    %v449 = vunpack.c.h.b16 %v111
    %v450 = vunpack.c.l.b16 %v112
    %v451 = vunpack.c.h.b16 %v112
    %v452 = vunpack.c.l.b16 %v113
    %v453 = vunpack.c.h.b16 %v113
    %v454 = vunpack.c.l.b16 %v114
    %v455 = vunpack.c.h.b16 %v114
    %v456 = vunpack.c.l.b16 %v115
    %v457 = vunpack.c.h.b16 %v115
    %v458 = vunpack.c.l.b16 %v116
    %v459 = vunpack.c.h.b16 %v116
    %v460 = vunpack.c.l.b16 %v117
    %v461 = vunpack.c.h.b16 %v117
    %v462 = vunpack.c.l.b16 %v118
    %v463 = vunpack.c.h.b16 %v118
    %v464 = vunpack.c.l.b16 %v119
    %v465 = vunpack.c.h.b16 %v119
    %v466 = vunpack.c.l.b16 %v120
    %v467 = vunpack.c.h.b16 %v120
    %v468 = vunpack.c.l.b16 %v121
    %v469 = vunpack.c.h.b16 %v121
    %v470 = vunpack.c.l.b16 %v122
    %v471 = vunpack.c.h.b16 %v122
    %v472 = vunpack.c.l.b16 %v123
    %v473 = vunpack.c.h.b16 %v123
    %v474 = vunpack.c.l.b16 %v124
    %v475 = vunpack.c.h.b16 %v124
    %v476 = vunpack.c.l.b16 %v125
    %v477 = vunpack.c.h.b16 %v125
    %v478 = vunpack.c.l.b16 %v126
    %v479 = vunpack.c.h.b16 %v126
    %v480 = vunpack.c.l.b16 %v127
    %v481 = vunpack.c.h.b16 %v127
    %v482 = vunpack.c.l.b16 %v128
    %v483 = vunpack.c.h.b16 %v128
    %v484 = vunpack.c.l.b16 %v129
    %v485 = vunpack.c.h.b16 %v129
    %v486 = vunpack.c.l.b16 %v130
    %v487 = vunpack.c.h.b16 %v130
    %v488 = vunpack.c.l.b16 %v131
    %v489 = vunpack.c.h.b16 %v131
    %v490 = vunpack.c.l.b16 %v132
    %v491 = vunpack.c.h.b16 %v132
    %v492 = vunpack.c.l.b16 %v133
    %v493 = vunpack.c.h.b16 %v133
    %v494 = vunpack.c.l.b16 %v134
    %v495 = vunpack.c.h.b16 %v134
    %v496 = vunpack.c.l.b16 %v135
    %v497 = vunpack.c.h.b16 %v135
    %v498 = vunpack.c.l.b16 %v136
    %v499 = vunpack.c.h.b16 %v136
    %v500 = vunpack.c.l.b16 %v137
    %v501 = vunpack.c.h.b16 %v137
    %v502 = vunpack.c.l.b16 %v138
    %v503 = vunpack.c.h.b16 %v138
    %v504 = vunpack.c.l.b16 %v139
    %v505 = vunpack.c.h.b16 %v139
    %v506 = vunpack.c.l.b16 %v140
    %v507 = vunpack.c.h.b16 %v140
    %v508 = vunpack.c.l.b16 %v141
    %v509 = vunpack.c.h.b16 %v141
    %v510 = vunpack.c.l.b16 %v142
    %v511 = vunpack.c.h.b16 %v142
    %v512 = vunpack.c.l.b16 %v143
    %v513 = vunpack.c.h.b16 %v143
    %v514 = vunpack.c.l.b16 %v144
    %v515 = vunpack.c.h.b16 %v144
    %v516 = vunpack.c.l.b16 %v145
    %v517 = vunpack.c.h.b16 %v145
    %v518 = vunpack.c.l.b16 %v146
    %v519 = vunpack.c.h.b16 %v146
    %v520 = vunpack.c.l.b16 %v147
    %v521 = vunpack.c.h.b16 %v147
    %v522 = vunpack.c.l.b16 %v148
    %v523 = vunpack.c.h.b16 %v148
    %v524 = vunpack.c.l.b16 %v149
    %v525 = vunpack.c.h.b16 %v149
    %v526 = vunpack.c.l.b16 %v150
    %v527 = vunpack.c.h.b16 %v150
    %v528 = vunpack.c.l.b16 %v151
    %v529 = vunpack.c.h.b16 %v151
    %v530 = vunpack.c.l.b16 %v152
    %v531 = vunpack.c.h.b16 %v152
    %v532 = vunpack.c.l.b16 %v153
    %v533 = vunpack.c.h.b16 %v153
    %v534 = vunpack.c.l.b16 %v154
    %v535 = vunpack.c.h.b16 %v154
    %v536 = vunpack.c.l.b16 %v155
    %v537 = vunpack.c.h.b16 %v155
    %v538 = vunpack.c.l.b16 %v156
    %v539 = vunpack.c.h.b16 %v156
    %v540 = vunpack.c.l.b16 %v157
    %v541 = vunpack.c.h.b16 %v157
    %v542 = vunpack.c.l.b16 %v158
    %v543 = vunpack.c.h.b16 %v158
    %v544 = vunpack.c.l.b16 %v159
    %v545 = vunpack.c.h.b16 %v159
    %v546 = vunpack.c.l.b16 %v160
    %v547 = vunpack.c.h.b16 %v160
    %v548 = vunpack.c.l.b16 %v161
    %v549 = vunpack.c.h.b16 %v161
    %v550 = vunpack.c.l.b16 %v162
    %v551 = vunpack.c.h.b16 %v162
    %v552 = vunpack.c.l.b16 %v163
    %v553 = vunpack.c.h.b16 %v163
    %v554 = vunpack.c.l.b16 %v164
    %v555 = vunpack.c.h.b16 %v164
    %v556 = vunpack.c.l.b16 %v165
    %v557 = vunpack.c.h.b16 %v165
    %v558 = vunpack.c.l.b16 %v166
    %v559 = vunpack.c.h.b16 %v166
    %v560 = vunpack.c.l.b16 %v167
    %v561 = vunpack.c.h.b16 %v167
    %v562 = vunpack.c.l.b16 %v168
    %v563 = vunpack.c.h.b16 %v168
    %v564 = vunpack.c.l.b16 %v169
    %v565 = vunpack.c.h.b16 %v169
    %v566 = vunpack.c.l.b16 %v170
    %v567 = vunpack.c.h.b16 %v170
    %v568 = vunpack.c.l.b16 %v171
    %v569 = vunpack.c.h.b16 %v171
    %v570 = vunpack.c.l.b16 %v172
    %v571 = vunpack.c.h.b16 %v172
    %v572 = vunpack.c.l.b16 %v173
    %v573 = vunpack.c.h.b16 %v173
    %v574 = vunpack.c.l.b16 %v174
    %v575 = vunpack.c.h.b16 %v174
    %v576 = vunpack.c.l.b16 %v175
    %v577 = vunpack.c.h.b16 %v175
    %v578 = vunpack.c.l.b16 %v176
    %v579 = vunpack.c.h.b16 %v176
    %v580 = vunpack.c.l.b16 %v177
    %v581 = vunpack.c.h.b16 %v177
    %v582 = vunpack.c.l.b16 %v178
    %v583 = vunpack.c.h.b16 %v178
    %v584 = vunpack.c.l.b16 %v179
    %v585 = vunpack.c.h.b16 %v179
    %v586 = vunpack.c.l.b16 %v180
    %v587 = vunpack.c.h.b16 %v180
    %v588 = vunpack.c.l.b16 %v181
    %v589 = vunpack.c.h.b16 %v181
    %v590 = vunpack.c.l.b16 %v182
    %v591 = vunpack.c.h.b16 %v182
    %v592 = vunpack.c.l.b16 %v183
    %v593 = vunpack.c.h.b16 %v183
    %v594 = vunpack.c.l.b16 %v184
    %v595 = vunpack.c.h.b16 %v184
    %v596 = vunpack.c.l.b16 %v185
    %v597 = vunpack.c.h.b16 %v185
    %v598 = vunpack.c.l.b16 %v186
    %v599 = vunpack.c.h.b16 %v186
    %v600 = vunpack.c.l.b16 %v187
    %v601 = vunpack.c.h.b16 %v187
    %v602 = vunpack.c.l.b16 %v188
    %v603 = vunpack.c.h.b16 %v188
    %v604 = vunpack.c.l.b16 %v189
    %v605 = vunpack.c.h.b16 %v189
    %v606 = vunpack.c.l.b16 %v190
    %v607 = vunpack.c.h.b16 %v190
    %v608 = vunpack.c.l.b16 %v191
    %v609 = vunpack.c.h.b16 %v191
    %v610 = vunpack.c.l.b16 %v192
    %v611 = vunpack.c.h.b16 %v192
    %v612 = vunpack.c.l.b16 %v193
    %v613 = vunpack.c.h.b16 %v193
    %v614 = vunpack.c.l.b16 %v194
    %v615 = vunpack.c.h.b16 %v194
    %v616 = vunpack.c.l.b16 %v195
    %v617 = vunpack.c.h.b16 %v195
    %v618 = vunpack.c.l.b16 %v196
    %v619 = vunpack.c.h.b16 %v196
    %v620 = vunpack.c.l.b16 %v197
    %v621 = vunpack.c.h.b16 %v197
    %v622 = vunpack.c.l.b16 %v198
    %v623 = vunpack.c.h.b16 %v198
    %v624 = vunpack.c.l.b16 %v199
    %v625 = vunpack.c.h.b16 %v199
    %v626 = vunpack.c.l.b16 %v200
    %v627 = vunpack.c.h.b16 %v200
    %v628 = vunpack.c.l.b16 %v201
    %v629 = vunpack.c.h.b16 %v201
    %v630 = vunpack.c.l.b16 %v202
    %v631 = vunpack.c.h.b16 %v202
    %v632 = vunpack.c.l.b16 %v203
    %v633 = vunpack.c.h.b16 %v203
    %v634 = vunpack.c.l.b16 %v204
    %v635 = vunpack.c.h.b16 %v204
    %v636 = vunpack.c.l.b16 %v205
    %v637 = vunpack.c.h.b16 %v205
    %v638 = vunpack.c.l.b16 %v206
    %v639 = vunpack.c.h.b16 %v206
    %v640 = vunpack.c.l.b16 %v207
    %v641 = vunpack.c.h.b16 %v207
    %v642 = vunpack.c.l.b16 %v208
    %v643 = vunpack.c.h.b16 %v208
    %v644 = vunpack.c.l.b16 %v209
    %v645 = vunpack.c.h.b16 %v209
    %v646 = vpack.c.b16 %v398, %v390
    %v647 = vpack.c.b16 %v399, %v391
    %v648 = vpack.c.b16 %v400, %v392
    %v649 = vpack.c.b16 %v401, %v393
    %v650 = vpack.c.b16 %v402, %v394
    %v651 = vpack.c.b16 %v403, %v395
    %v652 = vpack.c.b16 %v404, %v396
    %v653 = vpack.c.b16 %v405, %v397
    %v654 = vpack.c.b16 %v414, %v406
    %v655 = vpack.c.b16 %v415, %v407
    %v656 = vpack.c.b16 %v416, %v408
    %v657 = vpack.c.b16 %v417, %v409
    %v658 = vpack.c.b16 %v418, %v410
    %v659 = vpack.c.b16 %v419, %v411
    %v660 = vpack.c.b16 %v420, %v412
    %v661 = vpack.c.b16 %v421, %v413
    %v662 = vpack.c.b16 %v430, %v422
    %v663 = vpack.c.b16 %v431, %v423
    %v664 = vpack.c.b16 %v432, %v424
    %v665 = vpack.c.b16 %v433, %v425
    %v666 = vpack.c.b16 %v434, %v426
    %v667 = vpack.c.b16 %v435, %v427
    %v668 = vpack.c.b16 %v436, %v428
    %v669 = vpack.c.b16 %v437, %v429
    %v670 = vpack.c.b16 %v446, %v438
    %v671 = vpack.c.b16 %v447, %v439
    %v672 = vpack.c.b16 %v448, %v440
    %v673 = vpack.c.b16 %v449, %v441
    %v674 = vpack.c.b16 %v450, %v442
    %v675 = vpack.c.b16 %v451, %v443
    %v676 = vpack.c.b16 %v452, %v444
    %v677 = vpack.c.b16 %v453, %v445
    %v678 = vpack.c.b16 %v462, %v454
    %v679 = vpack.c.b16 %v463, %v455
    %v680 = vpack.c.b16 %v464, %v456
    %v681 = vpack.c.b16 %v465, %v457
    %v682 = vpack.c.b16 %v466, %v458
    %v683 = vpack.c.b16 %v467, %v459
    %v684 = vpack.c.b16 %v468, %v460
    %v685 = vpack.c.b16 %v469, %v461
    %v686 = vpack.c.b16 %v478, %v470
    %v687 = vpack.c.b16 %v479, %v471
    %v688 = vpack.c.b16 %v480, %v472
    %v689 = vpack.c.b16 %v481, %v473
    %v690 = vpack.c.b16 %v482, %v474
    %v691 = vpack.c.b16 %v483, %v475
    %v692 = vpack.c.b16 %v484, %v476
    %v693 = vpack.c.b16 %v485, %v477
    %v694 = vpack.c.b16 %v494, %v486
    %v695 = vpack.c.b16 %v495, %v487
    %v696 = vpack.c.b16 %v496, %v488
    %v697 = vpack.c.b16 %v497, %v489
    %v698 = vpack.c.b16 %v498, %v490
    %v699 = vpack.c.b16 %v499, %v491
    %v700 = vpack.c.b16 %v500, %v492
    %v701 = vpack.c.b16 %v501, %v493
    %v702 = vpack.c.b16 %v510, %v502
    %v703 = vpack.c.b16 %v511, %v503
    %v704 = vpack.c.b16 %v512, %v504
    %v705 = vpack.c.b16 %v513, %v505
    %v706 = vpack.c.b16 %v514, %v506
    %v707 = vpack.c.b16 %v515, %v507
    %v708 = vpack.c.b16 %v516, %v508
    %v709 = vpack.c.b16 %v517, %v509
    %v710 = vpack.c.b16 %v526, %v518
    %v711 = vpack.c.b16 %v527, %v519
    %v712 = vpack.c.b16 %v528, %v520
    %v713 = vpack.c.b16 %v529, %v521
    %v714 = vpack.c.b16 %v530, %v522
    %v715 = vpack.c.b16 %v531, %v523
    %v716 = vpack.c.b16 %v532, %v524
    %v717 = vpack.c.b16 %v533, %v525
    %v718 = vpack.c.b16 %v542, %v534
    %v719 = vpack.c.b16 %v543, %v535
    %v720 = vpack.c.b16 %v544, %v536
    %v721 = vpack.c.b16 %v545, %v537
    %v722 = vpack.c.b16 %v546, %v538
    %v723 = vpack.c.b16 %v547, %v539
    %v724 = vpack.c.b16 %v548, %v540
    %v725 = vpack.c.b16 %v549, %v541
    %v726 = vpack.c.b16 %v558, %v550
    %v727 = vpack.c.b16 %v559, %v551
    %v728 = vpack.c.b16 %v560, %v552
    %v729 = vpack.c.b16 %v561, %v553
    %v730 = vpack.c.b16 %v562, %v554
    %v731 = vpack.c.b16 %v563, %v555
    %v732 = vpack.c.b16 %v564, %v556
    %v733 = vpack.c.b16 %v565, %v557
    %v734 = vpack.c.b16 %v574, %v566
    %v735 = vpack.c.b16 %v575, %v567
    %v736 = vpack.c.b16 %v576, %v568
    %v737 = vpack.c.b16 %v577, %v569
    %v738 = vpack.c.b16 %v578, %v570
    %v739 = vpack.c.b16 %v579, %v571
    %v740 = vpack.c.b16 %v580, %v572
    %v741 = vpack.c.b16 %v581, %v573
    %v742 = vpack.c.b16 %v590, %v582
    %v743 = vpack.c.b16 %v591, %v583
    %v744 = vpack.c.b16 %v592, %v584
    %v745 = vpack.c.b16 %v593, %v585
    %v746 = vpack.c.b16 %v594, %v586
    %v747 = vpack.c.b16 %v595, %v587
    %v748 = vpack.c.b16 %v596, %v588
    %v749 = vpack.c.b16 %v597, %v589
    %v750 = vpack.c.b16 %v606, %v598
    %v751 = vpack.c.b16 %v607, %v599
    %v752 = vpack.c.b16 %v608, %v600
    %v753 = vpack.c.b16 %v609, %v601
    %v754 = vpack.c.b16 %v610, %v602
    %v755 = vpack.c.b16 %v611, %v603
    %v756 = vpack.c.b16 %v612, %v604
    %v757 = vpack.c.b16 %v613, %v605
    %v758 = vpack.c.b16 %v622, %v614
    %v759 = vpack.c.b16 %v623, %v615
    %v760 = vpack.c.b16 %v624, %v616
    %v761 = vpack.c.b16 %v625, %v617
    %v762 = vpack.c.b16 %v626, %v618
    %v763 = vpack.c.b16 %v627, %v619
    %v764 = vpack.c.b16 %v628, %v620
    %v765 = vpack.c.b16 %v629, %v621
    %v766 = vpack.c.b16 %v638, %v630
    %v767 = vpack.c.b16 %v639, %v631
    %v768 = vpack.c.b16 %v640, %v632
    %v769 = vpack.c.b16 %v641, %v633
    %v770 = vpack.c.b16 %v642, %v634
    %v771 = vpack.c.b16 %v643, %v635
    %v772 = vpack.c.b16 %v644, %v636
    %v773 = vpack.c.b16 %v645, %v637
    %902 = vmatprep.subr.bf16.mxu0 %v647
    %903 = vmatpush1.bf16.msra.mxu0 %v646
    %904 = vmatprep.subr.bf16.mxu0 %v655
    %905 = vmatpush1.bf16.msra.mxu0 %v654
    %906 = vmatprep.subr.bf16.mxu0 %v663
    %907 = vmatpush1.bf16.msra.mxu0 %v662
    %908 = vmatprep.subr.bf16.mxu0 %v671
    %909 = vmatpush1.bf16.msra.mxu0 %v670
    %910 = vmatprep.subr.bf16.mxu0 %v679
    %911 = vmatpush1.bf16.msra.mxu0 %v678
    %912 = vmatprep.subr.bf16.mxu0 %v687
    %913 = vmatpush1.bf16.msra.mxu0 %v686
    %914 = vmatprep.subr.bf16.mxu0 %v695
    %915 = vmatpush1.bf16.msra.mxu0 %v694
    %916 = vmatprep.subr.bf16.mxu0 %v703
    %917 = vmatpush1.bf16.msra.mxu0 %v702
    %918 = vmatprep.subr.bf16.mxu0 %v711
    %919 = vmatpush1.bf16.msra.mxu0 %v710
    %920 = vmatprep.subr.bf16.mxu0 %v719
    %921 = vmatpush1.bf16.msra.mxu0 %v718
    %922 = vmatprep.subr.bf16.mxu0 %v727
    %923 = vmatpush1.bf16.msra.mxu0 %v726
    %924 = vmatprep.subr.bf16.mxu0 %v735
    %925 = vmatpush1.bf16.msra.mxu0 %v734
    %926 = vmatprep.subr.bf16.mxu0 %v743
    %927 = vmatpush1.bf16.msra.mxu0 %v742
    %928 = vmatprep.subr.bf16.mxu0 %v751
    %929 = vmatpush1.bf16.msra.mxu0 %v750
    %930 = vmatprep.subr.bf16.mxu0 %v759
    %931 = vmatpush1.bf16.msra.mxu0 %v758
    %932 = vmatprep.subr.bf16.mxu0 %v767
    %933 = vmatpush1.bf16.msra.mxu0 %v766
    %934 = vmatprep.mubr.bf16.mxu0 %v259
    %935 = vmatmul.mubr.bf16.gmra.mrb[0].mxu0 %v258
    %v936 = vpop.f32.mrb[0].mxu0
    %v937 = vadd.f32 %v215, %v936
    %v938 = vpop.f32.mrb[0].mxu0
    %v939 = vadd.f32 %v219, %v938
    %v940 = vpop.f32.mrb[0].mxu0
    %v941 = vadd.f32 %v215, %v940
    %v942 = vpop.f32.mrb[0].mxu0
    %v943 = vadd.f32 %v219, %v942
    %944 = vdwg.mxu0
    %945 = vmatprep.subr.bf16.mxu0 %v649
    %946 = vmatpush1.bf16.msra.mxu0 %v648
    %947 = vmatprep.subr.bf16.mxu0 %v657
    %948 = vmatpush1.bf16.msra.mxu0 %v656
    %949 = vmatprep.subr.bf16.mxu0 %v665
    %950 = vmatpush1.bf16.msra.mxu0 %v664
    %951 = vmatprep.subr.bf16.mxu0 %v673
    %952 = vmatpush1.bf16.msra.mxu0 %v672
    %953 = vmatprep.subr.bf16.mxu0 %v681
    %954 = vmatpush1.bf16.msra.mxu0 %v680
    %955 = vmatprep.subr.bf16.mxu0 %v689
    %956 = vmatpush1.bf16.msra.mxu0 %v688
    %957 = vmatprep.subr.bf16.mxu0 %v697
    %958 = vmatpush1.bf16.msra.mxu0 %v696
    %959 = vmatprep.subr.bf16.mxu0 %v705
    %960 = vmatpush1.bf16.msra.mxu0 %v704
    %961 = vmatprep.subr.bf16.mxu0 %v713
    %962 = vmatpush1.bf16.msra.mxu0 %v712
    %963 = vmatprep.subr.bf16.mxu0 %v721
    %964 = vmatpush1.bf16.msra.mxu0 %v720
    %965 = vmatprep.subr.bf16.mxu0 %v729
    %966 = vmatpush1.bf16.msra.mxu0 %v728
    %967 = vmatprep.subr.bf16.mxu0 %v737
    %968 = vmatpush1.bf16.msra.mxu0 %v736
    %969 = vmatprep.subr.bf16.mxu0 %v745
    %970 = vmatpush1.bf16.msra.mxu0 %v744
    %971 = vmatprep.subr.bf16.mxu0 %v753
    %972 = vmatpush1.bf16.msra.mxu0 %v752
    %973 = vmatprep.subr.bf16.mxu0 %v761
    %974 = vmatpush1.bf16.msra.mxu0 %v760
    %975 = vmatprep.subr.bf16.mxu0 %v769
    %976 = vmatpush1.bf16.msra.mxu0 %v768
    %977 = vmatprep.mubr.bf16.mxu0 %v259
    %978 = vmatmul.mubr.bf16.gmra.mrb[0].mxu0 %v258
    %v979 = vpop.f32.mrb[0].mxu0
    %v980 = vadd.f32 %v223, %v979
    %v981 = vpop.f32.mrb[0].mxu0
    %v982 = vadd.f32 %v227, %v981
    %v983 = vpop.f32.mrb[0].mxu0
    %v984 = vadd.f32 %v223, %v983
    %v985 = vpop.f32.mrb[0].mxu0
    %v986 = vadd.f32 %v227, %v985
    %987 = vdwg.mxu0
    %988 = vmatprep.subr.bf16.mxu0 %v651
    %989 = vmatpush1.bf16.msra.mxu0 %v650
    %990 = vmatprep.subr.bf16.mxu0 %v659
    %991 = vmatpush1.bf16.msra.mxu0 %v658
    %992 = vmatprep.subr.bf16.mxu0 %v667
    %993 = vmatpush1.bf16.msra.mxu0 %v666
    %994 = vmatprep.subr.bf16.mxu0 %v675
    %995 = vmatpush1.bf16.msra.mxu0 %v674
    %996 = vmatprep.subr.bf16.mxu0 %v683
    %997 = vmatpush1.bf16.msra.mxu0 %v682
    %998 = vmatprep.subr.bf16.mxu0 %v691
    %999 = vmatpush1.bf16.msra.mxu0 %v690
    %1000 = vmatprep.subr.bf16.mxu0 %v699
    %1001 = vmatpush1.bf16.msra.mxu0 %v698
    %1002 = vmatprep.subr.bf16.mxu0 %v707
    %1003 = vmatpush1.bf16.msra.mxu0 %v706
    %1004 = vmatprep.subr.bf16.mxu0 %v715
    %1005 = vmatpush1.bf16.msra.mxu0 %v714
    %1006 = vmatprep.subr.bf16.mxu0 %v723
    %1007 = vmatpush1.bf16.msra.mxu0 %v722
    %1008 = vmatprep.subr.bf16.mxu0 %v731
    %1009 = vmatpush1.bf16.msra.mxu0 %v730
    %1010 = vmatprep.subr.bf16.mxu0 %v739
    %1011 = vmatpush1.bf16.msra.mxu0 %v738
    %1012 = vmatprep.subr.bf16.mxu0 %v747
    %1013 = vmatpush1.bf16.msra.mxu0 %v746
    %1014 = vmatprep.subr.bf16.mxu0 %v755
    %1015 = vmatpush1.bf16.msra.mxu0 %v754
    %1016 = vmatprep.subr.bf16.mxu0 %v763
    %1017 = vmatpush1.bf16.msra.mxu0 %v762
    %1018 = vmatprep.subr.bf16.mxu0 %v771
    %1019 = vmatpush1.bf16.msra.mxu0 %v770
    %1020 = vmatprep.mubr.bf16.mxu0 %v259
    %1021 = vmatmul.mubr.bf16.gmra.mrb[0].mxu0 %v258
    %v1022 = vpop.f32.mrb[0].mxu0
    %v1023 = vadd.f32 %v231, %v1022
    %v1024 = vpop.f32.mrb[0].mxu0
    %v1025 = vadd.f32 %v235, %v1024
    %v1026 = vpop.f32.mrb[0].mxu0
    %v1027 = vadd.f32 %v231, %v1026
    %v1028 = vpop.f32.mrb[0].mxu0
    %v1029 = vadd.f32 %v235, %v1028
    %1030 = vdwg.mxu0
    %1031 = vmatprep.subr.bf16.mxu0 %v653
    %1032 = vmatpush1.bf16.msra.mxu0 %v652
    %1033 = vmatprep.subr.bf16.mxu0 %v661
    %1034 = vmatpush1.bf16.msra.mxu0 %v660
    %1035 = vmatprep.subr.bf16.mxu0 %v669
    %1036 = vmatpush1.bf16.msra.mxu0 %v668
    %1037 = vmatprep.subr.bf16.mxu0 %v677
    %1038 = vmatpush1.bf16.msra.mxu0 %v676
    %1039 = vmatprep.subr.bf16.mxu0 %v685
    %1040 = vmatpush1.bf16.msra.mxu0 %v684
    %1041 = vmatprep.subr.bf16.mxu0 %v693
    %1042 = vmatpush1.bf16.msra.mxu0 %v692
    %1043 = vmatprep.subr.bf16.mxu0 %v701
    %1044 = vmatpush1.bf16.msra.mxu0 %v700
    %1045 = vmatprep.subr.bf16.mxu0 %v709
    %1046 = vmatpush1.bf16.msra.mxu0 %v708
    %1047 = vmatprep.subr.bf16.mxu0 %v717
    %1048 = vmatpush1.bf16.msra.mxu0 %v716
    %1049 = vmatprep.subr.bf16.mxu0 %v725
    %1050 = vmatpush1.bf16.msra.mxu0 %v724
    %1051 = vmatprep.subr.bf16.mxu0 %v733
    %1052 = vmatpush1.bf16.msra.mxu0 %v732
    %1053 = vmatprep.subr.bf16.mxu0 %v741
    %1054 = vmatpush1.bf16.msra.mxu0 %v740
    %1055 = vmatprep.subr.bf16.mxu0 %v749
    %1056 = vmatpush1.bf16.msra.mxu0 %v748
    %1057 = vmatprep.subr.bf16.mxu0 %v757
    %1058 = vmatpush1.bf16.msra.mxu0 %v756
    %1059 = vmatprep.subr.bf16.mxu0 %v765
    %1060 = vmatpush1.bf16.msra.mxu0 %v764
    %1061 = vmatprep.subr.bf16.mxu0 %v773
    %1062 = vmatpush1.bf16.msra.mxu0 %v772
    %1063 = vmatprep.mubr.bf16.mxu0 %v259
    %1064 = vmatmul.mubr.bf16.gmra.mrb[0].mxu0 %v258
    %v1065 = vpop.f32.mrb[0].mxu0
    %v1066 = vadd.f32 %v239, %v1065
    %v1067 = vpop.f32.mrb[0].mxu0
    %v1068 = vadd.f32 %v243, %v1067
    %v1069 = vpop.f32.mrb[0].mxu0
    %v1070 = vadd.f32 %v239, %v1069
    %v1071 = vpop.f32.mrb[0].mxu0
    %v1072 = vadd.f32 %v243, %v1071
    %1073 = vdwg.mxu0
    %1074 = vadd.xlane.f32.xlu0 %v937
    %v1075 = vpop.xlane.xlu0 %1074
    %1076 = vadd.xlane.f32.xlu0 %v941
    %v1077 = vpop.xlane.xlu0 %1076
    %v1078 = vrcp.pop 128.0
    %v1079 = vmul.f32 %v1075, %v1078
    %v1080 = vmul.f32 %v1077, %v1078
    %v1081 = vsub.f32 %v937, %v1079
    %v1082 = vsub.f32 %v941, %v1080
    %v1083 = vmul.f32 %v1081, %v1081
    %v1084 = vmul.f32 %v1082, %v1082
    %1085 = vadd.xlane.f32.xlu0 %v1083
    %v1086 = vpop.xlane.xlu0 %1085
    %1087 = vadd.xlane.f32.xlu0 %v1084
    %v1088 = vpop.xlane.xlu0 %1087
    %v1089 = vmul.f32 %v1086, %v1078
    %v1090 = vmul.f32 %v1088, %v1078
    %v1091 = vadd.f32 %v1089, 1e-05
    %v1092 = vadd.f32 %v1090, 1e-05
    %v1093 = vrsqrt.pop %v1091
    %v1094 = vrsqrt.pop %v1092
    %v1095 = vmul.f32 %v1081, %v1093
    %v1096 = vmul.f32 %v1082, %v1094
    %1097 = vadd.xlane.f32.xlu0 %v939
    %v1098 = vpop.xlane.xlu0 %1097
    %1099 = vadd.xlane.f32.xlu0 %v943
    %v1100 = vpop.xlane.xlu0 %1099
    %v1101 = vmul.f32 %v1098, %v1078
    %v1102 = vmul.f32 %v1100, %v1078
    %v1103 = vsub.f32 %v939, %v1101
    %v1104 = vsub.f32 %v943, %v1102
    %v1105 = vmul.f32 %v1103, %v1103
    %v1106 = vmul.f32 %v1104, %v1104
    %1107 = vadd.xlane.f32.xlu0 %v1105
    %v1108 = vpop.xlane.xlu0 %1107
    %1109 = vadd.xlane.f32.xlu0 %v1106
    %v1110 = vpop.xlane.xlu0 %1109
    %v1111 = vmul.f32 %v1108, %v1078
    %v1112 = vmul.f32 %v1110, %v1078
    %v1113 = vadd.f32 %v1111, 1e-05
    %v1114 = vadd.f32 %v1112, 1e-05
    %v1115 = vrsqrt.pop %v1113
    %v1116 = vrsqrt.pop %v1114
    %v1117 = vmul.f32 %v1103, %v1115
    %v1118 = vmul.f32 %v1104, %v1116
    %1119 = vadd.xlane.f32.xlu0 %v980
    %v1120 = vpop.xlane.xlu0 %1119
    %1121 = vadd.xlane.f32.xlu0 %v984
    %v1122 = vpop.xlane.xlu0 %1121
    %v1123 = vmul.f32 %v1120, %v1078
    %v1124 = vmul.f32 %v1122, %v1078
    %v1125 = vsub.f32 %v980, %v1123
    %v1126 = vsub.f32 %v984, %v1124
    %v1127 = vmul.f32 %v1125, %v1125
    %v1128 = vmul.f32 %v1126, %v1126
    %1129 = vadd.xlane.f32.xlu0 %v1127
    %v1130 = vpop.xlane.xlu0 %1129
    %1131 = vadd.xlane.f32.xlu0 %v1128
    %v1132 = vpop.xlane.xlu0 %1131
    %v1133 = vmul.f32 %v1130, %v1078
    %v1134 = vmul.f32 %v1132, %v1078
    %v1135 = vadd.f32 %v1133, 1e-05
    %v1136 = vadd.f32 %v1134, 1e-05
    %v1137 = vrsqrt.pop %v1135
    %v1138 = vrsqrt.pop %v1136
    %v1139 = vmul.f32 %v1125, %v1137
    %v1140 = vmul.f32 %v1126, %v1138
    %1141 = vadd.xlane.f32.xlu0 %v982
    %v1142 = vpop.xlane.xlu0 %1141
    %1143 = vadd.xlane.f32.xlu0 %v986
    %v1144 = vpop.xlane.xlu0 %1143
    %v1145 = vmul.f32 %v1142, %v1078
    %v1146 = vmul.f32 %v1144, %v1078
    %v1147 = vsub.f32 %v982, %v1145
    %v1148 = vsub.f32 %v986, %v1146
    %v1149 = vmul.f32 %v1147, %v1147
    %v1150 = vmul.f32 %v1148, %v1148
    %1151 = vadd.xlane.f32.xlu0 %v1149
    %v1152 = vpop.xlane.xlu0 %1151
    %1153 = vadd.xlane.f32.xlu0 %v1150
    %v1154 = vpop.xlane.xlu0 %1153
    %v1155 = vmul.f32 %v1152, %v1078
    %v1156 = vmul.f32 %v1154, %v1078
    %v1157 = vadd.f32 %v1155, 1e-05
    %v1158 = vadd.f32 %v1156, 1e-05
    %v1159 = vrsqrt.pop %v1157
    %v1160 = vrsqrt.pop %v1158
    %v1161 = vmul.f32 %v1147, %v1159
    %v1162 = vmul.f32 %v1148, %v1160
    %1163 = vadd.xlane.f32.xlu0 %v1023
    %v1164 = vpop.xlane.xlu0 %1163
    %1165 = vadd.xlane.f32.xlu0 %v1027
    %v1166 = vpop.xlane.xlu0 %1165
    %v1167 = vmul.f32 %v1164, %v1078
    %v1168 = vmul.f32 %v1166, %v1078
    %v1169 = vsub.f32 %v1023, %v1167
    %v1170 = vsub.f32 %v1027, %v1168
    %v1171 = vmul.f32 %v1169, %v1169
    %v1172 = vmul.f32 %v1170, %v1170
    %1173 = vadd.xlane.f32.xlu0 %v1171
    %v1174 = vpop.xlane.xlu0 %1173
    %1175 = vadd.xlane.f32.xlu0 %v1172
    %v1176 = vpop.xlane.xlu0 %1175
    %v1177 = vmul.f32 %v1174, %v1078
    %v1178 = vmul.f32 %v1176, %v1078
    %v1179 = vadd.f32 %v1177, 1e-05
    %v1180 = vadd.f32 %v1178, 1e-05
    %v1181 = vrsqrt.pop %v1179
    %v1182 = vrsqrt.pop %v1180
    %v1183 = vmul.f32 %v1169, %v1181
    %v1184 = vmul.f32 %v1170, %v1182
    %1185 = vadd.xlane.f32.xlu0 %v1025
    %v1186 = vpop.xlane.xlu0 %1185
    %1187 = vadd.xlane.f32.xlu0 %v1029
    %v1188 = vpop.xlane.xlu0 %1187
    %v1189 = vmul.f32 %v1186, %v1078
    %v1190 = vmul.f32 %v1188, %v1078
    %v1191 = vsub.f32 %v1025, %v1189
    %v1192 = vsub.f32 %v1029, %v1190
    %v1193 = vmul.f32 %v1191, %v1191
    %v1194 = vmul.f32 %v1192, %v1192
    %1195 = vadd.xlane.f32.xlu0 %v1193
    %v1196 = vpop.xlane.xlu0 %1195
    %1197 = vadd.xlane.f32.xlu0 %v1194
    %v1198 = vpop.xlane.xlu0 %1197
    %v1199 = vmul.f32 %v1196, %v1078
    %v1200 = vmul.f32 %v1198, %v1078
    %v1201 = vadd.f32 %v1199, 1e-05
    %v1202 = vadd.f32 %v1200, 1e-05
    %v1203 = vrsqrt.pop %v1201
    %v1204 = vrsqrt.pop %v1202
    %v1205 = vmul.f32 %v1191, %v1203
    %v1206 = vmul.f32 %v1192, %v1204
    %1207 = vadd.xlane.f32.xlu0 %v1066
    %v1208 = vpop.xlane.xlu0 %1207
    %1209 = vadd.xlane.f32.xlu0 %v1070
    %v1210 = vpop.xlane.xlu0 %1209
    %v1211 = vmul.f32 %v1208, %v1078
    %v1212 = vmul.f32 %v1210, %v1078
    %v1213 = vsub.f32 %v1066, %v1211
    %v1214 = vsub.f32 %v1070, %v1212
    %v1215 = vmul.f32 %v1213, %v1213
    %v1216 = vmul.f32 %v1214, %v1214
    %1217 = vadd.xlane.f32.xlu0 %v1215
    %v1218 = vpop.xlane.xlu0 %1217
    %1219 = vadd.xlane.f32.xlu0 %v1216
    %v1220 = vpop.xlane.xlu0 %1219
    %v1221 = vmul.f32 %v1218, %v1078
    %v1222 = vmul.f32 %v1220, %v1078
    %v1223 = vadd.f32 %v1221, 1e-05
    %v1224 = vadd.f32 %v1222, 1e-05
    %v1225 = vrsqrt.pop %v1223
    %v1226 = vrsqrt.pop %v1224
    %v1227 = vmul.f32 %v1213, %v1225
    %v1228 = vmul.f32 %v1214, %v1226
    %1229 = vadd.xlane.f32.xlu0 %v1068
    %v1230 = vpop.xlane.xlu0 %1229
    %1231 = vadd.xlane.f32.xlu0 %v1072
    %v1232 = vpop.xlane.xlu0 %1231
    %v1233 = vmul.f32 %v1230, %v1078
    %v1234 = vmul.f32 %v1232, %v1078
    %v1235 = vsub.f32 %v1068, %v1233
    %v1236 = vsub.f32 %v1072, %v1234
    %v1237 = vmul.f32 %v1235, %v1235
    %v1238 = vmul.f32 %v1236, %v1236
    %1239 = vadd.xlane.f32.xlu0 %v1237
    %v1240 = vpop.xlane.xlu0 %1239
    %1241 = vadd.xlane.f32.xlu0 %v1238
    %v1242 = vpop.xlane.xlu0 %1241
    %v1243 = vmul.f32 %v1240, %v1078
    %v1244 = vmul.f32 %v1242, %v1078
    %v1245 = vadd.f32 %v1243, 1e-05
    %v1246 = vadd.f32 %v1244, 1e-05
    %v1247 = vrsqrt.pop %v1245
    %v1248 = vrsqrt.pop %v1246
    %v1249 = vmul.f32 %v1235, %v1247
    %v1250 = vmul.f32 %v1236, %v1248
    %v1251 = vld [vmem:[%s3] sm:$0xff]
    %v1253 = vlaneseq
    %v1254 = vshrl.u32 %v1253, 7
    %v1255 = vsub.s32 0, %v1254
    %v1256 = vrot.slane %v1251, %v1255
    %v1257 = vlaneseq
    %v1258 = vshrl.u32 %v1257, 7
    %v1259 = vsub.s32 1, %v1258
    %v1260 = vrot.slane %v1251, %v1259
    %v1261 = vlaneseq
    %v1262 = vshrl.u32 %v1261, 7
    %v1263 = vsub.s32 2, %v1262
    %v1264 = vrot.slane %v1251, %v1263
    %v1265 = vlaneseq
    %v1266 = vshrl.u32 %v1265, 7
    %v1267 = vsub.s32 3, %v1266
    %v1268 = vrot.slane %v1251, %v1267
    %v1269 = vlaneseq
    %v1270 = vshrl.u32 %v1269, 7
    %v1271 = vsub.s32 4, %v1270
    %v1272 = vrot.slane %v1251, %v1271
    %v1273 = vlaneseq
    %v1274 = vshrl.u32 %v1273, 7
    %v1275 = vsub.s32 5, %v1274
    %v1276 = vrot.slane %v1251, %v1275
    %v1277 = vlaneseq
    %v1278 = vshrl.u32 %v1277, 7
    %v1279 = vsub.s32 6, %v1278
    %v1280 = vrot.slane %v1251, %v1279
    %v1281 = vlaneseq
    %v1282 = vshrl.u32 %v1281, 7
    %v1283 = vsub.s32 7, %v1282
    %v1284 = vrot.slane %v1251, %v1283
    %v1293 = vmul.f32 %v1095, %v1256
    %v1294 = vmul.f32 %v1117, %v1260
    %v1295 = vmul.f32 %v1139, %v1264
    %v1296 = vmul.f32 %v1161, %v1268
    %v1297 = vmul.f32 %v1183, %v1272
    %v1298 = vmul.f32 %v1205, %v1276
    %v1299 = vmul.f32 %v1227, %v1280
    %v1300 = vmul.f32 %v1249, %v1284
    %v1301 = vmul.f32 %v1096, %v1256
    %v1302 = vmul.f32 %v1118, %v1260
    %v1303 = vmul.f32 %v1140, %v1264
    %v1304 = vmul.f32 %v1162, %v1268
    %v1305 = vmul.f32 %v1184, %v1272
    %v1306 = vmul.f32 %v1206, %v1276
    %v1307 = vmul.f32 %v1228, %v1280
    %v1308 = vmul.f32 %v1250, %v1284
    %v1309 = vld [vmem:[%s4] sm:$0xff]
    %v1311 = vlaneseq
    %v1312 = vshrl.u32 %v1311, 7
    %v1313 = vsub.s32 0, %v1312
    %v1314 = vrot.slane %v1309, %v1313
    %v1315 = vlaneseq
    %v1316 = vshrl.u32 %v1315, 7
    %v1317 = vsub.s32 1, %v1316
    %v1318 = vrot.slane %v1309, %v1317
    %v1319 = vlaneseq
    %v1320 = vshrl.u32 %v1319, 7
    %v1321 = vsub.s32 2, %v1320
    %v1322 = vrot.slane %v1309, %v1321
    %v1323 = vlaneseq
    %v1324 = vshrl.u32 %v1323, 7
    %v1325 = vsub.s32 3, %v1324
    %v1326 = vrot.slane %v1309, %v1325
    %v1327 = vlaneseq
    %v1328 = vshrl.u32 %v1327, 7
    %v1329 = vsub.s32 4, %v1328
    %v1330 = vrot.slane %v1309, %v1329
    %v1331 = vlaneseq
    %v1332 = vshrl.u32 %v1331, 7
    %v1333 = vsub.s32 5, %v1332
    %v1334 = vrot.slane %v1309, %v1333
    %v1335 = vlaneseq
    %v1336 = vshrl.u32 %v1335, 7
    %v1337 = vsub.s32 6, %v1336
    %v1338 = vrot.slane %v1309, %v1337
    %v1339 = vlaneseq
    %v1340 = vshrl.u32 %v1339, 7
    %v1341 = vsub.s32 7, %v1340
    %v1342 = vrot.slane %v1309, %v1341
    %v1351 = vadd.f32 %v1293, %v1314
    %v1352 = vadd.f32 %v1294, %v1318
    %v1353 = vadd.f32 %v1295, %v1322
    %v1354 = vadd.f32 %v1296, %v1326
    %v1355 = vadd.f32 %v1297, %v1330
    %v1356 = vadd.f32 %v1298, %v1334
    %v1357 = vadd.f32 %v1299, %v1338
    %v1358 = vadd.f32 %v1300, %v1342
    %v1359 = vadd.f32 %v1301, %v1314
    %v1360 = vadd.f32 %v1302, %v1318
    %v1361 = vadd.f32 %v1303, %v1322
    %v1362 = vadd.f32 %v1304, %v1326
    %v1363 = vadd.f32 %v1305, %v1330
    %v1364 = vadd.f32 %v1306, %v1334
    %v1365 = vadd.f32 %v1307, %v1338
    %v1366 = vadd.f32 %v1308, %v1342
    %v1367 = vxor.u32 %v1351, 2147483648
    %v1368 = vxor.u32 %v1352, 2147483648
    %v1369 = vxor.u32 %v1353, 2147483648
    %v1370 = vxor.u32 %v1354, 2147483648
    %v1371 = vxor.u32 %v1355, 2147483648
    %v1372 = vxor.u32 %v1356, 2147483648
    %v1373 = vxor.u32 %v1357, 2147483648
    %v1374 = vxor.u32 %v1358, 2147483648
    %v1375 = vxor.u32 %v1359, 2147483648
    %v1376 = vxor.u32 %v1360, 2147483648
    %v1377 = vxor.u32 %v1361, 2147483648
    %v1378 = vxor.u32 %v1362, 2147483648
    %v1379 = vxor.u32 %v1363, 2147483648
    %v1380 = vxor.u32 %v1364, 2147483648
    %v1381 = vxor.u32 %v1365, 2147483648
    %v1382 = vxor.u32 %v1366, 2147483648
    %v1383 = vmul.f32 %v1367, 1.442695
    %v1384 = vpow.pop %v1383
    %v1385 = vmul.f32 %v1368, 1.442695
    %v1386 = vpow.pop %v1385
    %v1387 = vmul.f32 %v1369, 1.442695
    %v1388 = vpow.pop %v1387
    %v1389 = vmul.f32 %v1370, 1.442695
    %v1390 = vpow.pop %v1389
    %v1391 = vmul.f32 %v1371, 1.442695
    %v1392 = vpow.pop %v1391
    %v1393 = vmul.f32 %v1372, 1.442695
    %v1394 = vpow.pop %v1393
    %v1395 = vmul.f32 %v1373, 1.442695
    %v1396 = vpow.pop %v1395
    %v1397 = vmul.f32 %v1374, 1.442695
    %v1398 = vpow.pop %v1397
    %v1399 = vmul.f32 %v1375, 1.442695
    %v1400 = vpow.pop %v1399
    %v1401 = vmul.f32 %v1376, 1.442695
    %v1402 = vpow.pop %v1401
    %v1403 = vmul.f32 %v1377, 1.442695
    %v1404 = vpow.pop %v1403
    %v1405 = vmul.f32 %v1378, 1.442695
    %v1406 = vpow.pop %v1405
    %v1407 = vmul.f32 %v1379, 1.442695
    %v1408 = vpow.pop %v1407
    %v1409 = vmul.f32 %v1380, 1.442695
    %v1410 = vpow.pop %v1409
    %v1411 = vmul.f32 %v1381, 1.442695
    %v1412 = vpow.pop %v1411
    %v1413 = vmul.f32 %v1382, 1.442695
    %v1414 = vpow.pop %v1413
    %v1415 = vadd.f32 %v1384, 1.0
    %v1416 = vadd.f32 %v1386, 1.0
    %v1417 = vadd.f32 %v1388, 1.0
    %v1418 = vadd.f32 %v1390, 1.0
    %v1419 = vadd.f32 %v1392, 1.0
    %v1420 = vadd.f32 %v1394, 1.0
    %v1421 = vadd.f32 %v1396, 1.0
    %v1422 = vadd.f32 %v1398, 1.0
    %v1423 = vadd.f32 %v1400, 1.0
    %v1424 = vadd.f32 %v1402, 1.0
    %v1425 = vadd.f32 %v1404, 1.0
    %v1426 = vadd.f32 %v1406, 1.0
    %v1427 = vadd.f32 %v1408, 1.0
    %v1428 = vadd.f32 %v1410, 1.0
    %v1429 = vadd.f32 %v1412, 1.0
    %v1430 = vadd.f32 %v1414, 1.0
    %v1431 = vrcp.pop %v1415
    %v1432 = vmul.f32 1.0, %v1431
    %v1433 = vrcp.pop %v1416
    %v1434 = vmul.f32 1.0, %v1433
    %v1435 = vrcp.pop %v1417
    %v1436 = vmul.f32 1.0, %v1435
    %v1437 = vrcp.pop %v1418
    %v1438 = vmul.f32 1.0, %v1437
    %v1439 = vrcp.pop %v1419
    %v1440 = vmul.f32 1.0, %v1439
    %v1441 = vrcp.pop %v1420
    %v1442 = vmul.f32 1.0, %v1441
    %v1443 = vrcp.pop %v1421
    %v1444 = vmul.f32 1.0, %v1443
    %v1445 = vrcp.pop %v1422
    %v1446 = vmul.f32 1.0, %v1445
    %v1447 = vrcp.pop %v1423
    %v1448 = vmul.f32 1.0, %v1447
    %v1449 = vrcp.pop %v1424
    %v1450 = vmul.f32 1.0, %v1449
    %v1451 = vrcp.pop %v1425
    %v1452 = vmul.f32 1.0, %v1451
    %v1453 = vrcp.pop %v1426
    %v1454 = vmul.f32 1.0, %v1453
    %v1455 = vrcp.pop %v1427
    %v1456 = vmul.f32 1.0, %v1455
    %v1457 = vrcp.pop %v1428
    %v1458 = vmul.f32 1.0, %v1457
    %v1459 = vrcp.pop %v1429
    %v1460 = vmul.f32 1.0, %v1459
    %v1461 = vrcp.pop %v1430
    %v1462 = vmul.f32 1.0, %v1461
    %v1463 = vmul.f32 %v1351, %v1432
    %v1464 = vmul.f32 %v1352, %v1434
    %v1465 = vmul.f32 %v1353, %v1436
    %v1466 = vmul.f32 %v1354, %v1438
    %v1467 = vmul.f32 %v1355, %v1440
    %v1468 = vmul.f32 %v1356, %v1442
    %v1469 = vmul.f32 %v1357, %v1444
    %v1470 = vmul.f32 %v1358, %v1446
    %v1471 = vmul.f32 %v1359, %v1448
    %v1472 = vmul.f32 %v1360, %v1450
    %v1473 = vmul.f32 %v1361, %v1452
    %v1474 = vmul.f32 %v1362, %v1454
    %v1475 = vmul.f32 %v1363, %v1456
    %v1476 = vmul.f32 %v1364, %v1458
    %v1477 = vmul.f32 %v1365, %v1460
    %v1478 = vmul.f32 %v1366, %v1462
    %v1479 = vpack.c.bf16 %v1471, %v1463
    %v1480 = vpack.c.bf16 %v1472, %v1464
    %v1481 = vpack.c.bf16 %v1473, %v1465
    %v1482 = vpack.c.bf16 %v1474, %v1466
    %v1483 = vpack.c.bf16 %v1475, %v1467
    %v1484 = vpack.c.bf16 %v1476, %v1468
    %v1485 = vpack.c.bf16 %v1477, %v1469
    %v1486 = vpack.c.bf16 %v1478, %v1470
    %v1487 = vld [vmem:[#allocation4] sm:$0xff]
    %v1488 = vld [vmem:[#allocation4 + $0x8] sm:$0xff]
    %v1489 = vld [vmem:[#allocation4 + $0x10] sm:$0xff]
    %v1490 = vld [vmem:[#allocation4 + $0x18] sm:$0xff]
    %v1491 = vld [vmem:[#allocation4 + $0x20] sm:$0xff]
    %v1492 = vld [vmem:[#allocation4 + $0x28] sm:$0xff]
    %v1493 = vld [vmem:[#allocation4 + $0x30] sm:$0xff]
    %v1494 = vld [vmem:[#allocation4 + $0x38] sm:$0xff]
    %v1495 = vld [vmem:[#allocation4 + $0x40] sm:$0xff]
    %v1496 = vld [vmem:[#allocation4 + $0x48] sm:$0xff]
    %v1497 = vld [vmem:[#allocation4 + $0x50] sm:$0xff]
    %v1498 = vld [vmem:[#allocation4 + $0x58] sm:$0xff]
    %v1499 = vld [vmem:[#allocation4 + $0x60] sm:$0xff]
    %v1500 = vld [vmem:[#allocation4 + $0x68] sm:$0xff]
    %v1501 = vld [vmem:[#allocation4 + $0x70] sm:$0xff]
    %v1502 = vld [vmem:[#allocation4 + $0x78] sm:$0xff]
    %v1503 = vld [vmem:[#allocation4 + $0x80] sm:$0xff]
    %v1504 = vld [vmem:[#allocation4 + $0x88] sm:$0xff]
    %v1505 = vld [vmem:[#allocation4 + $0x90] sm:$0xff]
    %v1506 = vld [vmem:[#allocation4 + $0x98] sm:$0xff]
    %v1507 = vld [vmem:[#allocation4 + $0xa0] sm:$0xff]
    %v1508 = vld [vmem:[#allocation4 + $0xa8] sm:$0xff]
    %v1509 = vld [vmem:[#allocation4 + $0xb0] sm:$0xff]
    %v1510 = vld [vmem:[#allocation4 + $0xb8] sm:$0xff]
    %v1511 = vld [vmem:[#allocation4 + $0xc0] sm:$0xff]
    %v1512 = vld [vmem:[#allocation4 + $0xc8] sm:$0xff]
    %v1513 = vld [vmem:[#allocation4 + $0xd0] sm:$0xff]
    %v1514 = vld [vmem:[#allocation4 + $0xd8] sm:$0xff]
    %v1515 = vld [vmem:[#allocation4 + $0xe0] sm:$0xff]
    %v1516 = vld [vmem:[#allocation4 + $0xe8] sm:$0xff]
    %v1517 = vld [vmem:[#allocation4 + $0xf0] sm:$0xff]
    %v1518 = vld [vmem:[#allocation4 + $0xf8] sm:$0xff]
    %v1519 = vld [vmem:[#allocation4 + $0x100] sm:$0xff]
    %v1520 = vld [vmem:[#allocation4 + $0x108] sm:$0xff]
    %v1521 = vld [vmem:[#allocation4 + $0x110] sm:$0xff]
    %v1522 = vld [vmem:[#allocation4 + $0x118] sm:$0xff]
    %v1523 = vld [vmem:[#allocation4 + $0x120] sm:$0xff]
    %v1524 = vld [vmem:[#allocation4 + $0x128] sm:$0xff]
    %v1525 = vld [vmem:[#allocation4 + $0x130] sm:$0xff]
    %v1526 = vld [vmem:[#allocation4 + $0x138] sm:$0xff]
    %v1527 = vld [vmem:[#allocation4 + $0x140] sm:$0xff]
    %v1528 = vld [vmem:[#allocation4 + $0x148] sm:$0xff]
    %v1529 = vld [vmem:[#allocation4 + $0x150] sm:$0xff]
    %v1530 = vld [vmem:[#allocation4 + $0x158] sm:$0xff]
    %v1531 = vld [vmem:[#allocation4 + $0x160] sm:$0xff]
    %v1532 = vld [vmem:[#allocation4 + $0x168] sm:$0xff]
    %v1533 = vld [vmem:[#allocation4 + $0x170] sm:$0xff]
    %v1534 = vld [vmem:[#allocation4 + $0x178] sm:$0xff]
    %v1535 = vld [vmem:[#allocation4 + $0x180] sm:$0xff]
    %v1536 = vld [vmem:[#allocation4 + $0x188] sm:$0xff]
    %v1537 = vld [vmem:[#allocation4 + $0x190] sm:$0xff]
    %v1538 = vld [vmem:[#allocation4 + $0x198] sm:$0xff]
    %v1539 = vld [vmem:[#allocation4 + $0x1a0] sm:$0xff]
    %v1540 = vld [vmem:[#allocation4 + $0x1a8] sm:$0xff]
    %v1541 = vld [vmem:[#allocation4 + $0x1b0] sm:$0xff]
    %v1542 = vld [vmem:[#allocation4 + $0x1b8] sm:$0xff]
    %v1543 = vld [vmem:[#allocation4 + $0x1c0] sm:$0xff]
    %v1544 = vld [vmem:[#allocation4 + $0x1c8] sm:$0xff]
    %v1545 = vld [vmem:[#allocation4 + $0x1d0] sm:$0xff]
    %v1546 = vld [vmem:[#allocation4 + $0x1d8] sm:$0xff]
    %v1547 = vld [vmem:[#allocation4 + $0x1e0] sm:$0xff]
    %v1548 = vld [vmem:[#allocation4 + $0x1e8] sm:$0xff]
    %v1549 = vld [vmem:[#allocation4 + $0x1f0] sm:$0xff]
    %v1550 = vld [vmem:[#allocation4 + $0x1f8] sm:$0xff]
    %v1551 = vld [vmem:[#allocation4 + $0x200] sm:$0xff]
    %v1552 = vld [vmem:[#allocation4 + $0x208] sm:$0xff]
    %v1553 = vld [vmem:[#allocation4 + $0x210] sm:$0xff]
    %v1554 = vld [vmem:[#allocation4 + $0x218] sm:$0xff]
    %v1555 = vld [vmem:[#allocation4 + $0x220] sm:$0xff]
    %v1556 = vld [vmem:[#allocation4 + $0x228] sm:$0xff]
    %v1557 = vld [vmem:[#allocation4 + $0x230] sm:$0xff]
    %v1558 = vld [vmem:[#allocation4 + $0x238] sm:$0xff]
    %v1559 = vld [vmem:[#allocation4 + $0x240] sm:$0xff]
    %v1560 = vld [vmem:[#allocation4 + $0x248] sm:$0xff]
    %v1561 = vld [vmem:[#allocation4 + $0x250] sm:$0xff]
    %v1562 = vld [vmem:[#allocation4 + $0x258] sm:$0xff]
    %v1563 = vld [vmem:[#allocation4 + $0x260] sm:$0xff]
    %v1564 = vld [vmem:[#allocation4 + $0x268] sm:$0xff]
    %v1565 = vld [vmem:[#allocation4 + $0x270] sm:$0xff]
    %v1566 = vld [vmem:[#allocation4 + $0x278] sm:$0xff]
    %v1567 = vld [vmem:[#allocation4 + $0x280] sm:$0xff]
    %v1568 = vld [vmem:[#allocation4 + $0x288] sm:$0xff]
    %v1569 = vld [vmem:[#allocation4 + $0x290] sm:$0xff]
    %v1570 = vld [vmem:[#allocation4 + $0x298] sm:$0xff]
    %v1571 = vld [vmem:[#allocation4 + $0x2a0] sm:$0xff]
    %v1572 = vld [vmem:[#allocation4 + $0x2a8] sm:$0xff]
    %v1573 = vld [vmem:[#allocation4 + $0x2b0] sm:$0xff]
    %v1574 = vld [vmem:[#allocation4 + $0x2b8] sm:$0xff]
    %v1575 = vld [vmem:[#allocation4 + $0x2c0] sm:$0xff]
    %v1576 = vld [vmem:[#allocation4 + $0x2c8] sm:$0xff]
    %v1577 = vld [vmem:[#allocation4 + $0x2d0] sm:$0xff]
    %v1578 = vld [vmem:[#allocation4 + $0x2d8] sm:$0xff]
    %v1579 = vld [vmem:[#allocation4 + $0x2e0] sm:$0xff]
    %v1580 = vld [vmem:[#allocation4 + $0x2e8] sm:$0xff]
    %v1581 = vld [vmem:[#allocation4 + $0x2f0] sm:$0xff]
    %v1582 = vld [vmem:[#allocation4 + $0x2f8] sm:$0xff]
    %v1583 = vld [vmem:[#allocation4 + $0x300] sm:$0xff]
    %v1584 = vld [vmem:[#allocation4 + $0x308] sm:$0xff]
    %v1585 = vld [vmem:[#allocation4 + $0x310] sm:$0xff]
    %v1586 = vld [vmem:[#allocation4 + $0x318] sm:$0xff]
    %v1587 = vld [vmem:[#allocation4 + $0x320] sm:$0xff]
    %v1588 = vld [vmem:[#allocation4 + $0x328] sm:$0xff]
    %v1589 = vld [vmem:[#allocation4 + $0x330] sm:$0xff]
    %v1590 = vld [vmem:[#allocation4 + $0x338] sm:$0xff]
    %v1591 = vld [vmem:[#allocation4 + $0x340] sm:$0xff]
    %v1592 = vld [vmem:[#allocation4 + $0x348] sm:$0xff]
    %v1593 = vld [vmem:[#allocation4 + $0x350] sm:$0xff]
    %v1594 = vld [vmem:[#allocation4 + $0x358] sm:$0xff]
    %v1595 = vld [vmem:[#allocation4 + $0x360] sm:$0xff]
    %v1596 = vld [vmem:[#allocation4 + $0x368] sm:$0xff]
    %v1597 = vld [vmem:[#allocation4 + $0x370] sm:$0xff]
    %v1598 = vld [vmem:[#allocation4 + $0x378] sm:$0xff]
    %v1599 = vld [vmem:[#allocation4 + $0x380] sm:$0xff]
    %v1600 = vld [vmem:[#allocation4 + $0x388] sm:$0xff]
    %v1601 = vld [vmem:[#allocation4 + $0x390] sm:$0xff]
    %v1602 = vld [vmem:[#allocation4 + $0x398] sm:$0xff]
    %v1603 = vld [vmem:[#allocation4 + $0x3a0] sm:$0xff]
    %v1604 = vld [vmem:[#allocation4 + $0x3a8] sm:$0xff]
    %v1605 = vld [vmem:[#allocation4 + $0x3b0] sm:$0xff]
    %v1606 = vld [vmem:[#allocation4 + $0x3b8] sm:$0xff]
    %v1607 = vld [vmem:[#allocation4 + $0x3c0] sm:$0xff]
    %v1608 = vld [vmem:[#allocation4 + $0x3c8] sm:$0xff]
    %v1609 = vld [vmem:[#allocation4 + $0x3d0] sm:$0xff]
    %v1610 = vld [vmem:[#allocation4 + $0x3d8] sm:$0xff]
    %v1611 = vld [vmem:[#allocation4 + $0x3e0] sm:$0xff]
    %v1612 = vld [vmem:[#allocation4 + $0x3e8] sm:$0xff]
    %v1613 = vld [vmem:[#allocation4 + $0x3f0] sm:$0xff]
    %v1614 = vld [vmem:[#allocation4 + $0x3f8] sm:$0xff]
    %v1615 = vld [vmem:[#allocation4 + $0x400] sm:$0xff]
    %v1616 = vld [vmem:[#allocation4 + $0x408] sm:$0xff]
    %v1617 = vld [vmem:[#allocation4 + $0x410] sm:$0xff]
    %v1618 = vld [vmem:[#allocation4 + $0x418] sm:$0xff]
    %v1619 = vld [vmem:[#allocation4 + $0x420] sm:$0xff]
    %v1620 = vld [vmem:[#allocation4 + $0x428] sm:$0xff]
    %v1621 = vld [vmem:[#allocation4 + $0x430] sm:$0xff]
    %v1622 = vld [vmem:[#allocation4 + $0x438] sm:$0xff]
    %v1623 = vld [vmem:[#allocation4 + $0x440] sm:$0xff]
    %v1624 = vld [vmem:[#allocation4 + $0x448] sm:$0xff]
    %v1625 = vld [vmem:[#allocation4 + $0x450] sm:$0xff]
    %v1626 = vld [vmem:[#allocation4 + $0x458] sm:$0xff]
    %v1627 = vld [vmem:[#allocation4 + $0x460] sm:$0xff]
    %v1628 = vld [vmem:[#allocation4 + $0x468] sm:$0xff]
    %v1629 = vld [vmem:[#allocation4 + $0x470] sm:$0xff]
    %v1630 = vld [vmem:[#allocation4 + $0x478] sm:$0xff]
    %v1631 = vld [vmem:[#allocation4 + $0x480] sm:$0xff]
    %v1632 = vld [vmem:[#allocation4 + $0x488] sm:$0xff]
    %v1633 = vld [vmem:[#allocation4 + $0x490] sm:$0xff]
    %v1634 = vld [vmem:[#allocation4 + $0x498] sm:$0xff]
    %v1635 = vld [vmem:[#allocation4 + $0x4a0] sm:$0xff]
    %v1636 = vld [vmem:[#allocation4 + $0x4a8] sm:$0xff]
    %v1637 = vld [vmem:[#allocation4 + $0x4b0] sm:$0xff]
    %v1638 = vld [vmem:[#allocation4 + $0x4b8] sm:$0xff]
    %v1639 = vld [vmem:[#allocation4 + $0x4c0] sm:$0xff]
    %v1640 = vld [vmem:[#allocation4 + $0x4c8] sm:$0xff]
    %v1641 = vld [vmem:[#allocation4 + $0x4d0] sm:$0xff]
    %v1642 = vld [vmem:[#allocation4 + $0x4d8] sm:$0xff]
    %v1643 = vld [vmem:[#allocation4 + $0x4e0] sm:$0xff]
    %v1644 = vld [vmem:[#allocation4 + $0x4e8] sm:$0xff]
    %v1645 = vld [vmem:[#allocation4 + $0x4f0] sm:$0xff]
    %v1646 = vld [vmem:[#allocation4 + $0x4f8] sm:$0xff]
    %v1647 = vld [vmem:[#allocation4 + $0x500] sm:$0xff]
    %v1648 = vld [vmem:[#allocation4 + $0x508] sm:$0xff]
    %v1649 = vld [vmem:[#allocation4 + $0x510] sm:$0xff]
    %v1650 = vld [vmem:[#allocation4 + $0x518] sm:$0xff]
    %v1651 = vld [vmem:[#allocation4 + $0x520] sm:$0xff]
    %v1652 = vld [vmem:[#allocation4 + $0x528] sm:$0xff]
    %v1653 = vld [vmem:[#allocation4 + $0x530] sm:$0xff]
    %v1654 = vld [vmem:[#allocation4 + $0x538] sm:$0xff]
    %v1655 = vld [vmem:[#allocation4 + $0x540] sm:$0xff]
    %v1656 = vld [vmem:[#allocation4 + $0x548] sm:$0xff]
    %v1657 = vld [vmem:[#allocation4 + $0x550] sm:$0xff]
    %v1658 = vld [vmem:[#allocation4 + $0x558] sm:$0xff]
    %v1659 = vld [vmem:[#allocation4 + $0x560] sm:$0xff]
    %v1660 = vld [vmem:[#allocation4 + $0x568] sm:$0xff]
    %v1661 = vld [vmem:[#allocation4 + $0x570] sm:$0xff]
    %v1662 = vld [vmem:[#allocation4 + $0x578] sm:$0xff]
    %v1663 = vld [vmem:[#allocation4 + $0x580] sm:$0xff]
    %v1664 = vld [vmem:[#allocation4 + $0x588] sm:$0xff]
    %v1665 = vld [vmem:[#allocation4 + $0x590] sm:$0xff]
    %v1666 = vld [vmem:[#allocation4 + $0x598] sm:$0xff]
    %v1667 = vld [vmem:[#allocation4 + $0x5a0] sm:$0xff]
    %v1668 = vld [vmem:[#allocation4 + $0x5a8] sm:$0xff]
    %v1669 = vld [vmem:[#allocation4 + $0x5b0] sm:$0xff]
    %v1670 = vld [vmem:[#allocation4 + $0x5b8] sm:$0xff]
    %v1671 = vld [vmem:[#allocation4 + $0x5c0] sm:$0xff]
    %v1672 = vld [vmem:[#allocation4 + $0x5c8] sm:$0xff]
    %v1673 = vld [vmem:[#allocation4 + $0x5d0] sm:$0xff]
    %v1674 = vld [vmem:[#allocation4 + $0x5d8] sm:$0xff]
    %v1675 = vld [vmem:[#allocation4 + $0x5e0] sm:$0xff]
    %v1676 = vld [vmem:[#allocation4 + $0x5e8] sm:$0xff]
    %v1677 = vld [vmem:[#allocation4 + $0x5f0] sm:$0xff]
    %v1678 = vld [vmem:[#allocation4 + $0x5f8] sm:$0xff]
    %v1679 = vld [vmem:[#allocation4 + $0x600] sm:$0xff]
    %v1680 = vld [vmem:[#allocation4 + $0x608] sm:$0xff]
    %v1681 = vld [vmem:[#allocation4 + $0x610] sm:$0xff]
    %v1682 = vld [vmem:[#allocation4 + $0x618] sm:$0xff]
    %v1683 = vld [vmem:[#allocation4 + $0x620] sm:$0xff]
    %v1684 = vld [vmem:[#allocation4 + $0x628] sm:$0xff]
    %v1685 = vld [vmem:[#allocation4 + $0x630] sm:$0xff]
    %v1686 = vld [vmem:[#allocation4 + $0x638] sm:$0xff]
    %v1687 = vld [vmem:[#allocation4 + $0x640] sm:$0xff]
    %v1688 = vld [vmem:[#allocation4 + $0x648] sm:$0xff]
    %v1689 = vld [vmem:[#allocation4 + $0x650] sm:$0xff]
    %v1690 = vld [vmem:[#allocation4 + $0x658] sm:$0xff]
    %v1691 = vld [vmem:[#allocation4 + $0x660] sm:$0xff]
    %v1692 = vld [vmem:[#allocation4 + $0x668] sm:$0xff]
    %v1693 = vld [vmem:[#allocation4 + $0x670] sm:$0xff]
    %v1694 = vld [vmem:[#allocation4 + $0x678] sm:$0xff]
    %v1695 = vld [vmem:[#allocation4 + $0x680] sm:$0xff]
    %v1696 = vld [vmem:[#allocation4 + $0x688] sm:$0xff]
    %v1697 = vld [vmem:[#allocation4 + $0x690] sm:$0xff]
    %v1698 = vld [vmem:[#allocation4 + $0x698] sm:$0xff]
    %v1699 = vld [vmem:[#allocation4 + $0x6a0] sm:$0xff]
    %v1700 = vld [vmem:[#allocation4 + $0x6a8] sm:$0xff]
    %v1701 = vld [vmem:[#allocation4 + $0x6b0] sm:$0xff]
    %v1702 = vld [vmem:[#allocation4 + $0x6b8] sm:$0xff]
    %v1703 = vld [vmem:[#allocation4 + $0x6c0] sm:$0xff]
    %v1704 = vld [vmem:[#allocation4 + $0x6c8] sm:$0xff]
    %v1705 = vld [vmem:[#allocation4 + $0x6d0] sm:$0xff]
    %v1706 = vld [vmem:[#allocation4 + $0x6d8] sm:$0xff]
    %v1707 = vld [vmem:[#allocation4 + $0x6e0] sm:$0xff]
    %v1708 = vld [vmem:[#allocation4 + $0x6e8] sm:$0xff]
    %v1709 = vld [vmem:[#allocation4 + $0x6f0] sm:$0xff]
    %v1710 = vld [vmem:[#allocation4 + $0x6f8] sm:$0xff]
    %v1711 = vld [vmem:[#allocation4 + $0x700] sm:$0xff]
    %v1712 = vld [vmem:[#allocation4 + $0x708] sm:$0xff]
    %v1713 = vld [vmem:[#allocation4 + $0x710] sm:$0xff]
    %v1714 = vld [vmem:[#allocation4 + $0x718] sm:$0xff]
    %v1715 = vld [vmem:[#allocation4 + $0x720] sm:$0xff]
    %v1716 = vld [vmem:[#allocation4 + $0x728] sm:$0xff]
    %v1717 = vld [vmem:[#allocation4 + $0x730] sm:$0xff]
    %v1718 = vld [vmem:[#allocation4 + $0x738] sm:$0xff]
    %v1719 = vld [vmem:[#allocation4 + $0x740] sm:$0xff]
    %v1720 = vld [vmem:[#allocation4 + $0x748] sm:$0xff]
    %v1721 = vld [vmem:[#allocation4 + $0x750] sm:$0xff]
    %v1722 = vld [vmem:[#allocation4 + $0x758] sm:$0xff]
    %v1723 = vld [vmem:[#allocation4 + $0x760] sm:$0xff]
    %v1724 = vld [vmem:[#allocation4 + $0x768] sm:$0xff]
    %v1725 = vld [vmem:[#allocation4 + $0x770] sm:$0xff]
    %v1726 = vld [vmem:[#allocation4 + $0x778] sm:$0xff]
    %v1727 = vld [vmem:[#allocation4 + $0x780] sm:$0xff]
    %v1728 = vld [vmem:[#allocation4 + $0x788] sm:$0xff]
    %v1729 = vld [vmem:[#allocation4 + $0x790] sm:$0xff]
    %v1730 = vld [vmem:[#allocation4 + $0x798] sm:$0xff]
    %v1731 = vld [vmem:[#allocation4 + $0x7a0] sm:$0xff]
    %v1732 = vld [vmem:[#allocation4 + $0x7a8] sm:$0xff]
    %v1733 = vld [vmem:[#allocation4 + $0x7b0] sm:$0xff]
    %v1734 = vld [vmem:[#allocation4 + $0x7b8] sm:$0xff]
    %v1735 = vld [vmem:[#allocation4 + $0x7c0] sm:$0xff]
    %v1736 = vld [vmem:[#allocation4 + $0x7c8] sm:$0xff]
    %v1737 = vld [vmem:[#allocation4 + $0x7d0] sm:$0xff]
    %v1738 = vld [vmem:[#allocation4 + $0x7d8] sm:$0xff]
    %v1739 = vld [vmem:[#allocation4 + $0x7e0] sm:$0xff]
    %v1740 = vld [vmem:[#allocation4 + $0x7e8] sm:$0xff]
    %v1741 = vld [vmem:[#allocation4 + $0x7f0] sm:$0xff]
    %v1742 = vld [vmem:[#allocation4 + $0x7f8] sm:$0xff]
    %v1743 = vld [vmem:[%s6] sm:$0xf]
    %v1745 = vlaneseq
    %v1746 = vshrl.u32 %v1745, 7
    %v1747 = vsub.s32 0, %v1746
    %v1748 = vrot.slane %v1743, %v1747
    %v1749 = vlaneseq
    %v1750 = vshrl.u32 %v1749, 7
    %v1751 = vsub.s32 1, %v1750
    %v1752 = vrot.slane %v1743, %v1751
    %v1753 = vlaneseq
    %v1754 = vshrl.u32 %v1753, 7
    %v1755 = vsub.s32 2, %v1754
    %v1756 = vrot.slane %v1743, %v1755
    %v1757 = vlaneseq
    %v1758 = vshrl.u32 %v1757, 7
    %v1759 = vsub.s32 3, %v1758
    %v1760 = vrot.slane %v1743, %v1759
    %v2021 = vunpack.c.l.b16 %v1487
    %v2022 = vunpack.c.h.b16 %v1487
    %v2023 = vunpack.c.l.b16 %v1488
    %v2024 = vunpack.c.h.b16 %v1488
    %v2025 = vunpack.c.l.b16 %v1489
    %v2026 = vunpack.c.h.b16 %v1489
    %v2027 = vunpack.c.l.b16 %v1490
    %v2028 = vunpack.c.h.b16 %v1490
    %v2029 = vunpack.c.l.b16 %v1491
    %v2030 = vunpack.c.h.b16 %v1491
    %v2031 = vunpack.c.l.b16 %v1492
    %v2032 = vunpack.c.h.b16 %v1492
    %v2033 = vunpack.c.l.b16 %v1493
    %v2034 = vunpack.c.h.b16 %v1493
    %v2035 = vunpack.c.l.b16 %v1494
    %v2036 = vunpack.c.h.b16 %v1494
    %v2037 = vunpack.c.l.b16 %v1495
    %v2038 = vunpack.c.h.b16 %v1495
    %v2039 = vunpack.c.l.b16 %v1496
    %v2040 = vunpack.c.h.b16 %v1496
    %v2041 = vunpack.c.l.b16 %v1497
    %v2042 = vunpack.c.h.b16 %v1497
    %v2043 = vunpack.c.l.b16 %v1498
    %v2044 = vunpack.c.h.b16 %v1498
    %v2045 = vunpack.c.l.b16 %v1499
    %v2046 = vunpack.c.h.b16 %v1499
    %v2047 = vunpack.c.l.b16 %v1500
    %v2048 = vunpack.c.h.b16 %v1500
    %v2049 = vunpack.c.l.b16 %v1501
    %v2050 = vunpack.c.h.b16 %v1501
    %v2051 = vunpack.c.l.b16 %v1502
    %v2052 = vunpack.c.h.b16 %v1502
    %v2053 = vunpack.c.l.b16 %v1503
    %v2054 = vunpack.c.h.b16 %v1503
    %v2055 = vunpack.c.l.b16 %v1504
    %v2056 = vunpack.c.h.b16 %v1504
    %v2057 = vunpack.c.l.b16 %v1505
    %v2058 = vunpack.c.h.b16 %v1505
    %v2059 = vunpack.c.l.b16 %v1506
    %v2060 = vunpack.c.h.b16 %v1506
    %v2061 = vunpack.c.l.b16 %v1507
    %v2062 = vunpack.c.h.b16 %v1507
    %v2063 = vunpack.c.l.b16 %v1508
    %v2064 = vunpack.c.h.b16 %v1508
    %v2065 = vunpack.c.l.b16 %v1509
    %v2066 = vunpack.c.h.b16 %v1509
    %v2067 = vunpack.c.l.b16 %v1510
    %v2068 = vunpack.c.h.b16 %v1510
    %v2069 = vunpack.c.l.b16 %v1511
    %v2070 = vunpack.c.h.b16 %v1511
    %v2071 = vunpack.c.l.b16 %v1512
    %v2072 = vunpack.c.h.b16 %v1512
    %v2073 = vunpack.c.l.b16 %v1513
    %v2074 = vunpack.c.h.b16 %v1513
    %v2075 = vunpack.c.l.b16 %v1514
    %v2076 = vunpack.c.h.b16 %v1514
    %v2077 = vunpack.c.l.b16 %v1515
    %v2078 = vunpack.c.h.b16 %v1515
    %v2079 = vunpack.c.l.b16 %v1516
    %v2080 = vunpack.c.h.b16 %v1516
    %v2081 = vunpack.c.l.b16 %v1517
    %v2082 = vunpack.c.h.b16 %v1517
    %v2083 = vunpack.c.l.b16 %v1518
    %v2084 = vunpack.c.h.b16 %v1518
    %v2085 = vunpack.c.l.b16 %v1519
    %v2086 = vunpack.c.h.b16 %v1519
    %v2087 = vunpack.c.l.b16 %v1520
    %v2088 = vunpack.c.h.b16 %v1520
    %v2089 = vunpack.c.l.b16 %v1521
    %v2090 = vunpack.c.h.b16 %v1521
    %v2091 = vunpack.c.l.b16 %v1522
    %v2092 = vunpack.c.h.b16 %v1522
    %v2093 = vunpack.c.l.b16 %v1523
    %v2094 = vunpack.c.h.b16 %v1523
    %v2095 = vunpack.c.l.b16 %v1524
    %v2096 = vunpack.c.h.b16 %v1524
    %v2097 = vunpack.c.l.b16 %v1525
    %v2098 = vunpack.c.h.b16 %v1525
    %v2099 = vunpack.c.l.b16 %v1526
    %v2100 = vunpack.c.h.b16 %v1526
    %v2101 = vunpack.c.l.b16 %v1527
    %v2102 = vunpack.c.h.b16 %v1527
    %v2103 = vunpack.c.l.b16 %v1528
    %v2104 = vunpack.c.h.b16 %v1528
    %v2105 = vunpack.c.l.b16 %v1529
    %v2106 = vunpack.c.h.b16 %v1529
    %v2107 = vunpack.c.l.b16 %v1530
    %v2108 = vunpack.c.h.b16 %v1530
    %v2109 = vunpack.c.l.b16 %v1531
    %v2110 = vunpack.c.h.b16 %v1531
    %v2111 = vunpack.c.l.b16 %v1532
    %v2112 = vunpack.c.h.b16 %v1532
    %v2113 = vunpack.c.l.b16 %v1533
    %v2114 = vunpack.c.h.b16 %v1533
    %v2115 = vunpack.c.l.b16 %v1534
    %v2116 = vunpack.c.h.b16 %v1534
    %v2117 = vunpack.c.l.b16 %v1535
    %v2118 = vunpack.c.h.b16 %v1535
    %v2119 = vunpack.c.l.b16 %v1536
    %v2120 = vunpack.c.h.b16 %v1536
    %v2121 = vunpack.c.l.b16 %v1537
    %v2122 = vunpack.c.h.b16 %v1537
    %v2123 = vunpack.c.l.b16 %v1538
    %v2124 = vunpack.c.h.b16 %v1538
    %v2125 = vunpack.c.l.b16 %v1539
    %v2126 = vunpack.c.h.b16 %v1539
    %v2127 = vunpack.c.l.b16 %v1540
    %v2128 = vunpack.c.h.b16 %v1540
    %v2129 = vunpack.c.l.b16 %v1541
    %v2130 = vunpack.c.h.b16 %v1541
    %v2131 = vunpack.c.l.b16 %v1542
    %v2132 = vunpack.c.h.b16 %v1542
    %v2133 = vunpack.c.l.b16 %v1543
    %v2134 = vunpack.c.h.b16 %v1543
    %v2135 = vunpack.c.l.b16 %v1544
    %v2136 = vunpack.c.h.b16 %v1544
    %v2137 = vunpack.c.l.b16 %v1545
    %v2138 = vunpack.c.h.b16 %v1545
    %v2139 = vunpack.c.l.b16 %v1546
    %v2140 = vunpack.c.h.b16 %v1546
    %v2141 = vunpack.c.l.b16 %v1547
    %v2142 = vunpack.c.h.b16 %v1547
    %v2143 = vunpack.c.l.b16 %v1548
    %v2144 = vunpack.c.h.b16 %v1548
    %v2145 = vunpack.c.l.b16 %v1549
    %v2146 = vunpack.c.h.b16 %v1549
    %v2147 = vunpack.c.l.b16 %v1550
    %v2148 = vunpack.c.h.b16 %v1550
    %v2149 = vunpack.c.l.b16 %v1551
    %v2150 = vunpack.c.h.b16 %v1551
    %v2151 = vunpack.c.l.b16 %v1552
    %v2152 = vunpack.c.h.b16 %v1552
    %v2153 = vunpack.c.l.b16 %v1553
    %v2154 = vunpack.c.h.b16 %v1553
    %v2155 = vunpack.c.l.b16 %v1554
    %v2156 = vunpack.c.h.b16 %v1554
    %v2157 = vunpack.c.l.b16 %v1555
    %v2158 = vunpack.c.h.b16 %v1555
    %v2159 = vunpack.c.l.b16 %v1556
    %v2160 = vunpack.c.h.b16 %v1556
    %v2161 = vunpack.c.l.b16 %v1557
    %v2162 = vunpack.c.h.b16 %v1557
    %v2163 = vunpack.c.l.b16 %v1558
    %v2164 = vunpack.c.h.b16 %v1558
    %v2165 = vunpack.c.l.b16 %v1559
    %v2166 = vunpack.c.h.b16 %v1559
    %v2167 = vunpack.c.l.b16 %v1560
    %v2168 = vunpack.c.h.b16 %v1560
    %v2169 = vunpack.c.l.b16 %v1561
    %v2170 = vunpack.c.h.b16 %v1561
    %v2171 = vunpack.c.l.b16 %v1562
    %v2172 = vunpack.c.h.b16 %v1562
    %v2173 = vunpack.c.l.b16 %v1563
    %v2174 = vunpack.c.h.b16 %v1563
    %v2175 = vunpack.c.l.b16 %v1564
    %v2176 = vunpack.c.h.b16 %v1564
    %v2177 = vunpack.c.l.b16 %v1565
    %v2178 = vunpack.c.h.b16 %v1565
    %v2179 = vunpack.c.l.b16 %v1566
    %v2180 = vunpack.c.h.b16 %v1566
    %v2181 = vunpack.c.l.b16 %v1567
    %v2182 = vunpack.c.h.b16 %v1567
    %v2183 = vunpack.c.l.b16 %v1568
    %v2184 = vunpack.c.h.b16 %v1568
    %v2185 = vunpack.c.l.b16 %v1569
    %v2186 = vunpack.c.h.b16 %v1569
    %v2187 = vunpack.c.l.b16 %v1570
    %v2188 = vunpack.c.h.b16 %v1570
    %v2189 = vunpack.c.l.b16 %v1571
    %v2190 = vunpack.c.h.b16 %v1571
    %v2191 = vunpack.c.l.b16 %v1572
    %v2192 = vunpack.c.h.b16 %v1572
    %v2193 = vunpack.c.l.b16 %v1573
    %v2194 = vunpack.c.h.b16 %v1573
    %v2195 = vunpack.c.l.b16 %v1574
    %v2196 = vunpack.c.h.b16 %v1574
    %v2197 = vunpack.c.l.b16 %v1575
    %v2198 = vunpack.c.h.b16 %v1575
    %v2199 = vunpack.c.l.b16 %v1576
    %v2200 = vunpack.c.h.b16 %v1576
    %v2201 = vunpack.c.l.b16 %v1577
    %v2202 = vunpack.c.h.b16 %v1577
    %v2203 = vunpack.c.l.b16 %v1578
    %v2204 = vunpack.c.h.b16 %v1578
    %v2205 = vunpack.c.l.b16 %v1579
    %v2206 = vunpack.c.h.b16 %v1579
    %v2207 = vunpack.c.l.b16 %v1580
    %v2208 = vunpack.c.h.b16 %v1580
    %v2209 = vunpack.c.l.b16 %v1581
    %v2210 = vunpack.c.h.b16 %v1581
    %v2211 = vunpack.c.l.b16 %v1582
    %v2212 = vunpack.c.h.b16 %v1582
    %v2213 = vunpack.c.l.b16 %v1583
    %v2214 = vunpack.c.h.b16 %v1583
    %v2215 = vunpack.c.l.b16 %v1584
    %v2216 = vunpack.c.h.b16 %v1584
    %v2217 = vunpack.c.l.b16 %v1585
    %v2218 = vunpack.c.h.b16 %v1585
    %v2219 = vunpack.c.l.b16 %v1586
    %v2220 = vunpack.c.h.b16 %v1586
    %v2221 = vunpack.c.l.b16 %v1587
    %v2222 = vunpack.c.h.b16 %v1587
    %v2223 = vunpack.c.l.b16 %v1588
    %v2224 = vunpack.c.h.b16 %v1588
    %v2225 = vunpack.c.l.b16 %v1589
    %v2226 = vunpack.c.h.b16 %v1589
    %v2227 = vunpack.c.l.b16 %v1590
    %v2228 = vunpack.c.h.b16 %v1590
    %v2229 = vunpack.c.l.b16 %v1591
    %v2230 = vunpack.c.h.b16 %v1591
    %v2231 = vunpack.c.l.b16 %v1592
    %v2232 = vunpack.c.h.b16 %v1592
    %v2233 = vunpack.c.l.b16 %v1593
    %v2234 = vunpack.c.h.b16 %v1593
    %v2235 = vunpack.c.l.b16 %v1594
    %v2236 = vunpack.c.h.b16 %v1594
    %v2237 = vunpack.c.l.b16 %v1595
    %v2238 = vunpack.c.h.b16 %v1595
    %v2239 = vunpack.c.l.b16 %v1596
    %v2240 = vunpack.c.h.b16 %v1596
    %v2241 = vunpack.c.l.b16 %v1597
    %v2242 = vunpack.c.h.b16 %v1597
    %v2243 = vunpack.c.l.b16 %v1598
    %v2244 = vunpack.c.h.b16 %v1598
    %v2245 = vunpack.c.l.b16 %v1599
    %v2246 = vunpack.c.h.b16 %v1599
    %v2247 = vunpack.c.l.b16 %v1600
    %v2248 = vunpack.c.h.b16 %v1600
    %v2249 = vunpack.c.l.b16 %v1601
    %v2250 = vunpack.c.h.b16 %v1601
    %v2251 = vunpack.c.l.b16 %v1602
    %v2252 = vunpack.c.h.b16 %v1602
    %v2253 = vunpack.c.l.b16 %v1603
    %v2254 = vunpack.c.h.b16 %v1603
    %v2255 = vunpack.c.l.b16 %v1604
    %v2256 = vunpack.c.h.b16 %v1604
    %v2257 = vunpack.c.l.b16 %v1605
    %v2258 = vunpack.c.h.b16 %v1605
    %v2259 = vunpack.c.l.b16 %v1606
    %v2260 = vunpack.c.h.b16 %v1606
    %v2261 = vunpack.c.l.b16 %v1607
    %v2262 = vunpack.c.h.b16 %v1607
    %v2263 = vunpack.c.l.b16 %v1608
    %v2264 = vunpack.c.h.b16 %v1608
    %v2265 = vunpack.c.l.b16 %v1609
    %v2266 = vunpack.c.h.b16 %v1609
    %v2267 = vunpack.c.l.b16 %v1610
    %v2268 = vunpack.c.h.b16 %v1610
    %v2269 = vunpack.c.l.b16 %v1611
    %v2270 = vunpack.c.h.b16 %v1611
    %v2271 = vunpack.c.l.b16 %v1612
    %v2272 = vunpack.c.h.b16 %v1612
    %v2273 = vunpack.c.l.b16 %v1613
    %v2274 = vunpack.c.h.b16 %v1613
    %v2275 = vunpack.c.l.b16 %v1614
    %v2276 = vunpack.c.h.b16 %v1614
    %v2277 = vunpack.c.l.b16 %v1615
    %v2278 = vunpack.c.h.b16 %v1615
    %v2279 = vunpack.c.l.b16 %v1616
    %v2280 = vunpack.c.h.b16 %v1616
    %v2281 = vunpack.c.l.b16 %v1617
    %v2282 = vunpack.c.h.b16 %v1617
    %v2283 = vunpack.c.l.b16 %v1618
    %v2284 = vunpack.c.h.b16 %v1618
    %v2285 = vunpack.c.l.b16 %v1619
    %v2286 = vunpack.c.h.b16 %v1619
    %v2287 = vunpack.c.l.b16 %v1620
    %v2288 = vunpack.c.h.b16 %v1620
    %v2289 = vunpack.c.l.b16 %v1621
    %v2290 = vunpack.c.h.b16 %v1621
    %v2291 = vunpack.c.l.b16 %v1622
    %v2292 = vunpack.c.h.b16 %v1622
    %v2293 = vunpack.c.l.b16 %v1623
    %v2294 = vunpack.c.h.b16 %v1623
    %v2295 = vunpack.c.l.b16 %v1624
    %v2296 = vunpack.c.h.b16 %v1624
    %v2297 = vunpack.c.l.b16 %v1625
    %v2298 = vunpack.c.h.b16 %v1625
    %v2299 = vunpack.c.l.b16 %v1626
    %v2300 = vunpack.c.h.b16 %v1626
    %v2301 = vunpack.c.l.b16 %v1627
    %v2302 = vunpack.c.h.b16 %v1627
    %v2303 = vunpack.c.l.b16 %v1628
    %v2304 = vunpack.c.h.b16 %v1628
    %v2305 = vunpack.c.l.b16 %v1629
    %v2306 = vunpack.c.h.b16 %v1629
    %v2307 = vunpack.c.l.b16 %v1630
    %v2308 = vunpack.c.h.b16 %v1630
    %v2309 = vunpack.c.l.b16 %v1631
    %v2310 = vunpack.c.h.b16 %v1631
    %v2311 = vunpack.c.l.b16 %v1632
    %v2312 = vunpack.c.h.b16 %v1632
    %v2313 = vunpack.c.l.b16 %v1633
    %v2314 = vunpack.c.h.b16 %v1633
    %v2315 = vunpack.c.l.b16 %v1634
    %v2316 = vunpack.c.h.b16 %v1634
    %v2317 = vunpack.c.l.b16 %v1635
    %v2318 = vunpack.c.h.b16 %v1635
    %v2319 = vunpack.c.l.b16 %v1636
    %v2320 = vunpack.c.h.b16 %v1636
    %v2321 = vunpack.c.l.b16 %v1637
    %v2322 = vunpack.c.h.b16 %v1637
    %v2323 = vunpack.c.l.b16 %v1638
    %v2324 = vunpack.c.h.b16 %v1638
    %v2325 = vunpack.c.l.b16 %v1639
    %v2326 = vunpack.c.h.b16 %v1639
    %v2327 = vunpack.c.l.b16 %v1640
    %v2328 = vunpack.c.h.b16 %v1640
    %v2329 = vunpack.c.l.b16 %v1641
    %v2330 = vunpack.c.h.b16 %v1641
    %v2331 = vunpack.c.l.b16 %v1642
    %v2332 = vunpack.c.h.b16 %v1642
    %v2333 = vunpack.c.l.b16 %v1643
    %v2334 = vunpack.c.h.b16 %v1643
    %v2335 = vunpack.c.l.b16 %v1644
    %v2336 = vunpack.c.h.b16 %v1644
    %v2337 = vunpack.c.l.b16 %v1645
    %v2338 = vunpack.c.h.b16 %v1645
    %v2339 = vunpack.c.l.b16 %v1646
    %v2340 = vunpack.c.h.b16 %v1646
    %v2341 = vunpack.c.l.b16 %v1647
    %v2342 = vunpack.c.h.b16 %v1647
    %v2343 = vunpack.c.l.b16 %v1648
    %v2344 = vunpack.c.h.b16 %v1648
    %v2345 = vunpack.c.l.b16 %v1649
    %v2346 = vunpack.c.h.b16 %v1649
    %v2347 = vunpack.c.l.b16 %v1650
    %v2348 = vunpack.c.h.b16 %v1650
    %v2349 = vunpack.c.l.b16 %v1651
    %v2350 = vunpack.c.h.b16 %v1651
    %v2351 = vunpack.c.l.b16 %v1652
    %v2352 = vunpack.c.h.b16 %v1652
    %v2353 = vunpack.c.l.b16 %v1653
    %v2354 = vunpack.c.h.b16 %v1653
    %v2355 = vunpack.c.l.b16 %v1654
    %v2356 = vunpack.c.h.b16 %v1654
    %v2357 = vunpack.c.l.b16 %v1655
    %v2358 = vunpack.c.h.b16 %v1655
    %v2359 = vunpack.c.l.b16 %v1656
    %v2360 = vunpack.c.h.b16 %v1656
    %v2361 = vunpack.c.l.b16 %v1657
    %v2362 = vunpack.c.h.b16 %v1657
    %v2363 = vunpack.c.l.b16 %v1658
    %v2364 = vunpack.c.h.b16 %v1658
    %v2365 = vunpack.c.l.b16 %v1659
    %v2366 = vunpack.c.h.b16 %v1659
    %v2367 = vunpack.c.l.b16 %v1660
    %v2368 = vunpack.c.h.b16 %v1660
    %v2369 = vunpack.c.l.b16 %v1661
    %v2370 = vunpack.c.h.b16 %v1661
    %v2371 = vunpack.c.l.b16 %v1662
    %v2372 = vunpack.c.h.b16 %v1662
    %v2373 = vunpack.c.l.b16 %v1663
    %v2374 = vunpack.c.h.b16 %v1663
    %v2375 = vunpack.c.l.b16 %v1664
    %v2376 = vunpack.c.h.b16 %v1664
    %v2377 = vunpack.c.l.b16 %v1665
    %v2378 = vunpack.c.h.b16 %v1665
    %v2379 = vunpack.c.l.b16 %v1666
    %v2380 = vunpack.c.h.b16 %v1666
    %v2381 = vunpack.c.l.b16 %v1667
    %v2382 = vunpack.c.h.b16 %v1667
    %v2383 = vunpack.c.l.b16 %v1668
    %v2384 = vunpack.c.h.b16 %v1668
    %v2385 = vunpack.c.l.b16 %v1669
    %v2386 = vunpack.c.h.b16 %v1669
    %v2387 = vunpack.c.l.b16 %v1670
    %v2388 = vunpack.c.h.b16 %v1670
    %v2389 = vunpack.c.l.b16 %v1671
    %v2390 = vunpack.c.h.b16 %v1671
    %v2391 = vunpack.c.l.b16 %v1672
    %v2392 = vunpack.c.h.b16 %v1672
    %v2393 = vunpack.c.l.b16 %v1673
    %v2394 = vunpack.c.h.b16 %v1673
    %v2395 = vunpack.c.l.b16 %v1674
    %v2396 = vunpack.c.h.b16 %v1674
    %v2397 = vunpack.c.l.b16 %v1675
    %v2398 = vunpack.c.h.b16 %v1675
    %v2399 = vunpack.c.l.b16 %v1676
    %v2400 = vunpack.c.h.b16 %v1676
    %v2401 = vunpack.c.l.b16 %v1677
    %v2402 = vunpack.c.h.b16 %v1677
    %v2403 = vunpack.c.l.b16 %v1678
    %v2404 = vunpack.c.h.b16 %v1678
    %v2405 = vunpack.c.l.b16 %v1679
    %v2406 = vunpack.c.h.b16 %v1679
    %v2407 = vunpack.c.l.b16 %v1680
    %v2408 = vunpack.c.h.b16 %v1680
    %v2409 = vunpack.c.l.b16 %v1681
    %v2410 = vunpack.c.h.b16 %v1681
    %v2411 = vunpack.c.l.b16 %v1682
    %v2412 = vunpack.c.h.b16 %v1682
    %v2413 = vunpack.c.l.b16 %v1683
    %v2414 = vunpack.c.h.b16 %v1683
    %v2415 = vunpack.c.l.b16 %v1684
    %v2416 = vunpack.c.h.b16 %v1684
    %v2417 = vunpack.c.l.b16 %v1685
    %v2418 = vunpack.c.h.b16 %v1685
    %v2419 = vunpack.c.l.b16 %v1686
    %v2420 = vunpack.c.h.b16 %v1686
    %v2421 = vunpack.c.l.b16 %v1687
    %v2422 = vunpack.c.h.b16 %v1687
    %v2423 = vunpack.c.l.b16 %v1688
    %v2424 = vunpack.c.h.b16 %v1688
    %v2425 = vunpack.c.l.b16 %v1689
    %v2426 = vunpack.c.h.b16 %v1689
    %v2427 = vunpack.c.l.b16 %v1690
    %v2428 = vunpack.c.h.b16 %v1690
    %v2429 = vunpack.c.l.b16 %v1691
    %v2430 = vunpack.c.h.b16 %v1691
    %v2431 = vunpack.c.l.b16 %v1692
    %v2432 = vunpack.c.h.b16 %v1692
    %v2433 = vunpack.c.l.b16 %v1693
    %v2434 = vunpack.c.h.b16 %v1693
    %v2435 = vunpack.c.l.b16 %v1694
    %v2436 = vunpack.c.h.b16 %v1694
    %v2437 = vunpack.c.l.b16 %v1695
    %v2438 = vunpack.c.h.b16 %v1695
    %v2439 = vunpack.c.l.b16 %v1696
    %v2440 = vunpack.c.h.b16 %v1696
    %v2441 = vunpack.c.l.b16 %v1697
    %v2442 = vunpack.c.h.b16 %v1697
    %v2443 = vunpack.c.l.b16 %v1698
    %v2444 = vunpack.c.h.b16 %v1698
    %v2445 = vunpack.c.l.b16 %v1699
    %v2446 = vunpack.c.h.b16 %v1699
    %v2447 = vunpack.c.l.b16 %v1700
    %v2448 = vunpack.c.h.b16 %v1700
    %v2449 = vunpack.c.l.b16 %v1701
    %v2450 = vunpack.c.h.b16 %v1701
    %v2451 = vunpack.c.l.b16 %v1702
    %v2452 = vunpack.c.h.b16 %v1702
    %v2453 = vunpack.c.l.b16 %v1703
    %v2454 = vunpack.c.h.b16 %v1703
    %v2455 = vunpack.c.l.b16 %v1704
    %v2456 = vunpack.c.h.b16 %v1704
    %v2457 = vunpack.c.l.b16 %v1705
    %v2458 = vunpack.c.h.b16 %v1705
    %v2459 = vunpack.c.l.b16 %v1706
    %v2460 = vunpack.c.h.b16 %v1706
    %v2461 = vunpack.c.l.b16 %v1707
    %v2462 = vunpack.c.h.b16 %v1707
    %v2463 = vunpack.c.l.b16 %v1708
    %v2464 = vunpack.c.h.b16 %v1708
    %v2465 = vunpack.c.l.b16 %v1709
    %v2466 = vunpack.c.h.b16 %v1709
    %v2467 = vunpack.c.l.b16 %v1710
    %v2468 = vunpack.c.h.b16 %v1710
    %v2469 = vunpack.c.l.b16 %v1711
    %v2470 = vunpack.c.h.b16 %v1711
    %v2471 = vunpack.c.l.b16 %v1712
    %v2472 = vunpack.c.h.b16 %v1712
    %v2473 = vunpack.c.l.b16 %v1713
    %v2474 = vunpack.c.h.b16 %v1713
    %v2475 = vunpack.c.l.b16 %v1714
    %v2476 = vunpack.c.h.b16 %v1714
    %v2477 = vunpack.c.l.b16 %v1715
    %v2478 = vunpack.c.h.b16 %v1715
    %v2479 = vunpack.c.l.b16 %v1716
    %v2480 = vunpack.c.h.b16 %v1716
    %v2481 = vunpack.c.l.b16 %v1717
    %v2482 = vunpack.c.h.b16 %v1717
    %v2483 = vunpack.c.l.b16 %v1718
    %v2484 = vunpack.c.h.b16 %v1718
    %v2485 = vunpack.c.l.b16 %v1719
    %v2486 = vunpack.c.h.b16 %v1719
    %v2487 = vunpack.c.l.b16 %v1720
    %v2488 = vunpack.c.h.b16 %v1720
    %v2489 = vunpack.c.l.b16 %v1721
    %v2490 = vunpack.c.h.b16 %v1721
    %v2491 = vunpack.c.l.b16 %v1722
    %v2492 = vunpack.c.h.b16 %v1722
    %v2493 = vunpack.c.l.b16 %v1723
    %v2494 = vunpack.c.h.b16 %v1723
    %v2495 = vunpack.c.l.b16 %v1724
    %v2496 = vunpack.c.h.b16 %v1724
    %v2497 = vunpack.c.l.b16 %v1725
    %v2498 = vunpack.c.h.b16 %v1725
    %v2499 = vunpack.c.l.b16 %v1726
    %v2500 = vunpack.c.h.b16 %v1726
    %v2501 = vunpack.c.l.b16 %v1727
    %v2502 = vunpack.c.h.b16 %v1727
    %v2503 = vunpack.c.l.b16 %v1728
    %v2504 = vunpack.c.h.b16 %v1728
    %v2505 = vunpack.c.l.b16 %v1729
    %v2506 = vunpack.c.h.b16 %v1729
    %v2507 = vunpack.c.l.b16 %v1730
    %v2508 = vunpack.c.h.b16 %v1730
    %v2509 = vunpack.c.l.b16 %v1731
    %v2510 = vunpack.c.h.b16 %v1731
    %v2511 = vunpack.c.l.b16 %v1732
    %v2512 = vunpack.c.h.b16 %v1732
    %v2513 = vunpack.c.l.b16 %v1733
    %v2514 = vunpack.c.h.b16 %v1733
    %v2515 = vunpack.c.l.b16 %v1734
    %v2516 = vunpack.c.h.b16 %v1734
    %v2517 = vunpack.c.l.b16 %v1735
    %v2518 = vunpack.c.h.b16 %v1735
    %v2519 = vunpack.c.l.b16 %v1736
    %v2520 = vunpack.c.h.b16 %v1736
    %v2521 = vunpack.c.l.b16 %v1737
    %v2522 = vunpack.c.h.b16 %v1737
    %v2523 = vunpack.c.l.b16 %v1738
    %v2524 = vunpack.c.h.b16 %v1738
    %v2525 = vunpack.c.l.b16 %v1739
    %v2526 = vunpack.c.h.b16 %v1739
    %v2527 = vunpack.c.l.b16 %v1740
    %v2528 = vunpack.c.h.b16 %v1740
    %v2529 = vunpack.c.l.b16 %v1741
    %v2530 = vunpack.c.h.b16 %v1741
    %v2531 = vunpack.c.l.b16 %v1742
    %v2532 = vunpack.c.h.b16 %v1742
    %v2533 = vpack.c.b16 %v2025, %v2021
    %v2534 = vpack.c.b16 %v2026, %v2022
    %v2535 = vpack.c.b16 %v2027, %v2023
    %v2536 = vpack.c.b16 %v2028, %v2024
    %v2537 = vpack.c.b16 %v2033, %v2029
    %v2538 = vpack.c.b16 %v2034, %v2030
    %v2539 = vpack.c.b16 %v2035, %v2031
    %v2540 = vpack.c.b16 %v2036, %v2032
    %v2541 = vpack.c.b16 %v2041, %v2037
    %v2542 = vpack.c.b16 %v2042, %v2038
    %v2543 = vpack.c.b16 %v2043, %v2039
    %v2544 = vpack.c.b16 %v2044, %v2040
    %v2545 = vpack.c.b16 %v2049, %v2045
    %v2546 = vpack.c.b16 %v2050, %v2046
    %v2547 = vpack.c.b16 %v2051, %v2047
    %v2548 = vpack.c.b16 %v2052, %v2048
    %v2549 = vpack.c.b16 %v2057, %v2053
    %v2550 = vpack.c.b16 %v2058, %v2054
    %v2551 = vpack.c.b16 %v2059, %v2055
    %v2552 = vpack.c.b16 %v2060, %v2056
    %v2553 = vpack.c.b16 %v2065, %v2061
    %v2554 = vpack.c.b16 %v2066, %v2062
    %v2555 = vpack.c.b16 %v2067, %v2063
    %v2556 = vpack.c.b16 %v2068, %v2064
    %v2557 = vpack.c.b16 %v2073, %v2069
    %v2558 = vpack.c.b16 %v2074, %v2070
    %v2559 = vpack.c.b16 %v2075, %v2071
    %v2560 = vpack.c.b16 %v2076, %v2072
    %v2561 = vpack.c.b16 %v2081, %v2077
    %v2562 = vpack.c.b16 %v2082, %v2078
    %v2563 = vpack.c.b16 %v2083, %v2079
    %v2564 = vpack.c.b16 %v2084, %v2080
    %v2565 = vpack.c.b16 %v2089, %v2085
    %v2566 = vpack.c.b16 %v2090, %v2086
    %v2567 = vpack.c.b16 %v2091, %v2087
    %v2568 = vpack.c.b16 %v2092, %v2088
    %v2569 = vpack.c.b16 %v2097, %v2093
    %v2570 = vpack.c.b16 %v2098, %v2094
    %v2571 = vpack.c.b16 %v2099, %v2095
    %v2572 = vpack.c.b16 %v2100, %v2096
    %v2573 = vpack.c.b16 %v2105, %v2101
    %v2574 = vpack.c.b16 %v2106, %v2102
    %v2575 = vpack.c.b16 %v2107, %v2103
    %v2576 = vpack.c.b16 %v2108, %v2104
    %v2577 = vpack.c.b16 %v2113, %v2109
    %v2578 = vpack.c.b16 %v2114, %v2110
    %v2579 = vpack.c.b16 %v2115, %v2111
    %v2580 = vpack.c.b16 %v2116, %v2112
    %v2581 = vpack.c.b16 %v2121, %v2117
    %v2582 = vpack.c.b16 %v2122, %v2118
    %v2583 = vpack.c.b16 %v2123, %v2119
    %v2584 = vpack.c.b16 %v2124, %v2120
    %v2585 = vpack.c.b16 %v2129, %v2125
    %v2586 = vpack.c.b16 %v2130, %v2126
    %v2587 = vpack.c.b16 %v2131, %v2127
    %v2588 = vpack.c.b16 %v2132, %v2128
    %v2589 = vpack.c.b16 %v2137, %v2133
    %v2590 = vpack.c.b16 %v2138, %v2134
    %v2591 = vpack.c.b16 %v2139, %v2135
    %v2592 = vpack.c.b16 %v2140, %v2136
    %v2593 = vpack.c.b16 %v2145, %v2141
    %v2594 = vpack.c.b16 %v2146, %v2142
    %v2595 = vpack.c.b16 %v2147, %v2143
    %v2596 = vpack.c.b16 %v2148, %v2144
    %v2597 = vpack.c.b16 %v2153, %v2149
    %v2598 = vpack.c.b16 %v2154, %v2150
    %v2599 = vpack.c.b16 %v2155, %v2151
    %v2600 = vpack.c.b16 %v2156, %v2152
    %v2601 = vpack.c.b16 %v2161, %v2157
    %v2602 = vpack.c.b16 %v2162, %v2158
    %v2603 = vpack.c.b16 %v2163, %v2159
    %v2604 = vpack.c.b16 %v2164, %v2160
    %v2605 = vpack.c.b16 %v2169, %v2165
    %v2606 = vpack.c.b16 %v2170, %v2166
    %v2607 = vpack.c.b16 %v2171, %v2167
    %v2608 = vpack.c.b16 %v2172, %v2168
    %v2609 = vpack.c.b16 %v2177, %v2173
    %v2610 = vpack.c.b16 %v2178, %v2174
    %v2611 = vpack.c.b16 %v2179, %v2175
    %v2612 = vpack.c.b16 %v2180, %v2176
    %v2613 = vpack.c.b16 %v2185, %v2181
    %v2614 = vpack.c.b16 %v2186, %v2182
    %v2615 = vpack.c.b16 %v2187, %v2183
    %v2616 = vpack.c.b16 %v2188, %v2184
    %v2617 = vpack.c.b16 %v2193, %v2189
    %v2618 = vpack.c.b16 %v2194, %v2190
    %v2619 = vpack.c.b16 %v2195, %v2191
    %v2620 = vpack.c.b16 %v2196, %v2192
    %v2621 = vpack.c.b16 %v2201, %v2197
    %v2622 = vpack.c.b16 %v2202, %v2198
    %v2623 = vpack.c.b16 %v2203, %v2199
    %v2624 = vpack.c.b16 %v2204, %v2200
    %v2625 = vpack.c.b16 %v2209, %v2205
    %v2626 = vpack.c.b16 %v2210, %v2206
    %v2627 = vpack.c.b16 %v2211, %v2207
    %v2628 = vpack.c.b16 %v2212, %v2208
    %v2629 = vpack.c.b16 %v2217, %v2213
    %v2630 = vpack.c.b16 %v2218, %v2214
    %v2631 = vpack.c.b16 %v2219, %v2215
    %v2632 = vpack.c.b16 %v2220, %v2216
    %v2633 = vpack.c.b16 %v2225, %v2221
    %v2634 = vpack.c.b16 %v2226, %v2222
    %v2635 = vpack.c.b16 %v2227, %v2223
    %v2636 = vpack.c.b16 %v2228, %v2224
    %v2637 = vpack.c.b16 %v2233, %v2229
    %v2638 = vpack.c.b16 %v2234, %v2230
    %v2639 = vpack.c.b16 %v2235, %v2231
    %v2640 = vpack.c.b16 %v2236, %v2232
    %v2641 = vpack.c.b16 %v2241, %v2237
    %v2642 = vpack.c.b16 %v2242, %v2238
    %v2643 = vpack.c.b16 %v2243, %v2239
    %v2644 = vpack.c.b16 %v2244, %v2240
    %v2645 = vpack.c.b16 %v2249, %v2245
    %v2646 = vpack.c.b16 %v2250, %v2246
    %v2647 = vpack.c.b16 %v2251, %v2247
    %v2648 = vpack.c.b16 %v2252, %v2248
    %v2649 = vpack.c.b16 %v2257, %v2253
    %v2650 = vpack.c.b16 %v2258, %v2254
    %v2651 = vpack.c.b16 %v2259, %v2255
    %v2652 = vpack.c.b16 %v2260, %v2256
    %v2653 = vpack.c.b16 %v2265, %v2261
    %v2654 = vpack.c.b16 %v2266, %v2262
    %v2655 = vpack.c.b16 %v2267, %v2263
    %v2656 = vpack.c.b16 %v2268, %v2264
    %v2657 = vpack.c.b16 %v2273, %v2269
    %v2658 = vpack.c.b16 %v2274, %v2270
    %v2659 = vpack.c.b16 %v2275, %v2271
    %v2660 = vpack.c.b16 %v2276, %v2272
    %v2661 = vpack.c.b16 %v2281, %v2277
    %v2662 = vpack.c.b16 %v2282, %v2278
    %v2663 = vpack.c.b16 %v2283, %v2279
    %v2664 = vpack.c.b16 %v2284, %v2280
    %v2665 = vpack.c.b16 %v2289, %v2285
    %v2666 = vpack.c.b16 %v2290, %v2286
    %v2667 = vpack.c.b16 %v2291, %v2287
    %v2668 = vpack.c.b16 %v2292, %v2288
    %v2669 = vpack.c.b16 %v2297, %v2293
    %v2670 = vpack.c.b16 %v2298, %v2294
    %v2671 = vpack.c.b16 %v2299, %v2295
    %v2672 = vpack.c.b16 %v2300, %v2296
    %v2673 = vpack.c.b16 %v2305, %v2301
    %v2674 = vpack.c.b16 %v2306, %v2302
    %v2675 = vpack.c.b16 %v2307, %v2303
    %v2676 = vpack.c.b16 %v2308, %v2304
    %v2677 = vpack.c.b16 %v2313, %v2309
    %v2678 = vpack.c.b16 %v2314, %v2310
    %v2679 = vpack.c.b16 %v2315, %v2311
    %v2680 = vpack.c.b16 %v2316, %v2312
    %v2681 = vpack.c.b16 %v2321, %v2317
    %v2682 = vpack.c.b16 %v2322, %v2318
    %v2683 = vpack.c.b16 %v2323, %v2319
    %v2684 = vpack.c.b16 %v2324, %v2320
    %v2685 = vpack.c.b16 %v2329, %v2325
    %v2686 = vpack.c.b16 %v2330, %v2326
    %v2687 = vpack.c.b16 %v2331, %v2327
    %v2688 = vpack.c.b16 %v2332, %v2328
    %v2689 = vpack.c.b16 %v2337, %v2333
    %v2690 = vpack.c.b16 %v2338, %v2334
    %v2691 = vpack.c.b16 %v2339, %v2335
    %v2692 = vpack.c.b16 %v2340, %v2336
    %v2693 = vpack.c.b16 %v2345, %v2341
    %v2694 = vpack.c.b16 %v2346, %v2342
    %v2695 = vpack.c.b16 %v2347, %v2343
    %v2696 = vpack.c.b16 %v2348, %v2344
    %v2697 = vpack.c.b16 %v2353, %v2349
    %v2698 = vpack.c.b16 %v2354, %v2350
    %v2699 = vpack.c.b16 %v2355, %v2351
    %v2700 = vpack.c.b16 %v2356, %v2352
    %v2701 = vpack.c.b16 %v2361, %v2357
    %v2702 = vpack.c.b16 %v2362, %v2358
    %v2703 = vpack.c.b16 %v2363, %v2359
    %v2704 = vpack.c.b16 %v2364, %v2360
    %v2705 = vpack.c.b16 %v2369, %v2365
    %v2706 = vpack.c.b16 %v2370, %v2366
    %v2707 = vpack.c.b16 %v2371, %v2367
    %v2708 = vpack.c.b16 %v2372, %v2368
    %v2709 = vpack.c.b16 %v2377, %v2373
    %v2710 = vpack.c.b16 %v2378, %v2374
    %v2711 = vpack.c.b16 %v2379, %v2375
    %v2712 = vpack.c.b16 %v2380, %v2376
    %v2713 = vpack.c.b16 %v2385, %v2381
    %v2714 = vpack.c.b16 %v2386, %v2382
    %v2715 = vpack.c.b16 %v2387, %v2383
    %v2716 = vpack.c.b16 %v2388, %v2384
    %v2717 = vpack.c.b16 %v2393, %v2389
    %v2718 = vpack.c.b16 %v2394, %v2390
    %v2719 = vpack.c.b16 %v2395, %v2391
    %v2720 = vpack.c.b16 %v2396, %v2392
    %v2721 = vpack.c.b16 %v2401, %v2397
    %v2722 = vpack.c.b16 %v2402, %v2398
    %v2723 = vpack.c.b16 %v2403, %v2399
    %v2724 = vpack.c.b16 %v2404, %v2400
    %v2725 = vpack.c.b16 %v2409, %v2405
    %v2726 = vpack.c.b16 %v2410, %v2406
    %v2727 = vpack.c.b16 %v2411, %v2407
    %v2728 = vpack.c.b16 %v2412, %v2408
    %v2729 = vpack.c.b16 %v2417, %v2413
    %v2730 = vpack.c.b16 %v2418, %v2414
    %v2731 = vpack.c.b16 %v2419, %v2415
    %v2732 = vpack.c.b16 %v2420, %v2416
    %v2733 = vpack.c.b16 %v2425, %v2421
    %v2734 = vpack.c.b16 %v2426, %v2422
    %v2735 = vpack.c.b16 %v2427, %v2423
    %v2736 = vpack.c.b16 %v2428, %v2424
    %v2737 = vpack.c.b16 %v2433, %v2429
    %v2738 = vpack.c.b16 %v2434, %v2430
    %v2739 = vpack.c.b16 %v2435, %v2431
    %v2740 = vpack.c.b16 %v2436, %v2432
    %v2741 = vpack.c.b16 %v2441, %v2437
    %v2742 = vpack.c.b16 %v2442, %v2438
    %v2743 = vpack.c.b16 %v2443, %v2439
    %v2744 = vpack.c.b16 %v2444, %v2440
    %v2745 = vpack.c.b16 %v2449, %v2445
    %v2746 = vpack.c.b16 %v2450, %v2446
    %v2747 = vpack.c.b16 %v2451, %v2447
    %v2748 = vpack.c.b16 %v2452, %v2448
    %v2749 = vpack.c.b16 %v2457, %v2453
    %v2750 = vpack.c.b16 %v2458, %v2454
    %v2751 = vpack.c.b16 %v2459, %v2455
    %v2752 = vpack.c.b16 %v2460, %v2456
    %v2753 = vpack.c.b16 %v2465, %v2461
    %v2754 = vpack.c.b16 %v2466, %v2462
    %v2755 = vpack.c.b16 %v2467, %v2463
    %v2756 = vpack.c.b16 %v2468, %v2464
    %v2757 = vpack.c.b16 %v2473, %v2469
    %v2758 = vpack.c.b16 %v2474, %v2470
    %v2759 = vpack.c.b16 %v2475, %v2471
    %v2760 = vpack.c.b16 %v2476, %v2472
    %v2761 = vpack.c.b16 %v2481, %v2477
    %v2762 = vpack.c.b16 %v2482, %v2478
    %v2763 = vpack.c.b16 %v2483, %v2479
    %v2764 = vpack.c.b16 %v2484, %v2480
    %v2765 = vpack.c.b16 %v2489, %v2485
    %v2766 = vpack.c.b16 %v2490, %v2486
    %v2767 = vpack.c.b16 %v2491, %v2487
    %v2768 = vpack.c.b16 %v2492, %v2488
    %v2769 = vpack.c.b16 %v2497, %v2493
    %v2770 = vpack.c.b16 %v2498, %v2494
    %v2771 = vpack.c.b16 %v2499, %v2495
    %v2772 = vpack.c.b16 %v2500, %v2496
    %v2773 = vpack.c.b16 %v2505, %v2501
    %v2774 = vpack.c.b16 %v2506, %v2502
    %v2775 = vpack.c.b16 %v2507, %v2503
    %v2776 = vpack.c.b16 %v2508, %v2504
    %v2777 = vpack.c.b16 %v2513, %v2509
    %v2778 = vpack.c.b16 %v2514, %v2510
    %v2779 = vpack.c.b16 %v2515, %v2511
    %v2780 = vpack.c.b16 %v2516, %v2512
    %v2781 = vpack.c.b16 %v2521, %v2517
    %v2782 = vpack.c.b16 %v2522, %v2518
    %v2783 = vpack.c.b16 %v2523, %v2519
    %v2784 = vpack.c.b16 %v2524, %v2520
    %v2785 = vpack.c.b16 %v2529, %v2525
    %v2786 = vpack.c.b16 %v2530, %v2526
    %v2787 = vpack.c.b16 %v2531, %v2527
    %v2788 = vpack.c.b16 %v2532, %v2528
    %3045 = vmatprep.subr.bf16.mxu0 %v2534
    %3046 = vmatpush1.bf16.msra.mxu0 %v2533
    %3047 = vmatprep.subr.bf16.mxu0 %v2538
    %3048 = vmatpush1.bf16.msra.mxu0 %v2537
    %3049 = vmatprep.subr.bf16.mxu0 %v2542
    %3050 = vmatpush1.bf16.msra.mxu0 %v2541
    %3051 = vmatprep.subr.bf16.mxu0 %v2546
    %3052 = vmatpush1.bf16.msra.mxu0 %v2545
    %3053 = vmatprep.subr.bf16.mxu0 %v2550
    %3054 = vmatpush1.bf16.msra.mxu0 %v2549
    %3055 = vmatprep.subr.bf16.mxu0 %v2554
    %3056 = vmatpush1.bf16.msra.mxu0 %v2553
    %3057 = vmatprep.subr.bf16.mxu0 %v2558
    %3058 = vmatpush1.bf16.msra.mxu0 %v2557
    %3059 = vmatprep.subr.bf16.mxu0 %v2562
    %3060 = vmatpush1.bf16.msra.mxu0 %v2561
    %3061 = vmatprep.subr.bf16.mxu0 %v2566
    %3062 = vmatpush1.bf16.msra.mxu0 %v2565
    %3063 = vmatprep.subr.bf16.mxu0 %v2570
    %3064 = vmatpush1.bf16.msra.mxu0 %v2569
    %3065 = vmatprep.subr.bf16.mxu0 %v2574
    %3066 = vmatpush1.bf16.msra.mxu0 %v2573
    %3067 = vmatprep.subr.bf16.mxu0 %v2578
    %3068 = vmatpush1.bf16.msra.mxu0 %v2577
    %3069 = vmatprep.subr.bf16.mxu0 %v2582
    %3070 = vmatpush1.bf16.msra.mxu0 %v2581
    %3071 = vmatprep.subr.bf16.mxu0 %v2586
    %3072 = vmatpush1.bf16.msra.mxu0 %v2585
    %3073 = vmatprep.subr.bf16.mxu0 %v2590
    %3074 = vmatpush1.bf16.msra.mxu0 %v2589
    %3075 = vmatprep.subr.bf16.mxu0 %v2594
    %3076 = vmatpush1.bf16.msra.mxu0 %v2593
    %3077 = vmatprep.mubr.bf16.mxu0 %v1480
    %3078 = vmatmul.mubr.bf16.gmra.mrb[0].mxu0 %v1479
    %v3079 = vpop.f32.mrb[0].mxu0
    %v3080 = vadd.f32 %v1748, %v3079
    %v3081 = vpop.f32.mrb[0].mxu0
    %v3082 = vadd.f32 %v1752, %v3081
    %v3083 = vpop.f32.mrb[0].mxu0
    %v3084 = vadd.f32 %v1748, %v3083
    %v3085 = vpop.f32.mrb[0].mxu0
    %v3086 = vadd.f32 %v1752, %v3085
    %3087 = vdwg.mxu0
    %3088 = vmatprep.subr.bf16.mxu0 %v2598
    %3089 = vmatpush1.bf16.msra.mxu0 %v2597
    %3090 = vmatprep.subr.bf16.mxu0 %v2602
    %3091 = vmatpush1.bf16.msra.mxu0 %v2601
    %3092 = vmatprep.subr.bf16.mxu0 %v2606
    %3093 = vmatpush1.bf16.msra.mxu0 %v2605
    %3094 = vmatprep.subr.bf16.mxu0 %v2610
    %3095 = vmatpush1.bf16.msra.mxu0 %v2609
    %3096 = vmatprep.subr.bf16.mxu0 %v2614
    %3097 = vmatpush1.bf16.msra.mxu0 %v2613
    %3098 = vmatprep.subr.bf16.mxu0 %v2618
    %3099 = vmatpush1.bf16.msra.mxu0 %v2617
    %3100 = vmatprep.subr.bf16.mxu0 %v2622
    %3101 = vmatpush1.bf16.msra.mxu0 %v2621
    %3102 = vmatprep.subr.bf16.mxu0 %v2626
    %3103 = vmatpush1.bf16.msra.mxu0 %v2625
    %3104 = vmatprep.subr.bf16.mxu0 %v2630
    %3105 = vmatpush1.bf16.msra.mxu0 %v2629
    %3106 = vmatprep.subr.bf16.mxu0 %v2634
    %3107 = vmatpush1.bf16.msra.mxu0 %v2633
    %3108 = vmatprep.subr.bf16.mxu0 %v2638
    %3109 = vmatpush1.bf16.msra.mxu0 %v2637
    %3110 = vmatprep.subr.bf16.mxu0 %v2642
    %3111 = vmatpush1.bf16.msra.mxu0 %v2641
    %3112 = vmatprep.subr.bf16.mxu0 %v2646
    %3113 = vmatpush1.bf16.msra.mxu0 %v2645
    %3114 = vmatprep.subr.bf16.mxu0 %v2650
    %3115 = vmatpush1.bf16.msra.mxu0 %v2649
    %3116 = vmatprep.subr.bf16.mxu0 %v2654
    %3117 = vmatpush1.bf16.msra.mxu0 %v2653
    %3118 = vmatprep.subr.bf16.mxu0 %v2658
    %3119 = vmatpush1.bf16.msra.mxu0 %v2657
    %3120 = vmatprep.mubr.bf16.mxu0 %v1482
    %3121 = vmatmul.mubr.bf16.gmra.mrb[0].mxu0 %v1481
    %v3122 = vpop.f32.mrb[0].mxu0
    %v3123 = vadd.f32 %v3080, %v3122
    %v3124 = vpop.f32.mrb[0].mxu0
    %v3125 = vadd.f32 %v3082, %v3124
    %v3126 = vpop.f32.mrb[0].mxu0
    %v3127 = vadd.f32 %v3084, %v3126
    %v3128 = vpop.f32.mrb[0].mxu0
    %v3129 = vadd.f32 %v3086, %v3128
    %3130 = vdwg.mxu0
    %3131 = vmatprep.subr.bf16.mxu0 %v2662
    %3132 = vmatpush1.bf16.msra.mxu0 %v2661
    %3133 = vmatprep.subr.bf16.mxu0 %v2666
    %3134 = vmatpush1.bf16.msra.mxu0 %v2665
    %3135 = vmatprep.subr.bf16.mxu0 %v2670
    %3136 = vmatpush1.bf16.msra.mxu0 %v2669
    %3137 = vmatprep.subr.bf16.mxu0 %v2674
    %3138 = vmatpush1.bf16.msra.mxu0 %v2673
    %3139 = vmatprep.subr.bf16.mxu0 %v2678
    %3140 = vmatpush1.bf16.msra.mxu0 %v2677
    %3141 = vmatprep.subr.bf16.mxu0 %v2682
    %3142 = vmatpush1.bf16.msra.mxu0 %v2681
    %3143 = vmatprep.subr.bf16.mxu0 %v2686
    %3144 = vmatpush1.bf16.msra.mxu0 %v2685
    %3145 = vmatprep.subr.bf16.mxu0 %v2690
    %3146 = vmatpush1.bf16.msra.mxu0 %v2689
    %3147 = vmatprep.subr.bf16.mxu0 %v2694
    %3148 = vmatpush1.bf16.msra.mxu0 %v2693
    %3149 = vmatprep.subr.bf16.mxu0 %v2698
    %3150 = vmatpush1.bf16.msra.mxu0 %v2697
    %3151 = vmatprep.subr.bf16.mxu0 %v2702
    %3152 = vmatpush1.bf16.msra.mxu0 %v2701
    %3153 = vmatprep.subr.bf16.mxu0 %v2706
    %3154 = vmatpush1.bf16.msra.mxu0 %v2705
    %3155 = vmatprep.subr.bf16.mxu0 %v2710
    %3156 = vmatpush1.bf16.msra.mxu0 %v2709
    %3157 = vmatprep.subr.bf16.mxu0 %v2714
    %3158 = vmatpush1.bf16.msra.mxu0 %v2713
    %3159 = vmatprep.subr.bf16.mxu0 %v2718
    %3160 = vmatpush1.bf16.msra.mxu0 %v2717
    %3161 = vmatprep.subr.bf16.mxu0 %v2722
    %3162 = vmatpush1.bf16.msra.mxu0 %v2721
    %3163 = vmatprep.mubr.bf16.mxu0 %v1484
    %3164 = vmatmul.mubr.bf16.gmra.mrb[0].mxu0 %v1483
    %v3165 = vpop.f32.mrb[0].mxu0
    %v3166 = vadd.f32 %v3123, %v3165
    %v3167 = vpop.f32.mrb[0].mxu0
    %v3168 = vadd.f32 %v3125, %v3167
    %v3169 = vpop.f32.mrb[0].mxu0
    %v3170 = vadd.f32 %v3127, %v3169
    %v3171 = vpop.f32.mrb[0].mxu0
    %v3172 = vadd.f32 %v3129, %v3171
    %3173 = vdwg.mxu0
    %3174 = vmatprep.subr.bf16.mxu0 %v2726
    %3175 = vmatpush1.bf16.msra.mxu0 %v2725
    %3176 = vmatprep.subr.bf16.mxu0 %v2730
    %3177 = vmatpush1.bf16.msra.mxu0 %v2729
    %3178 = vmatprep.subr.bf16.mxu0 %v2734
    %3179 = vmatpush1.bf16.msra.mxu0 %v2733
    %3180 = vmatprep.subr.bf16.mxu0 %v2738
    %3181 = vmatpush1.bf16.msra.mxu0 %v2737
    %3182 = vmatprep.subr.bf16.mxu0 %v2742
    %3183 = vmatpush1.bf16.msra.mxu0 %v2741
    %3184 = vmatprep.subr.bf16.mxu0 %v2746
    %3185 = vmatpush1.bf16.msra.mxu0 %v2745
    %3186 = vmatprep.subr.bf16.mxu0 %v2750
    %3187 = vmatpush1.bf16.msra.mxu0 %v2749
    %3188 = vmatprep.subr.bf16.mxu0 %v2754
    %3189 = vmatpush1.bf16.msra.mxu0 %v2753
    %3190 = vmatprep.subr.bf16.mxu0 %v2758
    %3191 = vmatpush1.bf16.msra.mxu0 %v2757
    %3192 = vmatprep.subr.bf16.mxu0 %v2762
    %3193 = vmatpush1.bf16.msra.mxu0 %v2761
    %3194 = vmatprep.subr.bf16.mxu0 %v2766
    %3195 = vmatpush1.bf16.msra.mxu0 %v2765
    %3196 = vmatprep.subr.bf16.mxu0 %v2770
    %3197 = vmatpush1.bf16.msra.mxu0 %v2769
    %3198 = vmatprep.subr.bf16.mxu0 %v2774
    %3199 = vmatpush1.bf16.msra.mxu0 %v2773
    %3200 = vmatprep.subr.bf16.mxu0 %v2778
    %3201 = vmatpush1.bf16.msra.mxu0 %v2777
    %3202 = vmatprep.subr.bf16.mxu0 %v2782
    %3203 = vmatpush1.bf16.msra.mxu0 %v2781
    %3204 = vmatprep.subr.bf16.mxu0 %v2786
    %3205 = vmatpush1.bf16.msra.mxu0 %v2785
    %3206 = vmatprep.mubr.bf16.mxu0 %v1486
    %3207 = vmatmul.mubr.bf16.gmra.mrb[0].mxu0 %v1485
    %v3208 = vpop.f32.mrb[0].mxu0
    %v3209 = vadd.f32 %v3166, %v3208
    %v3210 = vpop.f32.mrb[0].mxu0
    %v3211 = vadd.f32 %v3168, %v3210
    %v3212 = vpop.f32.mrb[0].mxu0
    %v3213 = vadd.f32 %v3170, %v3212
    %v3214 = vpop.f32.mrb[0].mxu0
    %v3215 = vadd.f32 %v3172, %v3214
    %3216 = vdwg.mxu0
    %3217 = vmatprep.subr.bf16.mxu0 %v2536
    %3218 = vmatpush1.bf16.msra.mxu0 %v2535
    %3219 = vmatprep.subr.bf16.mxu0 %v2540
    %3220 = vmatpush1.bf16.msra.mxu0 %v2539
    %3221 = vmatprep.subr.bf16.mxu0 %v2544
    %3222 = vmatpush1.bf16.msra.mxu0 %v2543
    %3223 = vmatprep.subr.bf16.mxu0 %v2548
    %3224 = vmatpush1.bf16.msra.mxu0 %v2547
    %3225 = vmatprep.subr.bf16.mxu0 %v2552
    %3226 = vmatpush1.bf16.msra.mxu0 %v2551
    %3227 = vmatprep.subr.bf16.mxu0 %v2556
    %3228 = vmatpush1.bf16.msra.mxu0 %v2555
    %3229 = vmatprep.subr.bf16.mxu0 %v2560
    %3230 = vmatpush1.bf16.msra.mxu0 %v2559
    %3231 = vmatprep.subr.bf16.mxu0 %v2564
    %3232 = vmatpush1.bf16.msra.mxu0 %v2563
    %3233 = vmatprep.subr.bf16.mxu0 %v2568
    %3234 = vmatpush1.bf16.msra.mxu0 %v2567
    %3235 = vmatprep.subr.bf16.mxu0 %v2572
    %3236 = vmatpush1.bf16.msra.mxu0 %v2571
    %3237 = vmatprep.subr.bf16.mxu0 %v2576
    %3238 = vmatpush1.bf16.msra.mxu0 %v2575
    %3239 = vmatprep.subr.bf16.mxu0 %v2580
    %3240 = vmatpush1.bf16.msra.mxu0 %v2579
    %3241 = vmatprep.subr.bf16.mxu0 %v2584
    %3242 = vmatpush1.bf16.msra.mxu0 %v2583
    %3243 = vmatprep.subr.bf16.mxu0 %v2588
    %3244 = vmatpush1.bf16.msra.mxu0 %v2587
    %3245 = vmatprep.subr.bf16.mxu0 %v2592
    %3246 = vmatpush1.bf16.msra.mxu0 %v2591
    %3247 = vmatprep.subr.bf16.mxu0 %v2596
    %3248 = vmatpush1.bf16.msra.mxu0 %v2595
    %3249 = vmatprep.mubr.bf16.mxu0 %v1480
    %3250 = vmatmul.mubr.bf16.gmra.mrb[0].mxu0 %v1479
    %v3251 = vpop.f32.mrb[0].mxu0
    %v3252 = vadd.f32 %v1756, %v3251
    %v3253 = vpop.f32.mrb[0].mxu0
    %v3254 = vadd.f32 %v1760, %v3253
    %v3255 = vpop.f32.mrb[0].mxu0
    %v3256 = vadd.f32 %v1756, %v3255
    %v3257 = vpop.f32.mrb[0].mxu0
    %v3258 = vadd.f32 %v1760, %v3257
    %3259 = vdwg.mxu0
    %3260 = vmatprep.subr.bf16.mxu0 %v2600
    %3261 = vmatpush1.bf16.msra.mxu0 %v2599
    %3262 = vmatprep.subr.bf16.mxu0 %v2604
    %3263 = vmatpush1.bf16.msra.mxu0 %v2603
    %3264 = vmatprep.subr.bf16.mxu0 %v2608
    %3265 = vmatpush1.bf16.msra.mxu0 %v2607
    %3266 = vmatprep.subr.bf16.mxu0 %v2612
    %3267 = vmatpush1.bf16.msra.mxu0 %v2611
    %3268 = vmatprep.subr.bf16.mxu0 %v2616
    %3269 = vmatpush1.bf16.msra.mxu0 %v2615
    %3270 = vmatprep.subr.bf16.mxu0 %v2620
    %3271 = vmatpush1.bf16.msra.mxu0 %v2619
    %3272 = vmatprep.subr.bf16.mxu0 %v2624
    %3273 = vmatpush1.bf16.msra.mxu0 %v2623
    %3274 = vmatprep.subr.bf16.mxu0 %v2628
    %3275 = vmatpush1.bf16.msra.mxu0 %v2627
    %3276 = vmatprep.subr.bf16.mxu0 %v2632
    %3277 = vmatpush1.bf16.msra.mxu0 %v2631
    %3278 = vmatprep.subr.bf16.mxu0 %v2636
    %3279 = vmatpush1.bf16.msra.mxu0 %v2635
    %3280 = vmatprep.subr.bf16.mxu0 %v2640
    %3281 = vmatpush1.bf16.msra.mxu0 %v2639
    %3282 = vmatprep.subr.bf16.mxu0 %v2644
    %3283 = vmatpush1.bf16.msra.mxu0 %v2643
    %3284 = vmatprep.subr.bf16.mxu0 %v2648
    %3285 = vmatpush1.bf16.msra.mxu0 %v2647
    %3286 = vmatprep.subr.bf16.mxu0 %v2652
    %3287 = vmatpush1.bf16.msra.mxu0 %v2651
    %3288 = vmatprep.subr.bf16.mxu0 %v2656
    %3289 = vmatpush1.bf16.msra.mxu0 %v2655
    %3290 = vmatprep.subr.bf16.mxu0 %v2660
    %3291 = vmatpush1.bf16.msra.mxu0 %v2659
    %3292 = vmatprep.mubr.bf16.mxu0 %v1482
    %3293 = vmatmul.mubr.bf16.gmra.mrb[0].mxu0 %v1481
    %v3294 = vpop.f32.mrb[0].mxu0
    %v3295 = vadd.f32 %v3252, %v3294
    %v3296 = vpop.f32.mrb[0].mxu0
    %v3297 = vadd.f32 %v3254, %v3296
    %v3298 = vpop.f32.mrb[0].mxu0
    %v3299 = vadd.f32 %v3256, %v3298
    %v3300 = vpop.f32.mrb[0].mxu0
    %v3301 = vadd.f32 %v3258, %v3300
    %3302 = vdwg.mxu0
    %3303 = vmatprep.subr.bf16.mxu0 %v2664
    %3304 = vmatpush1.bf16.msra.mxu0 %v2663
    %3305 = vmatprep.subr.bf16.mxu0 %v2668
    %3306 = vmatpush1.bf16.msra.mxu0 %v2667
    %3307 = vmatprep.subr.bf16.mxu0 %v2672
    %3308 = vmatpush1.bf16.msra.mxu0 %v2671
    %3309 = vmatprep.subr.bf16.mxu0 %v2676
    %3310 = vmatpush1.bf16.msra.mxu0 %v2675
    %3311 = vmatprep.subr.bf16.mxu0 %v2680
    %3312 = vmatpush1.bf16.msra.mxu0 %v2679
    %3313 = vmatprep.subr.bf16.mxu0 %v2684
    %3314 = vmatpush1.bf16.msra.mxu0 %v2683
    %3315 = vmatprep.subr.bf16.mxu0 %v2688
    %3316 = vmatpush1.bf16.msra.mxu0 %v2687
    %3317 = vmatprep.subr.bf16.mxu0 %v2692
    %3318 = vmatpush1.bf16.msra.mxu0 %v2691
    %3319 = vmatprep.subr.bf16.mxu0 %v2696
    %3320 = vmatpush1.bf16.msra.mxu0 %v2695
    %3321 = vmatprep.subr.bf16.mxu0 %v2700
    %3322 = vmatpush1.bf16.msra.mxu0 %v2699
    %3323 = vmatprep.subr.bf16.mxu0 %v2704
    %3324 = vmatpush1.bf16.msra.mxu0 %v2703
    %3325 = vmatprep.subr.bf16.mxu0 %v2708
    %3326 = vmatpush1.bf16.msra.mxu0 %v2707
    %3327 = vmatprep.subr.bf16.mxu0 %v2712
    %3328 = vmatpush1.bf16.msra.mxu0 %v2711
    %3329 = vmatprep.subr.bf16.mxu0 %v2716
    %3330 = vmatpush1.bf16.msra.mxu0 %v2715
    %3331 = vmatprep.subr.bf16.mxu0 %v2720
    %3332 = vmatpush1.bf16.msra.mxu0 %v2719
    %3333 = vmatprep.subr.bf16.mxu0 %v2724
    %3334 = vmatpush1.bf16.msra.mxu0 %v2723
    %3335 = vmatprep.mubr.bf16.mxu0 %v1484
    %3336 = vmatmul.mubr.bf16.gmra.mrb[0].mxu0 %v1483
    %v3337 = vpop.f32.mrb[0].mxu0
    %v3338 = vadd.f32 %v3295, %v3337
    %v3339 = vpop.f32.mrb[0].mxu0
    %v3340 = vadd.f32 %v3297, %v3339
    %v3341 = vpop.f32.mrb[0].mxu0
    %v3342 = vadd.f32 %v3299, %v3341
    %v3343 = vpop.f32.mrb[0].mxu0
    %v3344 = vadd.f32 %v3301, %v3343
    %3345 = vdwg.mxu0
    %3346 = vmatprep.subr.bf16.mxu0 %v2728
    %3347 = vmatpush1.bf16.msra.mxu0 %v2727
    %3348 = vmatprep.subr.bf16.mxu0 %v2732
    %3349 = vmatpush1.bf16.msra.mxu0 %v2731
    %3350 = vmatprep.subr.bf16.mxu0 %v2736
    %3351 = vmatpush1.bf16.msra.mxu0 %v2735
    %3352 = vmatprep.subr.bf16.mxu0 %v2740
    %3353 = vmatpush1.bf16.msra.mxu0 %v2739
    %3354 = vmatprep.subr.bf16.mxu0 %v2744
    %3355 = vmatpush1.bf16.msra.mxu0 %v2743
    %3356 = vmatprep.subr.bf16.mxu0 %v2748
    %3357 = vmatpush1.bf16.msra.mxu0 %v2747
    %3358 = vmatprep.subr.bf16.mxu0 %v2752
    %3359 = vmatpush1.bf16.msra.mxu0 %v2751
    %3360 = vmatprep.subr.bf16.mxu0 %v2756
    %3361 = vmatpush1.bf16.msra.mxu0 %v2755
    %3362 = vmatprep.subr.bf16.mxu0 %v2760
    %3363 = vmatpush1.bf16.msra.mxu0 %v2759
    %3364 = vmatprep.subr.bf16.mxu0 %v2764
    %3365 = vmatpush1.bf16.msra.mxu0 %v2763
    %3366 = vmatprep.subr.bf16.mxu0 %v2768
    %3367 = vmatpush1.bf16.msra.mxu0 %v2767
    %3368 = vmatprep.subr.bf16.mxu0 %v2772
    %3369 = vmatpush1.bf16.msra.mxu0 %v2771
    %3370 = vmatprep.subr.bf16.mxu0 %v2776
    %3371 = vmatpush1.bf16.msra.mxu0 %v2775
    %3372 = vmatprep.subr.bf16.mxu0 %v2780
    %3373 = vmatpush1.bf16.msra.mxu0 %v2779
    %3374 = vmatprep.subr.bf16.mxu0 %v2784
    %3375 = vmatpush1.bf16.msra.mxu0 %v2783
    %3376 = vmatprep.subr.bf16.mxu0 %v2788
    %3377 = vmatpush1.bf16.msra.mxu0 %v2787
    %3378 = vmatprep.mubr.bf16.mxu0 %v1486
    %3379 = vmatmul.mubr.bf16.gmra.mrb[0].mxu0 %v1485
    %v3380 = vpop.f32.mrb[0].mxu0
    %v3381 = vadd.f32 %v3338, %v3380
    %v3382 = vpop.f32.mrb[0].mxu0
    %v3383 = vadd.f32 %v3340, %v3382
    %v3384 = vpop.f32.mrb[0].mxu0
    %v3385 = vadd.f32 %v3342, %v3384
    %v3386 = vpop.f32.mrb[0].mxu0
    %v3387 = vadd.f32 %v3344, %v3386
    %3388 = vdwg.mxu0
    %vm3389 = vcmask 523264
    %v3390 = vsel %vm3389, %v3209, 0.0
    %3391 = vadd.xlane.f32.xlu0 %v3390
    %v3392 = vpop.xlane.xlu0 %3391
    %v3393 = vsel %vm3389, %v3213, 0.0
    %3394 = vadd.xlane.f32.xlu0 %v3393
    %v3395 = vpop.xlane.xlu0 %3394
    %v3396 = vrcp.pop 64.0
    %v3397 = vmul.f32 %v3392, %v3396
    %v3398 = vmul.f32 %v3395, %v3396
    %v3399 = vsub.f32 %v3209, %v3397
    %v3400 = vsub.f32 %v3213, %v3398
    %v3401 = vmul.f32 %v3399, %v3399
    %v3402 = vmul.f32 %v3400, %v3400
    %v3403 = vsel %vm3389, %v3401, 0.0
    %3404 = vadd.xlane.f32.xlu0 %v3403
    %v3405 = vpop.xlane.xlu0 %3404
    %v3406 = vsel %vm3389, %v3402, 0.0
    %3407 = vadd.xlane.f32.xlu0 %v3406
    %v3408 = vpop.xlane.xlu0 %3407
    %v3409 = vmul.f32 %v3405, %v3396
    %v3410 = vmul.f32 %v3408, %v3396
    %v3411 = vadd.f32 %v3409, 1e-05
    %v3412 = vadd.f32 %v3410, 1e-05
    %v3413 = vrsqrt.pop %v3411
    %v3414 = vrsqrt.pop %v3412
    %v3415 = vmul.f32 %v3399, %v3413
    %v3416 = vmul.f32 %v3400, %v3414
    %3419 = vrot.lane.b32.xlu0 %v3209, 64
    %v3420 = vpop.permute.xlu0 %3419
    %3421 = vrot.lane.b32.xlu0 %v3213, 64
    %v3422 = vpop.permute.xlu0 %3421
    %v3425 = vsel %vm3389, %v3420, 0.0
    %3426 = vadd.xlane.f32.xlu0 %v3425
    %v3427 = vpop.xlane.xlu0 %3426
    %v3428 = vsel %vm3389, %v3422, 0.0
    %3429 = vadd.xlane.f32.xlu0 %v3428
    %v3430 = vpop.xlane.xlu0 %3429
    %v3431 = vmul.f32 %v3427, %v3396
    %v3432 = vmul.f32 %v3430, %v3396
    %v3433 = vsub.f32 %v3209, %v3431
    %v3434 = vsub.f32 %v3213, %v3432
    %v3435 = vmul.f32 %v3433, %v3433
    %v3436 = vmul.f32 %v3434, %v3434
    %3439 = vrot.lane.b32.xlu0 %v3435, 64
    %v3440 = vpop.permute.xlu0 %3439
    %3441 = vrot.lane.b32.xlu0 %v3436, 64
    %v3442 = vpop.permute.xlu0 %3441
    %v3445 = vsel %vm3389, %v3440, 0.0
    %3446 = vadd.xlane.f32.xlu0 %v3445
    %v3447 = vpop.xlane.xlu0 %3446
    %v3448 = vsel %vm3389, %v3442, 0.0
    %3449 = vadd.xlane.f32.xlu0 %v3448
    %v3450 = vpop.xlane.xlu0 %3449
    %v3451 = vmul.f32 %v3447, %v3396
    %v3452 = vmul.f32 %v3450, %v3396
    %v3453 = vadd.f32 %v3451, 1e-05
    %v3454 = vadd.f32 %v3452, 1e-05
    %v3455 = vrsqrt.pop %v3453
    %v3456 = vrsqrt.pop %v3454
    %v3457 = vmul.f32 %v3433, %v3455
    %v3458 = vmul.f32 %v3434, %v3456
    %v3459 = vsel %vm3389, %v3211, 0.0
    %3460 = vadd.xlane.f32.xlu0 %v3459
    %v3461 = vpop.xlane.xlu0 %3460
    %v3462 = vsel %vm3389, %v3215, 0.0
    %3463 = vadd.xlane.f32.xlu0 %v3462
    %v3464 = vpop.xlane.xlu0 %3463
    %v3465 = vmul.f32 %v3461, %v3396
    %v3466 = vmul.f32 %v3464, %v3396
    %v3467 = vsub.f32 %v3211, %v3465
    %v3468 = vsub.f32 %v3215, %v3466
    %v3469 = vmul.f32 %v3467, %v3467
    %v3470 = vmul.f32 %v3468, %v3468
    %v3471 = vsel %vm3389, %v3469, 0.0
    %3472 = vadd.xlane.f32.xlu0 %v3471
    %v3473 = vpop.xlane.xlu0 %3472
    %v3474 = vsel %vm3389, %v3470, 0.0
    %3475 = vadd.xlane.f32.xlu0 %v3474
    %v3476 = vpop.xlane.xlu0 %3475
    %v3477 = vmul.f32 %v3473, %v3396
    %v3478 = vmul.f32 %v3476, %v3396
    %v3479 = vadd.f32 %v3477, 1e-05
    %v3480 = vadd.f32 %v3478, 1e-05
    %v3481 = vrsqrt.pop %v3479
    %v3482 = vrsqrt.pop %v3480
    %v3483 = vmul.f32 %v3467, %v3481
    %v3484 = vmul.f32 %v3468, %v3482
    %3487 = vrot.lane.b32.xlu0 %v3211, 64
    %v3488 = vpop.permute.xlu0 %3487
    %3489 = vrot.lane.b32.xlu0 %v3215, 64
    %v3490 = vpop.permute.xlu0 %3489
    %v3493 = vsel %vm3389, %v3488, 0.0
    %3494 = vadd.xlane.f32.xlu0 %v3493
    %v3495 = vpop.xlane.xlu0 %3494
    %v3496 = vsel %vm3389, %v3490, 0.0
    %3497 = vadd.xlane.f32.xlu0 %v3496
    %v3498 = vpop.xlane.xlu0 %3497
    %v3499 = vmul.f32 %v3495, %v3396
    %v3500 = vmul.f32 %v3498, %v3396
    %v3501 = vsub.f32 %v3211, %v3499
    %v3502 = vsub.f32 %v3215, %v3500
    %v3503 = vmul.f32 %v3501, %v3501
    %v3504 = vmul.f32 %v3502, %v3502
    %3507 = vrot.lane.b32.xlu0 %v3503, 64
    %v3508 = vpop.permute.xlu0 %3507
    %3509 = vrot.lane.b32.xlu0 %v3504, 64
    %v3510 = vpop.permute.xlu0 %3509
    %v3513 = vsel %vm3389, %v3508, 0.0
    %3514 = vadd.xlane.f32.xlu0 %v3513
    %v3515 = vpop.xlane.xlu0 %3514
    %v3516 = vsel %vm3389, %v3510, 0.0
    %3517 = vadd.xlane.f32.xlu0 %v3516
    %v3518 = vpop.xlane.xlu0 %3517
    %v3519 = vmul.f32 %v3515, %v3396
    %v3520 = vmul.f32 %v3518, %v3396
    %v3521 = vadd.f32 %v3519, 1e-05
    %v3522 = vadd.f32 %v3520, 1e-05
    %v3523 = vrsqrt.pop %v3521
    %v3524 = vrsqrt.pop %v3522
    %v3525 = vmul.f32 %v3501, %v3523
    %v3526 = vmul.f32 %v3502, %v3524
    %v3527 = vsel %vm3389, %v3381, 0.0
    %3528 = vadd.xlane.f32.xlu0 %v3527
    %v3529 = vpop.xlane.xlu0 %3528
    %v3530 = vsel %vm3389, %v3385, 0.0
    %3531 = vadd.xlane.f32.xlu0 %v3530
    %v3532 = vpop.xlane.xlu0 %3531
    %v3533 = vmul.f32 %v3529, %v3396
    %v3534 = vmul.f32 %v3532, %v3396
    %v3535 = vsub.f32 %v3381, %v3533
    %v3536 = vsub.f32 %v3385, %v3534
    %v3537 = vmul.f32 %v3535, %v3535
    %v3538 = vmul.f32 %v3536, %v3536
    %v3539 = vsel %vm3389, %v3537, 0.0
    %3540 = vadd.xlane.f32.xlu0 %v3539
    %v3541 = vpop.xlane.xlu0 %3540
    %v3542 = vsel %vm3389, %v3538, 0.0
    %3543 = vadd.xlane.f32.xlu0 %v3542
    %v3544 = vpop.xlane.xlu0 %3543
    %v3545 = vmul.f32 %v3541, %v3396
    %v3546 = vmul.f32 %v3544, %v3396
    %v3547 = vadd.f32 %v3545, 1e-05
    %v3548 = vadd.f32 %v3546, 1e-05
    %v3549 = vrsqrt.pop %v3547
    %v3550 = vrsqrt.pop %v3548
    %v3551 = vmul.f32 %v3535, %v3549
    %v3552 = vmul.f32 %v3536, %v3550
    %3555 = vrot.lane.b32.xlu0 %v3381, 64
    %v3556 = vpop.permute.xlu0 %3555
    %3557 = vrot.lane.b32.xlu0 %v3385, 64
    %v3558 = vpop.permute.xlu0 %3557
    %v3561 = vsel %vm3389, %v3556, 0.0
    %3562 = vadd.xlane.f32.xlu0 %v3561
    %v3563 = vpop.xlane.xlu0 %3562
    %v3564 = vsel %vm3389, %v3558, 0.0
    %3565 = vadd.xlane.f32.xlu0 %v3564
    %v3566 = vpop.xlane.xlu0 %3565
    %v3567 = vmul.f32 %v3563, %v3396
    %v3568 = vmul.f32 %v3566, %v3396
    %v3569 = vsub.f32 %v3381, %v3567
    %v3570 = vsub.f32 %v3385, %v3568
    %v3571 = vmul.f32 %v3569, %v3569
    %v3572 = vmul.f32 %v3570, %v3570
    %3575 = vrot.lane.b32.xlu0 %v3571, 64
    %v3576 = vpop.permute.xlu0 %3575
    %3577 = vrot.lane.b32.xlu0 %v3572, 64
    %v3578 = vpop.permute.xlu0 %3577
    %v3581 = vsel %vm3389, %v3576, 0.0
    %3582 = vadd.xlane.f32.xlu0 %v3581
    %v3583 = vpop.xlane.xlu0 %3582
    %v3584 = vsel %vm3389, %v3578, 0.0
    %3585 = vadd.xlane.f32.xlu0 %v3584
    %v3586 = vpop.xlane.xlu0 %3585
    %v3587 = vmul.f32 %v3583, %v3396
    %v3588 = vmul.f32 %v3586, %v3396
    %v3589 = vadd.f32 %v3587, 1e-05
    %v3590 = vadd.f32 %v3588, 1e-05
    %v3591 = vrsqrt.pop %v3589
    %v3592 = vrsqrt.pop %v3590
    %v3593 = vmul.f32 %v3569, %v3591
    %v3594 = vmul.f32 %v3570, %v3592
    %v3595 = vsel %vm3389, %v3383, 0.0
    %3596 = vadd.xlane.f32.xlu0 %v3595
    %v3597 = vpop.xlane.xlu0 %3596
    %v3598 = vsel %vm3389, %v3387, 0.0
    %3599 = vadd.xlane.f32.xlu0 %v3598
    %v3600 = vpop.xlane.xlu0 %3599
    %v3601 = vmul.f32 %v3597, %v3396
    %v3602 = vmul.f32 %v3600, %v3396
    %v3603 = vsub.f32 %v3383, %v3601
    %v3604 = vsub.f32 %v3387, %v3602
    %v3605 = vmul.f32 %v3603, %v3603
    %v3606 = vmul.f32 %v3604, %v3604
    %v3607 = vsel %vm3389, %v3605, 0.0
    %3608 = vadd.xlane.f32.xlu0 %v3607
    %v3609 = vpop.xlane.xlu0 %3608
    %v3610 = vsel %vm3389, %v3606, 0.0
    %3611 = vadd.xlane.f32.xlu0 %v3610
    %v3612 = vpop.xlane.xlu0 %3611
    %v3613 = vmul.f32 %v3609, %v3396
    %v3614 = vmul.f32 %v3612, %v3396
    %v3615 = vadd.f32 %v3613, 1e-05
    %v3616 = vadd.f32 %v3614, 1e-05
    %v3617 = vrsqrt.pop %v3615
    %v3618 = vrsqrt.pop %v3616
    %v3619 = vmul.f32 %v3603, %v3617
    %v3620 = vmul.f32 %v3604, %v3618
    %3623 = vrot.lane.b32.xlu0 %v3383, 64
    %v3624 = vpop.permute.xlu0 %3623
    %3625 = vrot.lane.b32.xlu0 %v3387, 64
    %v3626 = vpop.permute.xlu0 %3625
    %v3629 = vsel %vm3389, %v3624, 0.0
    %3630 = vadd.xlane.f32.xlu0 %v3629
    %v3631 = vpop.xlane.xlu0 %3630
    %v3632 = vsel %vm3389, %v3626, 0.0
    %3633 = vadd.xlane.f32.xlu0 %v3632
    %v3634 = vpop.xlane.xlu0 %3633
    %v3635 = vmul.f32 %v3631, %v3396
    %v3636 = vmul.f32 %v3634, %v3396
    %v3637 = vsub.f32 %v3383, %v3635
    %v3638 = vsub.f32 %v3387, %v3636
    %v3639 = vmul.f32 %v3637, %v3637
    %v3640 = vmul.f32 %v3638, %v3638
    %3643 = vrot.lane.b32.xlu0 %v3639, 64
    %v3644 = vpop.permute.xlu0 %3643
    %3645 = vrot.lane.b32.xlu0 %v3640, 64
    %v3646 = vpop.permute.xlu0 %3645
    %v3649 = vsel %vm3389, %v3644, 0.0
    %3650 = vadd.xlane.f32.xlu0 %v3649
    %v3651 = vpop.xlane.xlu0 %3650
    %v3652 = vsel %vm3389, %v3646, 0.0
    %3653 = vadd.xlane.f32.xlu0 %v3652
    %v3654 = vpop.xlane.xlu0 %3653
    %v3655 = vmul.f32 %v3651, %v3396
    %v3656 = vmul.f32 %v3654, %v3396
    %v3657 = vadd.f32 %v3655, 1e-05
    %v3658 = vadd.f32 %v3656, 1e-05
    %v3659 = vrsqrt.pop %v3657
    %v3660 = vrsqrt.pop %v3658
    %v3661 = vmul.f32 %v3637, %v3659
    %v3662 = vmul.f32 %v3638, %v3660
    %v3663 = vsel %vm3389, %v3415, %v3457
    %v3664 = vsel %vm3389, %v3416, %v3458
    %v3665 = vsel %vm3389, %v3483, %v3525
    %v3666 = vsel %vm3389, %v3484, %v3526
    %v3667 = vsel %vm3389, %v3551, %v3593
    %v3668 = vsel %vm3389, %v3552, %v3594
    %v3669 = vsel %vm3389, %v3619, %v3661
    %v3670 = vsel %vm3389, %v3620, %v3662
    %v3671 = vld [vmem:[%s7] sm:$0xf]
    %v3673 = vlaneseq
    %v3674 = vshrl.u32 %v3673, 7
    %v3675 = vsub.s32 0, %v3674
    %v3676 = vrot.slane %v3671, %v3675
    %v3677 = vlaneseq
    %v3678 = vshrl.u32 %v3677, 7
    %v3679 = vsub.s32 1, %v3678
    %v3680 = vrot.slane %v3671, %v3679
    %v3681 = vlaneseq
    %v3682 = vshrl.u32 %v3681, 7
    %v3683 = vsub.s32 2, %v3682
    %v3684 = vrot.slane %v3671, %v3683
    %v3685 = vlaneseq
    %v3686 = vshrl.u32 %v3685, 7
    %v3687 = vsub.s32 3, %v3686
    %v3688 = vrot.slane %v3671, %v3687
    %v3693 = vmul.f32 %v3663, %v3676
    %v3694 = vmul.f32 %v3665, %v3680
    %v3695 = vmul.f32 %v3667, %v3684
    %v3696 = vmul.f32 %v3669, %v3688
    %v3697 = vmul.f32 %v3664, %v3676
    %v3698 = vmul.f32 %v3666, %v3680
    %v3699 = vmul.f32 %v3668, %v3684
    %v3700 = vmul.f32 %v3670, %v3688
    %v3701 = vld [vmem:[%s8] sm:$0xf]
    %v3703 = vlaneseq
    %v3704 = vshrl.u32 %v3703, 7
    %v3705 = vsub.s32 0, %v3704
    %v3706 = vrot.slane %v3701, %v3705
    %v3707 = vlaneseq
    %v3708 = vshrl.u32 %v3707, 7
    %v3709 = vsub.s32 1, %v3708
    %v3710 = vrot.slane %v3701, %v3709
    %v3711 = vlaneseq
    %v3712 = vshrl.u32 %v3711, 7
    %v3713 = vsub.s32 2, %v3712
    %v3714 = vrot.slane %v3701, %v3713
    %v3715 = vlaneseq
    %v3716 = vshrl.u32 %v3715, 7
    %v3717 = vsub.s32 3, %v3716
    %v3718 = vrot.slane %v3701, %v3717
    %v3723 = vadd.f32 %v3693, %v3706
    %v3724 = vadd.f32 %v3694, %v3710
    %v3725 = vadd.f32 %v3695, %v3714
    %v3726 = vadd.f32 %v3696, %v3718
    %v3727 = vadd.f32 %v3697, %v3706
    %v3728 = vadd.f32 %v3698, %v3710
    %v3729 = vadd.f32 %v3699, %v3714
    %v3730 = vadd.f32 %v3700, %v3718
    %v3731 = vxor.u32 %v3723, 2147483648
    %v3732 = vxor.u32 %v3724, 2147483648
    %v3733 = vxor.u32 %v3725, 2147483648
    %v3734 = vxor.u32 %v3726, 2147483648
    %v3735 = vxor.u32 %v3727, 2147483648
    %v3736 = vxor.u32 %v3728, 2147483648
    %v3737 = vxor.u32 %v3729, 2147483648
    %v3738 = vxor.u32 %v3730, 2147483648
    %v3739 = vmul.f32 %v3731, 1.442695
    %v3740 = vpow.pop %v3739
    %v3741 = vmul.f32 %v3732, 1.442695
    %v3742 = vpow.pop %v3741
    %v3743 = vmul.f32 %v3733, 1.442695
    %v3744 = vpow.pop %v3743
    %v3745 = vmul.f32 %v3734, 1.442695
    %v3746 = vpow.pop %v3745
    %v3747 = vmul.f32 %v3735, 1.442695
    %v3748 = vpow.pop %v3747
    %v3749 = vmul.f32 %v3736, 1.442695
    %v3750 = vpow.pop %v3749
    %v3751 = vmul.f32 %v3737, 1.442695
    %v3752 = vpow.pop %v3751
    %v3753 = vmul.f32 %v3738, 1.442695
    %v3754 = vpow.pop %v3753
    %v3755 = vadd.f32 %v3740, 1.0
    %v3756 = vadd.f32 %v3742, 1.0
    %v3757 = vadd.f32 %v3744, 1.0
    %v3758 = vadd.f32 %v3746, 1.0
    %v3759 = vadd.f32 %v3748, 1.0
    %v3760 = vadd.f32 %v3750, 1.0
    %v3761 = vadd.f32 %v3752, 1.0
    %v3762 = vadd.f32 %v3754, 1.0
    %v3763 = vrcp.pop %v3755
    %v3764 = vmul.f32 1.0, %v3763
    %v3765 = vrcp.pop %v3756
    %v3766 = vmul.f32 1.0, %v3765
    %v3767 = vrcp.pop %v3757
    %v3768 = vmul.f32 1.0, %v3767
    %v3769 = vrcp.pop %v3758
    %v3770 = vmul.f32 1.0, %v3769
    %v3771 = vrcp.pop %v3759
    %v3772 = vmul.f32 1.0, %v3771
    %v3773 = vrcp.pop %v3760
    %v3774 = vmul.f32 1.0, %v3773
    %v3775 = vrcp.pop %v3761
    %v3776 = vmul.f32 1.0, %v3775
    %v3777 = vrcp.pop %v3762
    %v3778 = vmul.f32 1.0, %v3777
    %v3779 = vmul.f32 %v3723, %v3764
    %v3780 = vmul.f32 %v3724, %v3766
    %v3781 = vmul.f32 %v3725, %v3768
    %v3782 = vmul.f32 %v3726, %v3770
    %v3783 = vmul.f32 %v3727, %v3772
    %v3784 = vmul.f32 %v3728, %v3774
    %v3785 = vmul.f32 %v3729, %v3776
    %v3786 = vmul.f32 %v3730, %v3778
    %v3787 = vpack.c.bf16 %v3783, %v3779
    %v3788 = vpack.c.bf16 %v3784, %v3780
    %v3789 = vpack.c.bf16 %v3785, %v3781
    %v3790 = vpack.c.bf16 %v3786, %v3782
    %v3791 = vld [vmem:[#allocation6] sm:$0xf]
    %v3792 = vld [vmem:[#allocation6 + $0x4] sm:$0xf]
    %v3793 = vld [vmem:[#allocation6 + $0x8] sm:$0xf]
    %v3794 = vld [vmem:[#allocation6 + $0xc] sm:$0xf]
    %v3795 = vld [vmem:[#allocation6 + $0x10] sm:$0xf]
    %v3796 = vld [vmem:[#allocation6 + $0x14] sm:$0xf]
    %v3797 = vld [vmem:[#allocation6 + $0x18] sm:$0xf]
    %v3798 = vld [vmem:[#allocation6 + $0x1c] sm:$0xf]
    %v3799 = vld [vmem:[#allocation6 + $0x20] sm:$0xf]
    %v3800 = vld [vmem:[#allocation6 + $0x24] sm:$0xf]
    %v3801 = vld [vmem:[#allocation6 + $0x28] sm:$0xf]
    %v3802 = vld [vmem:[#allocation6 + $0x2c] sm:$0xf]
    %v3803 = vld [vmem:[#allocation6 + $0x30] sm:$0xf]
    %v3804 = vld [vmem:[#allocation6 + $0x34] sm:$0xf]
    %v3805 = vld [vmem:[#allocation6 + $0x38] sm:$0xf]
    %v3806 = vld [vmem:[#allocation6 + $0x3c] sm:$0xf]
    %v3807 = vld [vmem:[#allocation6 + $0x40] sm:$0xf]
    %v3808 = vld [vmem:[#allocation6 + $0x44] sm:$0xf]
    %v3809 = vld [vmem:[#allocation6 + $0x48] sm:$0xf]
    %v3810 = vld [vmem:[#allocation6 + $0x4c] sm:$0xf]
    %v3811 = vld [vmem:[#allocation6 + $0x50] sm:$0xf]
    %v3812 = vld [vmem:[#allocation6 + $0x54] sm:$0xf]
    %v3813 = vld [vmem:[#allocation6 + $0x58] sm:$0xf]
    %v3814 = vld [vmem:[#allocation6 + $0x5c] sm:$0xf]
    %v3815 = vld [vmem:[#allocation6 + $0x60] sm:$0xf]
    %v3816 = vld [vmem:[#allocation6 + $0x64] sm:$0xf]
    %v3817 = vld [vmem:[#allocation6 + $0x68] sm:$0xf]
    %v3818 = vld [vmem:[#allocation6 + $0x6c] sm:$0xf]
    %v3819 = vld [vmem:[#allocation6 + $0x70] sm:$0xf]
    %v3820 = vld [vmem:[#allocation6 + $0x74] sm:$0xf]
    %v3821 = vld [vmem:[#allocation6 + $0x78] sm:$0xf]
    %v3822 = vld [vmem:[#allocation6 + $0x7c] sm:$0xf]
    %v3823 = vld [vmem:[#allocation6 + $0x80] sm:$0xf]
    %v3824 = vld [vmem:[#allocation6 + $0x84] sm:$0xf]
    %v3825 = vld [vmem:[#allocation6 + $0x88] sm:$0xf]
    %v3826 = vld [vmem:[#allocation6 + $0x8c] sm:$0xf]
    %v3827 = vld [vmem:[#allocation6 + $0x90] sm:$0xf]
    %v3828 = vld [vmem:[#allocation6 + $0x94] sm:$0xf]
    %v3829 = vld [vmem:[#allocation6 + $0x98] sm:$0xf]
    %v3830 = vld [vmem:[#allocation6 + $0x9c] sm:$0xf]
    %v3831 = vld [vmem:[#allocation6 + $0xa0] sm:$0xf]
    %v3832 = vld [vmem:[#allocation6 + $0xa4] sm:$0xf]
    %v3833 = vld [vmem:[#allocation6 + $0xa8] sm:$0xf]
    %v3834 = vld [vmem:[#allocation6 + $0xac] sm:$0xf]
    %v3835 = vld [vmem:[#allocation6 + $0xb0] sm:$0xf]
    %v3836 = vld [vmem:[#allocation6 + $0xb4] sm:$0xf]
    %v3837 = vld [vmem:[#allocation6 + $0xb8] sm:$0xf]
    %v3838 = vld [vmem:[#allocation6 + $0xbc] sm:$0xf]
    %v3839 = vld [vmem:[#allocation6 + $0xc0] sm:$0xf]
    %v3840 = vld [vmem:[#allocation6 + $0xc4] sm:$0xf]
    %v3841 = vld [vmem:[#allocation6 + $0xc8] sm:$0xf]
    %v3842 = vld [vmem:[#allocation6 + $0xcc] sm:$0xf]
    %v3843 = vld [vmem:[#allocation6 + $0xd0] sm:$0xf]
    %v3844 = vld [vmem:[#allocation6 + $0xd4] sm:$0xf]
    %v3845 = vld [vmem:[#allocation6 + $0xd8] sm:$0xf]
    %v3846 = vld [vmem:[#allocation6 + $0xdc] sm:$0xf]
    %v3847 = vld [vmem:[#allocation6 + $0xe0] sm:$0xf]
    %v3848 = vld [vmem:[#allocation6 + $0xe4] sm:$0xf]
    %v3849 = vld [vmem:[#allocation6 + $0xe8] sm:$0xf]
    %v3850 = vld [vmem:[#allocation6 + $0xec] sm:$0xf]
    %v3851 = vld [vmem:[#allocation6 + $0xf0] sm:$0xf]
    %v3852 = vld [vmem:[#allocation6 + $0xf4] sm:$0xf]
    %v3853 = vld [vmem:[#allocation6 + $0xf8] sm:$0xf]
    %v3854 = vld [vmem:[#allocation6 + $0xfc] sm:$0xf]
    %v3855 = vld [vmem:[%s10] sm:$0x1]
    %v3857 = vlaneseq
    %v3858 = vshrl.u32 %v3857, 7
    %v3859 = vsub.s32 0, %v3858
    %v3860 = vrot.slane %v3855, %v3859
    %v3926 = vunpack.c.l.b16 %v3791
    %v3927 = vunpack.c.l.b16 %v3792
    %v3928 = vunpack.c.l.b16 %v3793
    %v3929 = vunpack.c.l.b16 %v3794
    %v3930 = vunpack.c.l.b16 %v3795
    %v3931 = vunpack.c.l.b16 %v3796
    %v3932 = vunpack.c.l.b16 %v3797
    %v3933 = vunpack.c.l.b16 %v3798
    %v3934 = vunpack.c.l.b16 %v3799
    %v3935 = vunpack.c.l.b16 %v3800
    %v3936 = vunpack.c.l.b16 %v3801
    %v3937 = vunpack.c.l.b16 %v3802
    %v3938 = vunpack.c.l.b16 %v3803
    %v3939 = vunpack.c.l.b16 %v3804
    %v3940 = vunpack.c.l.b16 %v3805
    %v3941 = vunpack.c.l.b16 %v3806
    %v3942 = vunpack.c.l.b16 %v3807
    %v3943 = vunpack.c.l.b16 %v3808
    %v3944 = vunpack.c.l.b16 %v3809
    %v3945 = vunpack.c.l.b16 %v3810
    %v3946 = vunpack.c.l.b16 %v3811
    %v3947 = vunpack.c.l.b16 %v3812
    %v3948 = vunpack.c.l.b16 %v3813
    %v3949 = vunpack.c.l.b16 %v3814
    %v3950 = vunpack.c.l.b16 %v3815
    %v3951 = vunpack.c.l.b16 %v3816
    %v3952 = vunpack.c.l.b16 %v3817
    %v3953 = vunpack.c.l.b16 %v3818
    %v3954 = vunpack.c.l.b16 %v3819
    %v3955 = vunpack.c.l.b16 %v3820
    %v3956 = vunpack.c.l.b16 %v3821
    %v3957 = vunpack.c.l.b16 %v3822
    %v3958 = vunpack.c.l.b16 %v3823
    %v3959 = vunpack.c.l.b16 %v3824
    %v3960 = vunpack.c.l.b16 %v3825
    %v3961 = vunpack.c.l.b16 %v3826
    %v3962 = vunpack.c.l.b16 %v3827
    %v3963 = vunpack.c.l.b16 %v3828
    %v3964 = vunpack.c.l.b16 %v3829
    %v3965 = vunpack.c.l.b16 %v3830
    %v3966 = vunpack.c.l.b16 %v3831
    %v3967 = vunpack.c.l.b16 %v3832
    %v3968 = vunpack.c.l.b16 %v3833
    %v3969 = vunpack.c.l.b16 %v3834
    %v3970 = vunpack.c.l.b16 %v3835
    %v3971 = vunpack.c.l.b16 %v3836
    %v3972 = vunpack.c.l.b16 %v3837
    %v3973 = vunpack.c.l.b16 %v3838
    %v3974 = vunpack.c.l.b16 %v3839
    %v3975 = vunpack.c.l.b16 %v3840
    %v3976 = vunpack.c.l.b16 %v3841
    %v3977 = vunpack.c.l.b16 %v3842
    %v3978 = vunpack.c.l.b16 %v3843
    %v3979 = vunpack.c.l.b16 %v3844
    %v3980 = vunpack.c.l.b16 %v3845
    %v3981 = vunpack.c.l.b16 %v3846
    %v3982 = vunpack.c.l.b16 %v3847
    %v3983 = vunpack.c.l.b16 %v3848
    %v3984 = vunpack.c.l.b16 %v3849
    %v3985 = vunpack.c.l.b16 %v3850
    %v3986 = vunpack.c.l.b16 %v3851
    %v3987 = vunpack.c.l.b16 %v3852
    %v3988 = vunpack.c.l.b16 %v3853
    %v3989 = vunpack.c.l.b16 %v3854
    %v3990 = vpack.c.b16 %v3927, %v3926
    %v3991 = vpack.c.b16 %v3929, %v3928
    %v3992 = vpack.c.b16 %v3931, %v3930
    %v3993 = vpack.c.b16 %v3933, %v3932
    %v3994 = vpack.c.b16 %v3935, %v3934
    %v3995 = vpack.c.b16 %v3937, %v3936
    %v3996 = vpack.c.b16 %v3939, %v3938
    %v3997 = vpack.c.b16 %v3941, %v3940
    %v3998 = vpack.c.b16 %v3943, %v3942
    %v3999 = vpack.c.b16 %v3945, %v3944
    %v4000 = vpack.c.b16 %v3947, %v3946
    %v4001 = vpack.c.b16 %v3949, %v3948
    %v4002 = vpack.c.b16 %v3951, %v3950
    %v4003 = vpack.c.b16 %v3953, %v3952
    %v4004 = vpack.c.b16 %v3955, %v3954
    %v4005 = vpack.c.b16 %v3957, %v3956
    %v4006 = vpack.c.b16 %v3959, %v3958
    %v4007 = vpack.c.b16 %v3961, %v3960
    %v4008 = vpack.c.b16 %v3963, %v3962
    %v4009 = vpack.c.b16 %v3965, %v3964
    %v4010 = vpack.c.b16 %v3967, %v3966
    %v4011 = vpack.c.b16 %v3969, %v3968
    %v4012 = vpack.c.b16 %v3971, %v3970
    %v4013 = vpack.c.b16 %v3973, %v3972
    %v4014 = vpack.c.b16 %v3975, %v3974
    %v4015 = vpack.c.b16 %v3977, %v3976
    %v4016 = vpack.c.b16 %v3979, %v3978
    %v4017 = vpack.c.b16 %v3981, %v3980
    %v4018 = vpack.c.b16 %v3983, %v3982
    %v4019 = vpack.c.b16 %v3985, %v3984
    %v4020 = vpack.c.b16 %v3987, %v3986
    %v4021 = vpack.c.b16 %v3989, %v3988
    %4054 = vmatprep.subr.bf16.mxu0 0
    %4055 = vmatpush1.bf16.msra.mxu0 %v3990
    %4056 = vmatprep.subr.bf16.mxu0 0
    %4057 = vmatpush1.bf16.msra.mxu0 %v3991
    %4058 = vmatprep.subr.bf16.mxu0 0
    %4059 = vmatpush1.bf16.msra.mxu0 %v3992
    %4060 = vmatprep.subr.bf16.mxu0 0
    %4061 = vmatpush1.bf16.msra.mxu0 %v3993
    %4062 = vmatprep.subr.bf16.mxu0 0
    %4063 = vmatpush1.bf16.msra.mxu0 %v3994
    %4064 = vmatprep.subr.bf16.mxu0 0
    %4065 = vmatpush1.bf16.msra.mxu0 %v3995
    %4066 = vmatprep.subr.bf16.mxu0 0
    %4067 = vmatpush1.bf16.msra.mxu0 %v3996
    %4068 = vmatprep.subr.bf16.mxu0 0
    %4069 = vmatpush1.bf16.msra.mxu0 %v3997
    %4070 = vmatprep.subr.bf16.mxu0 0
    %4071 = vmatpush1.bf16.msra.mxu0 %v3998
    %4072 = vmatprep.subr.bf16.mxu0 0
    %4073 = vmatpush1.bf16.msra.mxu0 %v3999
    %4074 = vmatprep.subr.bf16.mxu0 0
    %4075 = vmatpush1.bf16.msra.mxu0 %v4000
    %4076 = vmatprep.subr.bf16.mxu0 0
    %4077 = vmatpush1.bf16.msra.mxu0 %v4001
    %4078 = vmatprep.subr.bf16.mxu0 0
    %4079 = vmatpush1.bf16.msra.mxu0 %v4002
    %4080 = vmatprep.subr.bf16.mxu0 0
    %4081 = vmatpush1.bf16.msra.mxu0 %v4003
    %4082 = vmatprep.subr.bf16.mxu0 0
    %4083 = vmatpush1.bf16.msra.mxu0 %v4004
    %4084 = vmatprep.subr.bf16.mxu0 0
    %4085 = vmatpush1.bf16.msra.mxu0 %v4005
    %4086 = vmatprep.mubr.bf16.mxu0 %v3788
    %4087 = vmatmul.mubr.bf16.gmra.mrb[0].mxu0 %v3787
    %v4088 = vpop.f32.mrb[0].mxu0
    %v4089 = vadd.f32 %v3860, %v4088
    %v4090 = vpop.f32.mrb[0].mxu0
    %v4091 = vpop.f32.mrb[0].mxu0
    %v4092 = vadd.f32 %v3860, %v4091
    %v4093 = vpop.f32.mrb[0].mxu0
    %4094 = vdwg.mxu0
    %4095 = vmatprep.subr.bf16.mxu0 0
    %4096 = vmatpush1.bf16.msra.mxu0 %v4006
    %4097 = vmatprep.subr.bf16.mxu0 0
    %4098 = vmatpush1.bf16.msra.mxu0 %v4007
    %4099 = vmatprep.subr.bf16.mxu0 0
    %4100 = vmatpush1.bf16.msra.mxu0 %v4008
    %4101 = vmatprep.subr.bf16.mxu0 0
    %4102 = vmatpush1.bf16.msra.mxu0 %v4009
    %4103 = vmatprep.subr.bf16.mxu0 0
    %4104 = vmatpush1.bf16.msra.mxu0 %v4010
    %4105 = vmatprep.subr.bf16.mxu0 0
    %4106 = vmatpush1.bf16.msra.mxu0 %v4011
    %4107 = vmatprep.subr.bf16.mxu0 0
    %4108 = vmatpush1.bf16.msra.mxu0 %v4012
    %4109 = vmatprep.subr.bf16.mxu0 0
    %4110 = vmatpush1.bf16.msra.mxu0 %v4013
    %4111 = vmatprep.subr.bf16.mxu0 0
    %4112 = vmatpush1.bf16.msra.mxu0 %v4014
    %4113 = vmatprep.subr.bf16.mxu0 0
    %4114 = vmatpush1.bf16.msra.mxu0 %v4015
    %4115 = vmatprep.subr.bf16.mxu0 0
    %4116 = vmatpush1.bf16.msra.mxu0 %v4016
    %4117 = vmatprep.subr.bf16.mxu0 0
    %4118 = vmatpush1.bf16.msra.mxu0 %v4017
    %4119 = vmatprep.subr.bf16.mxu0 0
    %4120 = vmatpush1.bf16.msra.mxu0 %v4018
    %4121 = vmatprep.subr.bf16.mxu0 0
    %4122 = vmatpush1.bf16.msra.mxu0 %v4019
    %4123 = vmatprep.subr.bf16.mxu0 0
    %4124 = vmatpush1.bf16.msra.mxu0 %v4020
    %4125 = vmatprep.subr.bf16.mxu0 0
    %4126 = vmatpush1.bf16.msra.mxu0 %v4021
    %4127 = vmatprep.mubr.bf16.mxu0 %v3790
    %4128 = vmatmul.mubr.bf16.gmra.mrb[0].mxu0 %v3789
    %v4129 = vpop.f32.mrb[0].mxu0
    %v4130 = vadd.f32 %v4089, %v4129
    %v4131 = vpop.f32.mrb[0].mxu0
    %v4132 = vpop.f32.mrb[0].mxu0
    %v4133 = vadd.f32 %v4092, %v4132
    %v4134 = vpop.f32.mrb[0].mxu0
    %4135 = vdwg.mxu0
    %v4136 = vxor.u32 %v4130, 2147483648
    %v4137 = vxor.u32 %v4133, 2147483648
    %v4138 = vmul.f32 %v4136, 1.442695
    %v4139 = vpow.pop %v4138
    %v4140 = vmul.f32 %v4137, 1.442695
    %v4141 = vpow.pop %v4140
    %v4142 = vadd.f32 %v4139, 1.0
    %v4143 = vadd.f32 %v4141, 1.0
    %v4144 = vrcp.pop %v4142
    %v4145 = vmul.f32 1.0, %v4144
    %v4146 = vrcp.pop %v4143
    %v4147 = vmul.f32 1.0, %v4146
    %v4148 = vmul.f32 %v4130, %v4145
    %v4149 = vmul.f32 %v4133, %v4147
    %4150 = vst [vmem:[%s11] sm:$0xff] %v4148
    %4151 = vst [vmem:[%s11 + $0x8] sm:$0xff] %v4149
    // Predicated region
    $region58: #{obstacle_encoder_cnn.1} parent=1 // pred_check
      _
    $region59: #{obstacle_encoder_cnn.1} parent=1 // pred_check_branch
      %4153 = sbr.rel (0) target = $region61
    $region60: #{obstacle_encoder_cnn.1} parent=1 // pred_region
      _
    $region61: #{obstacle_encoder_cnn.1} parent=1 // pred_fallthru
      _
    // Predicated region
    $region62: #{obstacle_encoder_cnn.1} parent=1 // pred_check
      _
    $region63: #{obstacle_encoder_cnn.1} parent=1 // pred_check_branch
      %4155 = sbr.rel (0) target = $region65
    $region64: #{obstacle_encoder_cnn.1} parent=1 // pred_region
      _
    $region65: #{obstacle_encoder_cnn.1} parent=1 // pred_fallthru
      _
    %4156 = vsyncpa [#allocation3], 1
    %4157 = vsyncpa [#allocation5], 1

</llo_original>
